<compile_context>
chip_gen: v6e
topology: v6e:2x2x1
jax: 0.10.0
libtpu: 0.0.40
codegen_flags: <defaults>
</compile_context>

<pallas_src>
import functools

import jax
import jax.numpy as jnp
from jax.experimental import pallas as pl
from jax.experimental.pallas import tpu as pltpu


def attention_kernel(x_ref, gamma_ref, beta_ref, wqkv_ref, wo_ref, bo_ref,
                     o_ref, ocat_ref, *, heads, dim_head, bt, seq, seq_p, eps):
    m_rows, _ = x_ref.shape                         # (bt*seq_p, D)

    # ---- LayerNorm over the model dim (f32 stats, biased variance, affine) --
    x = x_ref[...].astype(jnp.float32)
    mean = jnp.mean(x, axis=-1, keepdims=True)
    xc = x - mean
    var = jnp.mean(xc * xc, axis=-1, keepdims=True)
    xn = xc * jax.lax.rsqrt(var + eps)
    xn = xn * gamma_ref[...] + beta_ref[...]
    xn_b = xn.astype(jnp.bfloat16)                  # single bf16 copy for MXU

    # Additive key-padding bias (only materialized when seq was padded).
    if seq_p != seq:
        col = jax.lax.broadcasted_iota(jnp.int32, (1, 1, seq_p), 2)
        key_bias = jnp.where(col < seq, 0.0, -1e30).astype(jnp.float32)
    else:
        key_bias = None

    # ---- Per-head fused QKV projection + attention (static unroll, H small) -
    for h in range(heads):
        # One wide projection per head: (M, D) @ (D, 3*dh).  Wq columns
        # already carry the softmax scale (folded in the wrapper).
        qkv = jnp.dot(xn_b, wqkv_ref[h], preferred_element_type=jnp.float32)
        qkv = qkv.astype(jnp.bfloat16)              # (M, 3*dh); f32 copy dies
        q = qkv[:, :dim_head].reshape(bt, seq_p, dim_head)
        k = qkv[:, dim_head:2 * dim_head].reshape(bt, seq_p, dim_head)
        v = qkv[:, 2 * dim_head:].reshape(bt, seq_p, dim_head)

        # Scores contract the last dims of q/k directly (no explicit k^T).
        s = jnp.einsum('bnd,bmd->bnm', q, k,
                       preferred_element_type=jnp.float32)   # (bt, seq_p, seq_p)
        if key_bias is not None:
            s = s + key_bias
        s = s - jnp.max(s, axis=-1, keepdims=True)
        p = jnp.exp(s)
        p = p * pl.reciprocal(jnp.sum(p, axis=-1, keepdims=True), approx=True)

        o_h = jnp.einsum('bnm,bmd->bnd', p.astype(jnp.bfloat16), v,
                         preferred_element_type=jnp.float32)  # (bt, seq_p, dh)

        # Write this head's output into its column slice of the concat slab:
        # realizes 'b h n d -> b n (h d)' without any VPU head reduction.
        ocat_ref[:, h * dim_head:(h + 1) * dim_head] = (
            o_h.reshape(m_rows, dim_head).astype(jnp.bfloat16))

    # ---- Output projection: one (M, H*dh) @ (H*dh, D) matmul + bias ---------
    y = jnp.dot(ocat_ref[...], wo_ref[...], preferred_element_type=jnp.float32)
    y = y + bo_ref[...]
    o_ref[...] = y.astype(o_ref.dtype)


def attention_pallas(x, params, *, heads, dim_head, target_rows=256):
    """target_rows: aim bt*seq ~ 256 (v6e/v7x MXU width); >=128 is fine on v5e."""
    B, N, D = x.shape
    inner = heads * dim_head
    scale = dim_head ** -0.5
    gamma, beta, w_qkv, w_out, b_out = params

    # Pad the sequence to a sublane multiple so every block and in-kernel
    # regroup is (8,128)-tile aligned for any N.  Padded keys are masked in
    # the kernel; padded query rows are sliced off below.
    seq_p = ((N + 7) // 8) * 8
    x_p = x if seq_p == N else jnp.pad(x, ((0, 0), (0, seq_p - N), (0, 0)))

    # Batch elements per grid step (bt divides B, m_rows = bt*seq_p).
    bt = max(1, min(B, target_rows // max(seq_p, 1)))
    while B % bt != 0:
        bt -= 1
    m_rows = bt * seq_p

    # Wrapper-side (plain XLA) weight prep: per-head fused [Wq*scale | Wk | Wv]
    # slabs of shape (heads, D, 3*dim_head), bf16 for the MXU.
    wq, wk, wv = jnp.split(w_qkv, 3, axis=1)        # each (D, inner)

    def per_head(w):                                # (D, inner) -> (H, D, dh)
        return jnp.transpose(w.reshape(D, heads, dim_head), (1, 0, 2))

    wqkv_h = jnp.concatenate(
        [per_head(wq) * scale, per_head(wk), per_head(wv)],
        axis=-1).astype(jnp.bfloat16)               # (H, D, 3*dh)
    wo_b = w_out.astype(jnp.bfloat16)               # (inner, D), head-major rows

    x2 = x_p.reshape(B * seq_p, D)                  # lane-dense row slab

    kernel = functools.partial(attention_kernel, heads=heads, dim_head=dim_head,
                               bt=bt, seq=N, seq_p=seq_p, eps=1e-5)

    # Constant-index operands: single-buffer (never re-fetched across steps).
    const = dict(pipeline_mode=pl.Buffered(1))

    y = pl.pallas_call(
        kernel,
        out_shape=jax.ShapeDtypeStruct((B * seq_p, D), x.dtype),
        grid_spec=pltpu.PrefetchScalarGridSpec(
            num_scalar_prefetch=0,
            grid=(B // bt,),
            in_specs=[
                pl.BlockSpec((m_rows, D), lambda i: (i, 0)),                # x rows
                pl.BlockSpec((1, D), lambda i: (0, 0), **const),            # LN gamma
                pl.BlockSpec((1, D), lambda i: (0, 0), **const),            # LN beta
                pl.BlockSpec((heads, D, 3 * dim_head),
                             lambda i: (0, 0, 0), **const),                 # fused QKV
                pl.BlockSpec((inner, D), lambda i: (0, 0), **const),        # W_out
                pl.BlockSpec((1, D), lambda i: (0, 0), **const),            # b_out
            ],
            out_specs=pl.BlockSpec((m_rows, D), lambda i: (i, 0)),
            scratch_shapes=[pltpu.VMEM((m_rows, inner), jnp.bfloat16)],     # o concat
        ),
        compiler_params=pltpu.CompilerParams(
            dimension_semantics=("parallel",),
            vmem_limit_bytes=48 * 1024 * 1024),
    )(x2, gamma, beta, wqkv_h, wo_b, b_out)

    y = y.reshape(B, seq_p, D)
    return y[:, :N, :] if seq_p != N else y


def attention_reference(x, params, *, heads, dim_head):
    """Pure-JAX f32 reference mirroring the PyTorch forward."""
    gamma, beta, w_qkv, w_out, b_out = params
    B, N, D = x.shape
    inner = heads * dim_head
    scale = dim_head ** -0.5

    mean = jnp.mean(x, axis=-1, keepdims=True)
    var = jnp.mean((x - mean) ** 2, axis=-1, keepdims=True)
    xn = (x - mean) / jnp.sqrt(var + 1e-5) * gamma[0] + beta[0]

    qkv = xn @ w_qkv
    q, k, v = jnp.split(qkv, 3, axis=-1)

    def to_heads(t):  # 'b n (h d) -> b h n d'
        return t.reshape(B, N, heads, dim_head).transpose(0, 2, 1, 3)

    q, k, v = map(to_heads, (q, k, v))
    dots = jnp.einsum('bhnd,bhmd->bhnm', q, k) * scale
    attn = jax.nn.softmax(dots, axis=-1)
    out = jnp.einsum('bhnm,bhmd->bhnd', attn, v)
    out = out.transpose(0, 2, 1, 3).reshape(B, N, inner)
    return out @ w_out + b_out[0]


if __name__ == "__main__":
    # Small shapes consistent with the module defaults (heads=8, dim_head=64);
    # D=128 keeps kernel I/O lane-dense.
    B, N, D = 2, 8, 128
    heads, dim_head = 8, 64
    inner = heads * dim_head

    key = jax.random.PRNGKey(0)
    kx, k0, k1, k2, k3, k4 = jax.random.split(key, 6)

    x = jax.random.normal(kx, (B, N, D), dtype=jnp.float32)

    # Deterministic synthetic parameters (not a checkpoint).
    gamma = 1.0 + 0.1 * jax.random.normal(k0, (1, D), dtype=jnp.float32)
    beta = 0.1 * jax.random.normal(k4, (1, D), dtype=jnp.float32)
    w_qkv = 0.02 * jax.random.normal(k1, (D, 3 * inner), dtype=jnp.float32)
    w_out = 0.02 * jax.random.normal(k2, (inner, D), dtype=jnp.float32)
    b_out = 0.02 * jax.random.normal(k3, (1, D), dtype=jnp.float32)
    params = (gamma, beta, w_qkv, w_out, b_out)

    y = attention_pallas(x, params, heads=heads, dim_head=dim_head)
    y = jax.block_until_ready(y)

    y_ref = attention_reference(x, params, heads=heads, dim_head=dim_head)
    assert y.shape == (B, N, D)
    max_err = jnp.max(jnp.abs(y - y_ref))
    # bf16 MXU operands with f32 accumulation + approx reciprocal -> ~1e-3 err.
    assert jnp.allclose(y, y_ref, atol=2e-2, rtol=2e-2), (
        f"mismatch vs reference (max abs err {max_err})")
    print("KERNEL_OK")
</pallas_src>

<mosaic_0001>
module attributes {stable_mosaic.version = 11 : i64} {
  func.func @attention_kernel(%arg0: i32, %arg1: memref<16x128xf32, #tpu.memory_space<vmem>>, %arg2: memref<1x128xf32, #tpu.memory_space<vmem>>, %arg3: memref<1x128xf32, #tpu.memory_space<vmem>>, %arg4: memref<8x128x192xbf16, #tpu.memory_space<vmem>>, %arg5: memref<512x128xbf16, #tpu.memory_space<vmem>>, %arg6: memref<1x128xf32, #tpu.memory_space<vmem>>, %arg7: memref<16x128xf32, #tpu.memory_space<vmem>>, %arg8: memref<16x512xbf16, #tpu.memory_space<vmem>>) attributes {dimension_semantics = [#tpu.dimension_semantics<parallel>], iteration_bounds = array<i64: 1>, scalar_prefetch = 0 : i64, scratch_operands = 1 : i64, tpu.core_type = #tpu.core_type<tc>, window_params = [{transform_indices = @transform_0, window_bounds = array<i64: 16, 128>}, {pipeline_mode = #tpu.pipeline_mode<synchronous>, transform_indices = @transform_1, window_bounds = array<i64: 1, 128>}, {pipeline_mode = #tpu.pipeline_mode<synchronous>, transform_indices = @transform_2, window_bounds = array<i64: 1, 128>}, {pipeline_mode = #tpu.pipeline_mode<synchronous>, transform_indices = @transform_3, window_bounds = array<i64: 8, 128, 192>}, {pipeline_mode = #tpu.pipeline_mode<synchronous>, transform_indices = @transform_4, window_bounds = array<i64: 512, 128>}, {pipeline_mode = #tpu.pipeline_mode<synchronous>, transform_indices = @transform_5, window_bounds = array<i64: 1, 128>}, {transform_indices = @transform_6, window_bounds = array<i64: 16, 128>}]} {
    %c0 = arith.constant 0 : index
    %c0_0 = arith.constant 0 : index
    %0 = vector.load %arg1[%c0, %c0_0] : memref<16x128xf32, #tpu.memory_space<vmem>>, vector<16x128xf32>
    %cst = arith.constant dense<0.000000e+00> : vector<16xf32>
    %1 = vector.multi_reduction <add>, %0, %cst [1] : vector<16x128xf32> to vector<16xf32>
    %2 = vector.shape_cast %1 : vector<16xf32> to vector<16x1xf32>
    %cst_1 = arith.constant 1.280000e+02 : f32
    %3 = vector.broadcast %cst_1 : f32 to vector<16x1xf32>
    %4 = arith.divf %2, %3 : vector<16x1xf32>
    %5 = vector.broadcast %4 : vector<16x1xf32> to vector<16x128xf32>
    %6 = arith.subf %0, %5 : vector<16x128xf32>
    %7 = arith.mulf %6, %6 : vector<16x128xf32>
    %cst_2 = arith.constant dense<0.000000e+00> : vector<16xf32>
    %8 = vector.multi_reduction <add>, %7, %cst_2 [1] : vector<16x128xf32> to vector<16xf32>
    %9 = vector.shape_cast %8 : vector<16xf32> to vector<16x1xf32>
    %cst_3 = arith.constant 1.280000e+02 : f32
    %10 = vector.broadcast %cst_3 : f32 to vector<16x1xf32>
    %11 = arith.divf %9, %10 : vector<16x1xf32>
    %cst_4 = arith.constant 9.99999974E-6 : f32
    %12 = vector.broadcast %cst_4 : f32 to vector<16x1xf32>
    %13 = arith.addf %11, %12 : vector<16x1xf32>
    %14 = math.rsqrt %13 : vector<16x1xf32>
    %15 = vector.broadcast %14 : vector<16x1xf32> to vector<16x128xf32>
    %16 = arith.mulf %6, %15 : vector<16x128xf32>
    %c0_5 = arith.constant 0 : index
    %c0_6 = arith.constant 0 : index
    %17 = vector.load %arg2[%c0_5, %c0_6] : memref<1x128xf32, #tpu.memory_space<vmem>>, vector<1x128xf32>
    %18 = vector.broadcast %17 : vector<1x128xf32> to vector<16x128xf32>
    %19 = arith.mulf %16, %18 : vector<16x128xf32>
    %c0_7 = arith.constant 0 : index
    %c0_8 = arith.constant 0 : index
    %20 = vector.load %arg3[%c0_7, %c0_8] : memref<1x128xf32, #tpu.memory_space<vmem>>, vector<1x128xf32>
    %21 = vector.broadcast %20 : vector<1x128xf32> to vector<16x128xf32>
    %22 = arith.addf %19, %21 : vector<16x128xf32>
    %23 = arith.truncf %22 : vector<16x128xf32> to vector<16x128xbf16>
    %c0_9 = arith.constant 0 : index
    %c0_10 = arith.constant 0 : index
    %c0_11 = arith.constant 0 : index
    %24 = vector.load %arg4[%c0_9, %c0_10, %c0_11] : memref<8x128x192xbf16, #tpu.memory_space<vmem>>, vector<1x128x192xbf16>
    %25 = vector.shape_cast %24 : vector<1x128x192xbf16> to vector<128x192xbf16>
    %cst_12 = arith.constant dense<0.000000e+00> : vector<16x192xf32>
    %26 = tpu.matmul %23, %25, %cst_12 {dimension_numbers = #tpu.dot_dimension_numbers<[1], [0], [0], [1], [0, 0, 1, 1], [], []>} : vector<16x128xbf16>, vector<128x192xbf16>, vector<16x192xf32> -> vector<16x192xf32>
    %27 = arith.truncf %26 : vector<16x192xf32> to vector<16x192xbf16>
    %28 = vector.extract_strided_slice %27 {offsets = [0, 0], sizes = [16, 64], strides = [1, 1]} : vector<16x192xbf16> to vector<16x64xbf16>
    %29 = vector.shape_cast %28 : vector<16x64xbf16> to vector<2x8x64xbf16>
    %30 = vector.extract_strided_slice %27 {offsets = [0, 64], sizes = [16, 64], strides = [1, 1]} : vector<16x192xbf16> to vector<16x64xbf16>
    %31 = vector.shape_cast %30 : vector<16x64xbf16> to vector<2x8x64xbf16>
    %32 = vector.extract_strided_slice %27 {offsets = [0, 128], sizes = [16, 64], strides = [1, 1]} : vector<16x192xbf16> to vector<16x64xbf16>
    %33 = vector.shape_cast %32 : vector<16x64xbf16> to vector<2x8x64xbf16>
    "tpu.trace_start"() <{level = 10 : i32, message = "bnd,bmd->bnm"}> : () -> ()
    %cst_13 = arith.constant dense<0.000000e+00> : vector<2x8x8xf32>
    %34 = tpu.matmul %29, %31, %cst_13 {dimension_numbers = #tpu.dot_dimension_numbers<[2], [2], [1], [1], [0, 0, 0, 1, 1, 1], [0], [0]>} : vector<2x8x64xbf16>, vector<2x8x64xbf16>, vector<2x8x8xf32> -> vector<2x8x8xf32>
    "tpu.trace_stop"() : () -> ()
    %cst_14 = arith.constant dense<0xFF800000> : vector<2x8xf32>
    %35 = vector.multi_reduction <maximumf>, %34, %cst_14 [2] : vector<2x8x8xf32> to vector<2x8xf32>
    %36 = vector.shape_cast %35 : vector<2x8xf32> to vector<2x8x1xf32>
    %37 = vector.broadcast %36 : vector<2x8x1xf32> to vector<2x8x8xf32>
    %38 = arith.subf %34, %37 : vector<2x8x8xf32>
    %39 = math.exp %38 : vector<2x8x8xf32>
    %cst_15 = arith.constant dense<0.000000e+00> : vector<2x8xf32>
    %40 = vector.multi_reduction <add>, %39, %cst_15 [2] : vector<2x8x8xf32> to vector<2x8xf32>
    %41 = vector.shape_cast %40 : vector<2x8xf32> to vector<2x8x1xf32>
    %42 = tpu.reciprocal %41 {approx = true} : vector<2x8x1xf32> -> vector<2x8x1xf32>
    %43 = vector.broadcast %42 : vector<2x8x1xf32> to vector<2x8x8xf32>
    %44 = arith.mulf %39, %43 : vector<2x8x8xf32>
    %45 = arith.truncf %44 : vector<2x8x8xf32> to vector<2x8x8xbf16>
    "tpu.trace_start"() <{level = 10 : i32, message = "bnm,bmd->bnd"}> : () -> ()
    %cst_16 = arith.constant dense<0.000000e+00> : vector<2x8x64xf32>
    %46 = tpu.matmul %45, %33, %cst_16 {dimension_numbers = #tpu.dot_dimension_numbers<[2], [1], [1], [2], [0, 0, 0, 1, 1, 2], [0], [0]>} : vector<2x8x8xbf16>, vector<2x8x64xbf16>, vector<2x8x64xf32> -> vector<2x8x64xf32>
    "tpu.trace_stop"() : () -> ()
    %47 = vector.shape_cast %46 : vector<2x8x64xf32> to vector<16x64xf32>
    %48 = arith.truncf %47 : vector<16x64xf32> to vector<16x64xbf16>
    %c0_17 = arith.constant 0 : index
    %c0_18 = arith.constant 0 : index
    %49 = vector.load %arg8[%c0_17, %c0_18] : memref<16x512xbf16, #tpu.memory_space<vmem>>, vector<16x64xbf16>
    tpu.vector_store %arg8[%c0_17, %c0_18], %48 {strides = array<i32>} : memref<16x512xbf16, #tpu.memory_space<vmem>>, vector<16x64xbf16>,
    %c1 = arith.constant 1 : index
    %c0_19 = arith.constant 0 : index
    %c0_20 = arith.constant 0 : index
    %50 = vector.load %arg4[%c1, %c0_19, %c0_20] : memref<8x128x192xbf16, #tpu.memory_space<vmem>>, vector<1x128x192xbf16>
    %51 = vector.shape_cast %50 : vector<1x128x192xbf16> to vector<128x192xbf16>
    %cst_21 = arith.constant dense<0.000000e+00> : vector<16x192xf32>
    %52 = tpu.matmul %23, %51, %cst_21 {dimension_numbers = #tpu.dot_dimension_numbers<[1], [0], [0], [1], [0, 0, 1, 1], [], []>} : vector<16x128xbf16>, vector<128x192xbf16>, vector<16x192xf32> -> vector<16x192xf32>
    %53 = arith.truncf %52 : vector<16x192xf32> to vector<16x192xbf16>
    %54 = vector.extract_strided_slice %53 {offsets = [0, 0], sizes = [16, 64], strides = [1, 1]} : vector<16x192xbf16> to vector<16x64xbf16>
    %55 = vector.shape_cast %54 : vector<16x64xbf16> to vector<2x8x64xbf16>
    %56 = vector.extract_strided_slice %53 {offsets = [0, 64], sizes = [16, 64], strides = [1, 1]} : vector<16x192xbf16> to vector<16x64xbf16>
    %57 = vector.shape_cast %56 : vector<16x64xbf16> to vector<2x8x64xbf16>
    %58 = vector.extract_strided_slice %53 {offsets = [0, 128], sizes = [16, 64], strides = [1, 1]} : vector<16x192xbf16> to vector<16x64xbf16>
    %59 = vector.shape_cast %58 : vector<16x64xbf16> to vector<2x8x64xbf16>
    "tpu.trace_start"() <{level = 10 : i32, message = "bnd,bmd->bnm"}> : () -> ()
    %cst_22 = arith.constant dense<0.000000e+00> : vector<2x8x8xf32>
    %60 = tpu.matmul %55, %57, %cst_22 {dimension_numbers = #tpu.dot_dimension_numbers<[2], [2], [1], [1], [0, 0, 0, 1, 1, 1], [0], [0]>} : vector<2x8x64xbf16>, vector<2x8x64xbf16>, vector<2x8x8xf32> -> vector<2x8x8xf32>
    "tpu.trace_stop"() : () -> ()
    %cst_23 = arith.constant dense<0xFF800000> : vector<2x8xf32>
    %61 = vector.multi_reduction <maximumf>, %60, %cst_23 [2] : vector<2x8x8xf32> to vector<2x8xf32>
    %62 = vector.shape_cast %61 : vector<2x8xf32> to vector<2x8x1xf32>
    %63 = vector.broadcast %62 : vector<2x8x1xf32> to vector<2x8x8xf32>
    %64 = arith.subf %60, %63 : vector<2x8x8xf32>
    %65 = math.exp %64 : vector<2x8x8xf32>
    %cst_24 = arith.constant dense<0.000000e+00> : vector<2x8xf32>
    %66 = vector.multi_reduction <add>, %65, %cst_24 [2] : vector<2x8x8xf32> to vector<2x8xf32>
    %67 = vector.shape_cast %66 : vector<2x8xf32> to vector<2x8x1xf32>
    %68 = tpu.reciprocal %67 {approx = true} : vector<2x8x1xf32> -> vector<2x8x1xf32>
    %69 = vector.broadcast %68 : vector<2x8x1xf32> to vector<2x8x8xf32>
    %70 = arith.mulf %65, %69 : vector<2x8x8xf32>
    %71 = arith.truncf %70 : vector<2x8x8xf32> to vector<2x8x8xbf16>
    "tpu.trace_start"() <{level = 10 : i32, message = "bnm,bmd->bnd"}> : () -> ()
    %cst_25 = arith.constant dense<0.000000e+00> : vector<2x8x64xf32>
    %72 = tpu.matmul %71, %59, %cst_25 {dimension_numbers = #tpu.dot_dimension_numbers<[2], [1], [1], [2], [0, 0, 0, 1, 1, 2], [0], [0]>} : vector<2x8x8xbf16>, vector<2x8x64xbf16>, vector<2x8x64xf32> -> vector<2x8x64xf32>
    "tpu.trace_stop"() : () -> ()
    %73 = vector.shape_cast %72 : vector<2x8x64xf32> to vector<16x64xf32>
    %74 = arith.truncf %73 : vector<16x64xf32> to vector<16x64xbf16>
    %c0_26 = arith.constant 0 : index
    %c64 = arith.constant 64 : index
    %75 = vector.load %arg8[%c0_26, %c64] : memref<16x512xbf16, #tpu.memory_space<vmem>>, vector<16x64xbf16>
    tpu.vector_store %arg8[%c0_26, %c64], %74 {strides = array<i32>} : memref<16x512xbf16, #tpu.memory_space<vmem>>, vector<16x64xbf16>,
    %c2 = arith.constant 2 : index
    %c0_27 = arith.constant 0 : index
    %c0_28 = arith.constant 0 : index
    %76 = vector.load %arg4[%c2, %c0_27, %c0_28] : memref<8x128x192xbf16, #tpu.memory_space<vmem>>, vector<1x128x192xbf16>
    %77 = vector.shape_cast %76 : vector<1x128x192xbf16> to vector<128x192xbf16>
    %cst_29 = arith.constant dense<0.000000e+00> : vector<16x192xf32>
    %78 = tpu.matmul %23, %77, %cst_29 {dimension_numbers = #tpu.dot_dimension_numbers<[1], [0], [0], [1], [0, 0, 1, 1], [], []>} : vector<16x128xbf16>, vector<128x192xbf16>, vector<16x192xf32> -> vector<16x192xf32>
    %79 = arith.truncf %78 : vector<16x192xf32> to vector<16x192xbf16>
    %80 = vector.extract_strided_slice %79 {offsets = [0, 0], sizes = [16, 64], strides = [1, 1]} : vector<16x192xbf16> to vector<16x64xbf16>
    %81 = vector.shape_cast %80 : vector<16x64xbf16> to vector<2x8x64xbf16>
    %82 = vector.extract_strided_slice %79 {offsets = [0, 64], sizes = [16, 64], strides = [1, 1]} : vector<16x192xbf16> to vector<16x64xbf16>
    %83 = vector.shape_cast %82 : vector<16x64xbf16> to vector<2x8x64xbf16>
    %84 = vector.extract_strided_slice %79 {offsets = [0, 128], sizes = [16, 64], strides = [1, 1]} : vector<16x192xbf16> to vector<16x64xbf16>
    %85 = vector.shape_cast %84 : vector<16x64xbf16> to vector<2x8x64xbf16>
    "tpu.trace_start"() <{level = 10 : i32, message = "bnd,bmd->bnm"}> : () -> ()
    %cst_30 = arith.constant dense<0.000000e+00> : vector<2x8x8xf32>
    %86 = tpu.matmul %81, %83, %cst_30 {dimension_numbers = #tpu.dot_dimension_numbers<[2], [2], [1], [1], [0, 0, 0, 1, 1, 1], [0], [0]>} : vector<2x8x64xbf16>, vector<2x8x64xbf16>, vector<2x8x8xf32> -> vector<2x8x8xf32>
    "tpu.trace_stop"() : () -> ()
    %cst_31 = arith.constant dense<0xFF800000> : vector<2x8xf32>
    %87 = vector.multi_reduction <maximumf>, %86, %cst_31 [2] : vector<2x8x8xf32> to vector<2x8xf32>
    %88 = vector.shape_cast %87 : vector<2x8xf32> to vector<2x8x1xf32>
    %89 = vector.broadcast %88 : vector<2x8x1xf32> to vector<2x8x8xf32>
    %90 = arith.subf %86, %89 : vector<2x8x8xf32>
    %91 = math.exp %90 : vector<2x8x8xf32>
    %cst_32 = arith.constant dense<0.000000e+00> : vector<2x8xf32>
    %92 = vector.multi_reduction <add>, %91, %cst_32 [2] : vector<2x8x8xf32> to vector<2x8xf32>
    %93 = vector.shape_cast %92 : vector<2x8xf32> to vector<2x8x1xf32>
    %94 = tpu.reciprocal %93 {approx = true} : vector<2x8x1xf32> -> vector<2x8x1xf32>
    %95 = vector.broadcast %94 : vector<2x8x1xf32> to vector<2x8x8xf32>
    %96 = arith.mulf %91, %95 : vector<2x8x8xf32>
    %97 = arith.truncf %96 : vector<2x8x8xf32> to vector<2x8x8xbf16>
    "tpu.trace_start"() <{level = 10 : i32, message = "bnm,bmd->bnd"}> : () -> ()
    %cst_33 = arith.constant dense<0.000000e+00> : vector<2x8x64xf32>
    %98 = tpu.matmul %97, %85, %cst_33 {dimension_numbers = #tpu.dot_dimension_numbers<[2], [1], [1], [2], [0, 0, 0, 1, 1, 2], [0], [0]>} : vector<2x8x8xbf16>, vector<2x8x64xbf16>, vector<2x8x64xf32> -> vector<2x8x64xf32>
    "tpu.trace_stop"() : () -> ()
    %99 = vector.shape_cast %98 : vector<2x8x64xf32> to vector<16x64xf32>
    %100 = arith.truncf %99 : vector<16x64xf32> to vector<16x64xbf16>
    %c0_34 = arith.constant 0 : index
    %c128 = arith.constant 128 : index
    %101 = vector.load %arg8[%c0_34, %c128] : memref<16x512xbf16, #tpu.memory_space<vmem>>, vector<16x64xbf16>
    tpu.vector_store %arg8[%c0_34, %c128], %100 {strides = array<i32>} : memref<16x512xbf16, #tpu.memory_space<vmem>>, vector<16x64xbf16>,
    %c3 = arith.constant 3 : index
    %c0_35 = arith.constant 0 : index
    %c0_36 = arith.constant 0 : index
    %102 = vector.load %arg4[%c3, %c0_35, %c0_36] : memref<8x128x192xbf16, #tpu.memory_space<vmem>>, vector<1x128x192xbf16>
    %103 = vector.shape_cast %102 : vector<1x128x192xbf16> to vector<128x192xbf16>
    %cst_37 = arith.constant dense<0.000000e+00> : vector<16x192xf32>
    %104 = tpu.matmul %23, %103, %cst_37 {dimension_numbers = #tpu.dot_dimension_numbers<[1], [0], [0], [1], [0, 0, 1, 1], [], []>} : vector<16x128xbf16>, vector<128x192xbf16>, vector<16x192xf32> -> vector<16x192xf32>
    %105 = arith.truncf %104 : vector<16x192xf32> to vector<16x192xbf16>
    %106 = vector.extract_strided_slice %105 {offsets = [0, 0], sizes = [16, 64], strides = [1, 1]} : vector<16x192xbf16> to vector<16x64xbf16>
    %107 = vector.shape_cast %106 : vector<16x64xbf16> to vector<2x8x64xbf16>
    %108 = vector.extract_strided_slice %105 {offsets = [0, 64], sizes = [16, 64], strides = [1, 1]} : vector<16x192xbf16> to vector<16x64xbf16>
    %109 = vector.shape_cast %108 : vector<16x64xbf16> to vector<2x8x64xbf16>
    %110 = vector.extract_strided_slice %105 {offsets = [0, 128], sizes = [16, 64], strides = [1, 1]} : vector<16x192xbf16> to vector<16x64xbf16>
    %111 = vector.shape_cast %110 : vector<16x64xbf16> to vector<2x8x64xbf16>
    "tpu.trace_start"() <{level = 10 : i32, message = "bnd,bmd->bnm"}> : () -> ()
    %cst_38 = arith.constant dense<0.000000e+00> : vector<2x8x8xf32>
    %112 = tpu.matmul %107, %109, %cst_38 {dimension_numbers = #tpu.dot_dimension_numbers<[2], [2], [1], [1], [0, 0, 0, 1, 1, 1], [0], [0]>} : vector<2x8x64xbf16>, vector<2x8x64xbf16>, vector<2x8x8xf32> -> vector<2x8x8xf32>
    "tpu.trace_stop"() : () -> ()
    %cst_39 = arith.constant dense<0xFF800000> : vector<2x8xf32>
    %113 = vector.multi_reduction <maximumf>, %112, %cst_39 [2] : vector<2x8x8xf32> to vector<2x8xf32>
    %114 = vector.shape_cast %113 : vector<2x8xf32> to vector<2x8x1xf32>
    %115 = vector.broadcast %114 : vector<2x8x1xf32> to vector<2x8x8xf32>
    %116 = arith.subf %112, %115 : vector<2x8x8xf32>
    %117 = math.exp %116 : vector<2x8x8xf32>
    %cst_40 = arith.constant dense<0.000000e+00> : vector<2x8xf32>
    %118 = vector.multi_reduction <add>, %117, %cst_40 [2] : vector<2x8x8xf32> to vector<2x8xf32>
    %119 = vector.shape_cast %118 : vector<2x8xf32> to vector<2x8x1xf32>
    %120 = tpu.reciprocal %119 {approx = true} : vector<2x8x1xf32> -> vector<2x8x1xf32>
    %121 = vector.broadcast %120 : vector<2x8x1xf32> to vector<2x8x8xf32>
    %122 = arith.mulf %117, %121 : vector<2x8x8xf32>
    %123 = arith.truncf %122 : vector<2x8x8xf32> to vector<2x8x8xbf16>
    "tpu.trace_start"() <{level = 10 : i32, message = "bnm,bmd->bnd"}> : () -> ()
    %cst_41 = arith.constant dense<0.000000e+00> : vector<2x8x64xf32>
    %124 = tpu.matmul %123, %111, %cst_41 {dimension_numbers = #tpu.dot_dimension_numbers<[2], [1], [1], [2], [0, 0, 0, 1, 1, 2], [0], [0]>} : vector<2x8x8xbf16>, vector<2x8x64xbf16>, vector<2x8x64xf32> -> vector<2x8x64xf32>
    "tpu.trace_stop"() : () -> ()
    %125 = vector.shape_cast %124 : vector<2x8x64xf32> to vector<16x64xf32>
    %126 = arith.truncf %125 : vector<16x64xf32> to vector<16x64xbf16>
    %c0_42 = arith.constant 0 : index
    %c192 = arith.constant 192 : index
    %127 = vector.load %arg8[%c0_42, %c192] : memref<16x512xbf16, #tpu.memory_space<vmem>>, vector<16x64xbf16>
    tpu.vector_store %arg8[%c0_42, %c192], %126 {strides = array<i32>} : memref<16x512xbf16, #tpu.memory_space<vmem>>, vector<16x64xbf16>,
    %c4 = arith.constant 4 : index
    %c0_43 = arith.constant 0 : index
    %c0_44 = arith.constant 0 : index
    %128 = vector.load %arg4[%c4, %c0_43, %c0_44] : memref<8x128x192xbf16, #tpu.memory_space<vmem>>, vector<1x128x192xbf16>
    %129 = vector.shape_cast %128 : vector<1x128x192xbf16> to vector<128x192xbf16>
    %cst_45 = arith.constant dense<0.000000e+00> : vector<16x192xf32>
    %130 = tpu.matmul %23, %129, %cst_45 {dimension_numbers = #tpu.dot_dimension_numbers<[1], [0], [0], [1], [0, 0, 1, 1], [], []>} : vector<16x128xbf16>, vector<128x192xbf16>, vector<16x192xf32> -> vector<16x192xf32>
    %131 = arith.truncf %130 : vector<16x192xf32> to vector<16x192xbf16>
    %132 = vector.extract_strided_slice %131 {offsets = [0, 0], sizes = [16, 64], strides = [1, 1]} : vector<16x192xbf16> to vector<16x64xbf16>
    %133 = vector.shape_cast %132 : vector<16x64xbf16> to vector<2x8x64xbf16>
    %134 = vector.extract_strided_slice %131 {offsets = [0, 64], sizes = [16, 64], strides = [1, 1]} : vector<16x192xbf16> to vector<16x64xbf16>
    %135 = vector.shape_cast %134 : vector<16x64xbf16> to vector<2x8x64xbf16>
    %136 = vector.extract_strided_slice %131 {offsets = [0, 128], sizes = [16, 64], strides = [1, 1]} : vector<16x192xbf16> to vector<16x64xbf16>
    %137 = vector.shape_cast %136 : vector<16x64xbf16> to vector<2x8x64xbf16>
    "tpu.trace_start"() <{level = 10 : i32, message = "bnd,bmd->bnm"}> : () -> ()
    %cst_46 = arith.constant dense<0.000000e+00> : vector<2x8x8xf32>
    %138 = tpu.matmul %133, %135, %cst_46 {dimension_numbers = #tpu.dot_dimension_numbers<[2], [2], [1], [1], [0, 0, 0, 1, 1, 1], [0], [0]>} : vector<2x8x64xbf16>, vector<2x8x64xbf16>, vector<2x8x8xf32> -> vector<2x8x8xf32>
    "tpu.trace_stop"() : () -> ()
    %cst_47 = arith.constant dense<0xFF800000> : vector<2x8xf32>
    %139 = vector.multi_reduction <maximumf>, %138, %cst_47 [2] : vector<2x8x8xf32> to vector<2x8xf32>
    %140 = vector.shape_cast %139 : vector<2x8xf32> to vector<2x8x1xf32>
    %141 = vector.broadcast %140 : vector<2x8x1xf32> to vector<2x8x8xf32>
    %142 = arith.subf %138, %141 : vector<2x8x8xf32>
    %143 = math.exp %142 : vector<2x8x8xf32>
    %cst_48 = arith.constant dense<0.000000e+00> : vector<2x8xf32>
    %144 = vector.multi_reduction <add>, %143, %cst_48 [2] : vector<2x8x8xf32> to vector<2x8xf32>
    %145 = vector.shape_cast %144 : vector<2x8xf32> to vector<2x8x1xf32>
    %146 = tpu.reciprocal %145 {approx = true} : vector<2x8x1xf32> -> vector<2x8x1xf32>
    %147 = vector.broadcast %146 : vector<2x8x1xf32> to vector<2x8x8xf32>
    %148 = arith.mulf %143, %147 : vector<2x8x8xf32>
    %149 = arith.truncf %148 : vector<2x8x8xf32> to vector<2x8x8xbf16>
    "tpu.trace_start"() <{level = 10 : i32, message = "bnm,bmd->bnd"}> : () -> ()
    %cst_49 = arith.constant dense<0.000000e+00> : vector<2x8x64xf32>
    %150 = tpu.matmul %149, %137, %cst_49 {dimension_numbers = #tpu.dot_dimension_numbers<[2], [1], [1], [2], [0, 0, 0, 1, 1, 2], [0], [0]>} : vector<2x8x8xbf16>, vector<2x8x64xbf16>, vector<2x8x64xf32> -> vector<2x8x64xf32>
    "tpu.trace_stop"() : () -> ()
    %151 = vector.shape_cast %150 : vector<2x8x64xf32> to vector<16x64xf32>
    %152 = arith.truncf %151 : vector<16x64xf32> to vector<16x64xbf16>
    %c0_50 = arith.constant 0 : index
    %c256 = arith.constant 256 : index
    %153 = vector.load %arg8[%c0_50, %c256] : memref<16x512xbf16, #tpu.memory_space<vmem>>, vector<16x64xbf16>
    tpu.vector_store %arg8[%c0_50, %c256], %152 {strides = array<i32>} : memref<16x512xbf16, #tpu.memory_space<vmem>>, vector<16x64xbf16>,
    %c5 = arith.constant 5 : index
    %c0_51 = arith.constant 0 : index
    %c0_52 = arith.constant 0 : index
    %154 = vector.load %arg4[%c5, %c0_51, %c0_52] : memref<8x128x192xbf16, #tpu.memory_space<vmem>>, vector<1x128x192xbf16>
    %155 = vector.shape_cast %154 : vector<1x128x192xbf16> to vector<128x192xbf16>
    %cst_53 = arith.constant dense<0.000000e+00> : vector<16x192xf32>
    %156 = tpu.matmul %23, %155, %cst_53 {dimension_numbers = #tpu.dot_dimension_numbers<[1], [0], [0], [1], [0, 0, 1, 1], [], []>} : vector<16x128xbf16>, vector<128x192xbf16>, vector<16x192xf32> -> vector<16x192xf32>
    %157 = arith.truncf %156 : vector<16x192xf32> to vector<16x192xbf16>
    %158 = vector.extract_strided_slice %157 {offsets = [0, 0], sizes = [16, 64], strides = [1, 1]} : vector<16x192xbf16> to vector<16x64xbf16>
    %159 = vector.shape_cast %158 : vector<16x64xbf16> to vector<2x8x64xbf16>
    %160 = vector.extract_strided_slice %157 {offsets = [0, 64], sizes = [16, 64], strides = [1, 1]} : vector<16x192xbf16> to vector<16x64xbf16>
    %161 = vector.shape_cast %160 : vector<16x64xbf16> to vector<2x8x64xbf16>
    %162 = vector.extract_strided_slice %157 {offsets = [0, 128], sizes = [16, 64], strides = [1, 1]} : vector<16x192xbf16> to vector<16x64xbf16>
    %163 = vector.shape_cast %162 : vector<16x64xbf16> to vector<2x8x64xbf16>
    "tpu.trace_start"() <{level = 10 : i32, message = "bnd,bmd->bnm"}> : () -> ()
    %cst_54 = arith.constant dense<0.000000e+00> : vector<2x8x8xf32>
    %164 = tpu.matmul %159, %161, %cst_54 {dimension_numbers = #tpu.dot_dimension_numbers<[2], [2], [1], [1], [0, 0, 0, 1, 1, 1], [0], [0]>} : vector<2x8x64xbf16>, vector<2x8x64xbf16>, vector<2x8x8xf32> -> vector<2x8x8xf32>
    "tpu.trace_stop"() : () -> ()
    %cst_55 = arith.constant dense<0xFF800000> : vector<2x8xf32>
    %165 = vector.multi_reduction <maximumf>, %164, %cst_55 [2] : vector<2x8x8xf32> to vector<2x8xf32>
    %166 = vector.shape_cast %165 : vector<2x8xf32> to vector<2x8x1xf32>
    %167 = vector.broadcast %166 : vector<2x8x1xf32> to vector<2x8x8xf32>
    %168 = arith.subf %164, %167 : vector<2x8x8xf32>
    %169 = math.exp %168 : vector<2x8x8xf32>
    %cst_56 = arith.constant dense<0.000000e+00> : vector<2x8xf32>
    %170 = vector.multi_reduction <add>, %169, %cst_56 [2] : vector<2x8x8xf32> to vector<2x8xf32>
    %171 = vector.shape_cast %170 : vector<2x8xf32> to vector<2x8x1xf32>
    %172 = tpu.reciprocal %171 {approx = true} : vector<2x8x1xf32> -> vector<2x8x1xf32>
    %173 = vector.broadcast %172 : vector<2x8x1xf32> to vector<2x8x8xf32>
    %174 = arith.mulf %169, %173 : vector<2x8x8xf32>
    %175 = arith.truncf %174 : vector<2x8x8xf32> to vector<2x8x8xbf16>
    "tpu.trace_start"() <{level = 10 : i32, message = "bnm,bmd->bnd"}> : () -> ()
    %cst_57 = arith.constant dense<0.000000e+00> : vector<2x8x64xf32>
    %176 = tpu.matmul %175, %163, %cst_57 {dimension_numbers = #tpu.dot_dimension_numbers<[2], [1], [1], [2], [0, 0, 0, 1, 1, 2], [0], [0]>} : vector<2x8x8xbf16>, vector<2x8x64xbf16>, vector<2x8x64xf32> -> vector<2x8x64xf32>
    "tpu.trace_stop"() : () -> ()
    %177 = vector.shape_cast %176 : vector<2x8x64xf32> to vector<16x64xf32>
    %178 = arith.truncf %177 : vector<16x64xf32> to vector<16x64xbf16>
    %c0_58 = arith.constant 0 : index
    %c320 = arith.constant 320 : index
    %179 = vector.load %arg8[%c0_58, %c320] : memref<16x512xbf16, #tpu.memory_space<vmem>>, vector<16x64xbf16>
    tpu.vector_store %arg8[%c0_58, %c320], %178 {strides = array<i32>} : memref<16x512xbf16, #tpu.memory_space<vmem>>, vector<16x64xbf16>,
    %c6 = arith.constant 6 : index
    %c0_59 = arith.constant 0 : index
    %c0_60 = arith.constant 0 : index
    %180 = vector.load %arg4[%c6, %c0_59, %c0_60] : memref<8x128x192xbf16, #tpu.memory_space<vmem>>, vector<1x128x192xbf16>
    %181 = vector.shape_cast %180 : vector<1x128x192xbf16> to vector<128x192xbf16>
    %cst_61 = arith.constant dense<0.000000e+00> : vector<16x192xf32>
    %182 = tpu.matmul %23, %181, %cst_61 {dimension_numbers = #tpu.dot_dimension_numbers<[1], [0], [0], [1], [0, 0, 1, 1], [], []>} : vector<16x128xbf16>, vector<128x192xbf16>, vector<16x192xf32> -> vector<16x192xf32>
    %183 = arith.truncf %182 : vector<16x192xf32> to vector<16x192xbf16>
    %184 = vector.extract_strided_slice %183 {offsets = [0, 0], sizes = [16, 64], strides = [1, 1]} : vector<16x192xbf16> to vector<16x64xbf16>
    %185 = vector.shape_cast %184 : vector<16x64xbf16> to vector<2x8x64xbf16>
    %186 = vector.extract_strided_slice %183 {offsets = [0, 64], sizes = [16, 64], strides = [1, 1]} : vector<16x192xbf16> to vector<16x64xbf16>
    %187 = vector.shape_cast %186 : vector<16x64xbf16> to vector<2x8x64xbf16>
    %188 = vector.extract_strided_slice %183 {offsets = [0, 128], sizes = [16, 64], strides = [1, 1]} : vector<16x192xbf16> to vector<16x64xbf16>
    %189 = vector.shape_cast %188 : vector<16x64xbf16> to vector<2x8x64xbf16>
    "tpu.trace_start"() <{level = 10 : i32, message = "bnd,bmd->bnm"}> : () -> ()
    %cst_62 = arith.constant dense<0.000000e+00> : vector<2x8x8xf32>
    %190 = tpu.matmul %185, %187, %cst_62 {dimension_numbers = #tpu.dot_dimension_numbers<[2], [2], [1], [1], [0, 0, 0, 1, 1, 1], [0], [0]>} : vector<2x8x64xbf16>, vector<2x8x64xbf16>, vector<2x8x8xf32> -> vector<2x8x8xf32>
    "tpu.trace_stop"() : () -> ()
    %cst_63 = arith.constant dense<0xFF800000> : vector<2x8xf32>
    %191 = vector.multi_reduction <maximumf>, %190, %cst_63 [2] : vector<2x8x8xf32> to vector<2x8xf32>
    %192 = vector.shape_cast %191 : vector<2x8xf32> to vector<2x8x1xf32>
    %193 = vector.broadcast %192 : vector<2x8x1xf32> to vector<2x8x8xf32>
    %194 = arith.subf %190, %193 : vector<2x8x8xf32>
    %195 = math.exp %194 : vector<2x8x8xf32>
    %cst_64 = arith.constant dense<0.000000e+00> : vector<2x8xf32>
    %196 = vector.multi_reduction <add>, %195, %cst_64 [2] : vector<2x8x8xf32> to vector<2x8xf32>
    %197 = vector.shape_cast %196 : vector<2x8xf32> to vector<2x8x1xf32>
    %198 = tpu.reciprocal %197 {approx = true} : vector<2x8x1xf32> -> vector<2x8x1xf32>
    %199 = vector.broadcast %198 : vector<2x8x1xf32> to vector<2x8x8xf32>
    %200 = arith.mulf %195, %199 : vector<2x8x8xf32>
    %201 = arith.truncf %200 : vector<2x8x8xf32> to vector<2x8x8xbf16>
    "tpu.trace_start"() <{level = 10 : i32, message = "bnm,bmd->bnd"}> : () -> ()
    %cst_65 = arith.constant dense<0.000000e+00> : vector<2x8x64xf32>
    %202 = tpu.matmul %201, %189, %cst_65 {dimension_numbers = #tpu.dot_dimension_numbers<[2], [1], [1], [2], [0, 0, 0, 1, 1, 2], [0], [0]>} : vector<2x8x8xbf16>, vector<2x8x64xbf16>, vector<2x8x64xf32> -> vector<2x8x64xf32>
    "tpu.trace_stop"() : () -> ()
    %203 = vector.shape_cast %202 : vector<2x8x64xf32> to vector<16x64xf32>
    %204 = arith.truncf %203 : vector<16x64xf32> to vector<16x64xbf16>
    %c0_66 = arith.constant 0 : index
    %c384 = arith.constant 384 : index
    %205 = vector.load %arg8[%c0_66, %c384] : memref<16x512xbf16, #tpu.memory_space<vmem>>, vector<16x64xbf16>
    tpu.vector_store %arg8[%c0_66, %c384], %204 {strides = array<i32>} : memref<16x512xbf16, #tpu.memory_space<vmem>>, vector<16x64xbf16>,
    %c7 = arith.constant 7 : index
    %c0_67 = arith.constant 0 : index
    %c0_68 = arith.constant 0 : index
    %206 = vector.load %arg4[%c7, %c0_67, %c0_68] : memref<8x128x192xbf16, #tpu.memory_space<vmem>>, vector<1x128x192xbf16>
    %207 = vector.shape_cast %206 : vector<1x128x192xbf16> to vector<128x192xbf16>
    %cst_69 = arith.constant dense<0.000000e+00> : vector<16x192xf32>
    %208 = tpu.matmul %23, %207, %cst_69 {dimension_numbers = #tpu.dot_dimension_numbers<[1], [0], [0], [1], [0, 0, 1, 1], [], []>} : vector<16x128xbf16>, vector<128x192xbf16>, vector<16x192xf32> -> vector<16x192xf32>
    %209 = arith.truncf %208 : vector<16x192xf32> to vector<16x192xbf16>
    %210 = vector.extract_strided_slice %209 {offsets = [0, 0], sizes = [16, 64], strides = [1, 1]} : vector<16x192xbf16> to vector<16x64xbf16>
    %211 = vector.shape_cast %210 : vector<16x64xbf16> to vector<2x8x64xbf16>
    %212 = vector.extract_strided_slice %209 {offsets = [0, 64], sizes = [16, 64], strides = [1, 1]} : vector<16x192xbf16> to vector<16x64xbf16>
    %213 = vector.shape_cast %212 : vector<16x64xbf16> to vector<2x8x64xbf16>
    %214 = vector.extract_strided_slice %209 {offsets = [0, 128], sizes = [16, 64], strides = [1, 1]} : vector<16x192xbf16> to vector<16x64xbf16>
    %215 = vector.shape_cast %214 : vector<16x64xbf16> to vector<2x8x64xbf16>
    "tpu.trace_start"() <{level = 10 : i32, message = "bnd,bmd->bnm"}> : () -> ()
    %cst_70 = arith.constant dense<0.000000e+00> : vector<2x8x8xf32>
    %216 = tpu.matmul %211, %213, %cst_70 {dimension_numbers = #tpu.dot_dimension_numbers<[2], [2], [1], [1], [0, 0, 0, 1, 1, 1], [0], [0]>} : vector<2x8x64xbf16>, vector<2x8x64xbf16>, vector<2x8x8xf32> -> vector<2x8x8xf32>
    "tpu.trace_stop"() : () -> ()
    %cst_71 = arith.constant dense<0xFF800000> : vector<2x8xf32>
    %217 = vector.multi_reduction <maximumf>, %216, %cst_71 [2] : vector<2x8x8xf32> to vector<2x8xf32>
    %218 = vector.shape_cast %217 : vector<2x8xf32> to vector<2x8x1xf32>
    %219 = vector.broadcast %218 : vector<2x8x1xf32> to vector<2x8x8xf32>
    %220 = arith.subf %216, %219 : vector<2x8x8xf32>
    %221 = math.exp %220 : vector<2x8x8xf32>
    %cst_72 = arith.constant dense<0.000000e+00> : vector<2x8xf32>
    %222 = vector.multi_reduction <add>, %221, %cst_72 [2] : vector<2x8x8xf32> to vector<2x8xf32>
    %223 = vector.shape_cast %222 : vector<2x8xf32> to vector<2x8x1xf32>
    %224 = tpu.reciprocal %223 {approx = true} : vector<2x8x1xf32> -> vector<2x8x1xf32>
    %225 = vector.broadcast %224 : vector<2x8x1xf32> to vector<2x8x8xf32>
    %226 = arith.mulf %221, %225 : vector<2x8x8xf32>
    %227 = arith.truncf %226 : vector<2x8x8xf32> to vector<2x8x8xbf16>
    "tpu.trace_start"() <{level = 10 : i32, message = "bnm,bmd->bnd"}> : () -> ()
    %cst_73 = arith.constant dense<0.000000e+00> : vector<2x8x64xf32>
    %228 = tpu.matmul %227, %215, %cst_73 {dimension_numbers = #tpu.dot_dimension_numbers<[2], [1], [1], [2], [0, 0, 0, 1, 1, 2], [0], [0]>} : vector<2x8x8xbf16>, vector<2x8x64xbf16>, vector<2x8x64xf32> -> vector<2x8x64xf32>
    "tpu.trace_stop"() : () -> ()
    %229 = vector.shape_cast %228 : vector<2x8x64xf32> to vector<16x64xf32>
    %230 = arith.truncf %229 : vector<16x64xf32> to vector<16x64xbf16>
    %c0_74 = arith.constant 0 : index
    %c448 = arith.constant 448 : index
    %231 = vector.load %arg8[%c0_74, %c448] : memref<16x512xbf16, #tpu.memory_space<vmem>>, vector<16x64xbf16>
    tpu.vector_store %arg8[%c0_74, %c448], %230 {strides = array<i32>} : memref<16x512xbf16, #tpu.memory_space<vmem>>, vector<16x64xbf16>,
    %c0_75 = arith.constant 0 : index
    %c0_76 = arith.constant 0 : index
    %232 = vector.load %arg8[%c0_75, %c0_76] : memref<16x512xbf16, #tpu.memory_space<vmem>>, vector<16x512xbf16>
    %c0_77 = arith.constant 0 : index
    %c0_78 = arith.constant 0 : index
    %233 = vector.load %arg5[%c0_77, %c0_78] : memref<512x128xbf16, #tpu.memory_space<vmem>>, vector<512x128xbf16>
    %cst_79 = arith.constant dense<0.000000e+00> : vector<16x128xf32>
    %234 = tpu.matmul %232, %233, %cst_79 {dimension_numbers = #tpu.dot_dimension_numbers<[1], [0], [0], [1], [0, 0, 1, 1], [], []>} : vector<16x512xbf16>, vector<512x128xbf16>, vector<16x128xf32> -> vector<16x128xf32>
    %c0_80 = arith.constant 0 : index
    %c0_81 = arith.constant 0 : index
    %235 = vector.load %arg6[%c0_80, %c0_81] : memref<1x128xf32, #tpu.memory_space<vmem>>, vector<1x128xf32>
    %236 = vector.broadcast %235 : vector<1x128xf32> to vector<16x128xf32>
    %237 = arith.addf %234, %236 : vector<16x128xf32>
    %c0_82 = arith.constant 0 : index
    %c0_83 = arith.constant 0 : index
    %238 = vector.load %arg7[%c0_82, %c0_83] : memref<16x128xf32, #tpu.memory_space<vmem>>, vector<16x128xf32>
    tpu.vector_store %arg7[%c0_82, %c0_83], %237 {strides = array<i32>} : memref<16x128xf32, #tpu.memory_space<vmem>>, vector<16x128xf32>,
    return
  }
  func.func @transform_0(%arg0: i32) -> (i32, i32) {
    %c0_i32 = arith.constant 0 : i32
    %c0_i32_0 = arith.constant 0 : i32
    return %arg0, %c0_i32 : i32, i32
  }
  func.func @transform_1(%arg0: i32) -> (i32, i32) {
    %c0_i32 = arith.constant 0 : i32
    %c0_i32_0 = arith.constant 0 : i32
    %c0_i32_1 = arith.constant 0 : i32
    return %c0_i32, %c0_i32_0 : i32, i32
  }
  func.func @transform_2(%arg0: i32) -> (i32, i32) {
    %c0_i32 = arith.constant 0 : i32
    %c0_i32_0 = arith.constant 0 : i32
    %c0_i32_1 = arith.constant 0 : i32
    return %c0_i32, %c0_i32_0 : i32, i32
  }
  func.func @transform_3(%arg0: i32) -> (i32, i32, i32) {
    %c0_i32 = arith.constant 0 : i32
    %c0_i32_0 = arith.constant 0 : i32
    %c0_i32_1 = arith.constant 0 : i32
    %c0_i32_2 = arith.constant 0 : i32
    return %c0_i32, %c0_i32_0, %c0_i32_1 : i32, i32, i32
  }
  func.func @transform_4(%arg0: i32) -> (i32, i32) {
    %c0_i32 = arith.constant 0 : i32
    %c0_i32_0 = arith.constant 0 : i32
    %c0_i32_1 = arith.constant 0 : i32
    return %c0_i32, %c0_i32_0 : i32, i32
  }
  func.func @transform_5(%arg0: i32) -> (i32, i32) {
    %c0_i32 = arith.constant 0 : i32
    %c0_i32_0 = arith.constant 0 : i32
    %c0_i32_1 = arith.constant 0 : i32
    return %c0_i32, %c0_i32_0 : i32, i32
  }
  func.func @transform_6(%arg0: i32) -> (i32, i32) {
    %c0_i32 = arith.constant 0 : i32
    %c0_i32_0 = arith.constant 0 : i32
    return %arg0, %c0_i32 : i32, i32
  }
}

</mosaic_0001>

<llo_original>
// kernel: tpu_custom_call.1
$region0: #{tpu_custom_call.1}
  #allocation0 [shape = 'u32[]', space=smem, size = 0x4, offset = 0x4, fixed_abs, tag = 'smem constant byte address 0x4 - core index']
  #allocation1 [shape = 'u32[144,128]{1,0:T(1,128)}', space=vmem, size = 0x12000, scoped, tag = 'internal scratch']
  #allocation2 [shape = 'bf16[16,512]{1,0:T(8,128)(2,1)}', space=vmem, size = 0x4000, scoped, tag = 'scratch operand']
  %s0 = inlined_call_operand.vmem [shape: f32[16,128], index: 0, kind: input, shape index: {}]
  %s1 = inlined_call_operand.vmem [shape: f32[1,128], index: 1, kind: input, shape index: {}]
  %s2 = inlined_call_operand.vmem [shape: f32[1,128], index: 2, kind: input, shape index: {}]
  %s3 = inlined_call_operand.vmem [shape: bf16[8,128,192], index: 3, kind: input, shape index: {}]
  %s4 = inlined_call_operand.vmem [shape: bf16[512,128], index: 4, kind: input, shape index: {}]
  %s5 = inlined_call_operand.vmem [shape: f32[1,128], index: 5, kind: input, shape index: {}]
  %s6 = inlined_call_operand.hbm [shape: f32[16,128], index: 6, kind: output, shape index: {}]
  %s7 = sld [smem:[#allocation0]]
  $region34: #{tpu_custom_call.1} parent=0
    _
  %s9 = ssub.s32 1, %s7
  %s10 = scalar_select 0, %s9, %s7
  $region1: #{tpu_custom_call.1} parent=0
    #allocation3 [shape = 'u8[8192]{0}', space=vmem, size = 0x2000, scoped, tag = 'output window, operand 0, single buffered']
    #allocation4 [shape = 's32[1]{0}', space=sflag, size = 0x4, scoped, tag = 'scoped memory for tpu_custom_call.1']
    %11 = vsyncpa [#allocation4], 0
    // Predicated region
    $region2: #{tpu_custom_call.1} parent=1 // pred_check
      _
    $region3: #{tpu_custom_call.1} parent=1 // pred_check_branch
      %13 = sbr.rel (0) target = $region5
    $region4: #{tpu_custom_call.1} parent=1 // pred_region
      _
    $region5: #{tpu_custom_call.1} parent=1 // pred_fallthru
      _
    // Predicated region
    $region6: #{tpu_custom_call.1} parent=1 // pred_check
      _
    $region7: #{tpu_custom_call.1} parent=1 // pred_check_branch
      %15 = sbr.rel (0) target = $region9
    $region8: #{tpu_custom_call.1} parent=1 // pred_region
      _
    $region9: #{tpu_custom_call.1} parent=1 // pred_fallthru
      _
    // Predicated region
    $region10: #{tpu_custom_call.1} parent=1 // pred_check
      _
    $region11: #{tpu_custom_call.1} parent=1 // pred_check_branch
      %17 = sbr.rel (0) target = $region13
    $region12: #{tpu_custom_call.1} parent=1 // pred_region
      _
    $region13: #{tpu_custom_call.1} parent=1 // pred_fallthru
      _
    // Predicated region
    $region14: #{tpu_custom_call.1} parent=1 // pred_check
      _
    $region15: #{tpu_custom_call.1} parent=1 // pred_check_branch
      %19 = sbr.rel (0) target = $region17
    $region16: #{tpu_custom_call.1} parent=1 // pred_region
      _
    $region17: #{tpu_custom_call.1} parent=1 // pred_fallthru
      _
    // Predicated region
    $region18: #{tpu_custom_call.1} parent=1 // pred_check
      _
    $region19: #{tpu_custom_call.1} parent=1 // pred_check_branch
      %21 = sbr.rel (0) target = $region21
    $region20: #{tpu_custom_call.1} parent=1 // pred_region
      _
    $region21: #{tpu_custom_call.1} parent=1 // pred_fallthru
      _
    // Predicated region
    $region22: #{tpu_custom_call.1} parent=1 // pred_check
      _
    $region23: #{tpu_custom_call.1} parent=1 // pred_check_branch
      %23 = sbr.rel (0) target = $region25
    $region24: #{tpu_custom_call.1} parent=1 // pred_region
      _
    $region25: #{tpu_custom_call.1} parent=1 // pred_fallthru
      _
    %v25 = vld [vmem:[%s0] sm:$0xff]
    %v26 = vld [vmem:[%s0 + $0x8] sm:$0xff]
    %27 = vadd.xlane.f32.xlu0 %v25
    %v28 = vpop.xlane.xlu0 %27
    %29 = vadd.xlane.f32.xlu0 %v26
    %v30 = vpop.xlane.xlu0 %29
    %v31 = vrcp.pop 128.0
    %v32 = vmul.f32 %v28, %v31
    %v33 = vmul.f32 %v30, %v31
    %v34 = vsub.f32 %v25, %v32
    %v35 = vsub.f32 %v26, %v33
    %v36 = vmul.f32 %v34, %v34
    %v37 = vmul.f32 %v35, %v35
    %38 = vadd.xlane.f32.xlu0 %v36
    %v39 = vpop.xlane.xlu0 %38
    %40 = vadd.xlane.f32.xlu0 %v37
    %v41 = vpop.xlane.xlu0 %40
    %v42 = vmul.f32 %v39, %v31
    %v43 = vmul.f32 %v41, %v31
    %v44 = vadd.f32 %v42, 1e-05
    %v45 = vadd.f32 %v43, 1e-05
    %v46 = vrsqrt.pop %v44
    %v47 = vrsqrt.pop %v45
    %v48 = vmul.f32 %v34, %v46
    %v49 = vmul.f32 %v35, %v47
    %v50 = vld [vmem:[%s1] sm:$0x1]
    %v52 = vlaneseq
    %v53 = vshrl.u32 %v52, 7
    %v54 = vsub.s32 0, %v53
    %v55 = vrot.slane %v50, %v54
    %v57 = vmul.f32 %v48, %v55
    %v58 = vmul.f32 %v49, %v55
    %v59 = vld [vmem:[%s2] sm:$0x1]
    %v61 = vlaneseq
    %v62 = vshrl.u32 %v61, 7
    %v63 = vsub.s32 0, %v62
    %v64 = vrot.slane %v59, %v63
    %v66 = vadd.f32 %v57, %v64
    %v67 = vadd.f32 %v58, %v64
    %v68 = vpack.c.bf16 %v67, %v66
    %v69 = vld [vmem:[%s3] sm:$0xff]
    %v70 = vld [vmem:[%s3 + $0x8] sm:$0xff]
    %v71 = vld [vmem:[%s3 + $0x10] sm:$0xff]
    %v72 = vld [vmem:[%s3 + $0x18] sm:$0xff]
    %v73 = vld [vmem:[%s3 + $0x20] sm:$0xff]
    %v74 = vld [vmem:[%s3 + $0x28] sm:$0xff]
    %v75 = vld [vmem:[%s3 + $0x30] sm:$0xff]
    %v76 = vld [vmem:[%s3 + $0x38] sm:$0xff]
    %v77 = vld [vmem:[%s3 + $0x40] sm:$0xff]
    %v78 = vld [vmem:[%s3 + $0x48] sm:$0xff]
    %v79 = vld [vmem:[%s3 + $0x50] sm:$0xff]
    %v80 = vld [vmem:[%s3 + $0x58] sm:$0xff]
    %v81 = vld [vmem:[%s3 + $0x60] sm:$0xff]
    %v82 = vld [vmem:[%s3 + $0x68] sm:$0xff]
    %v83 = vld [vmem:[%s3 + $0x70] sm:$0xff]
    %v84 = vld [vmem:[%s3 + $0x78] sm:$0xff]
    %v101 = vunpack.c.l.b16 %v69
    %v102 = vunpack.c.h.b16 %v69
    %v103 = vunpack.c.l.b16 %v70
    %v104 = vunpack.c.h.b16 %v70
    %v105 = vunpack.c.l.b16 %v71
    %v106 = vunpack.c.h.b16 %v71
    %v107 = vunpack.c.l.b16 %v72
    %v108 = vunpack.c.h.b16 %v72
    %v109 = vunpack.c.l.b16 %v73
    %v110 = vunpack.c.h.b16 %v73
    %v111 = vunpack.c.l.b16 %v74
    %v112 = vunpack.c.h.b16 %v74
    %v113 = vunpack.c.l.b16 %v75
    %v114 = vunpack.c.h.b16 %v75
    %v115 = vunpack.c.l.b16 %v76
    %v116 = vunpack.c.h.b16 %v76
    %v117 = vunpack.c.l.b16 %v77
    %v118 = vunpack.c.h.b16 %v77
    %v119 = vunpack.c.l.b16 %v78
    %v120 = vunpack.c.h.b16 %v78
    %v121 = vunpack.c.l.b16 %v79
    %v122 = vunpack.c.h.b16 %v79
    %v123 = vunpack.c.l.b16 %v80
    %v124 = vunpack.c.h.b16 %v80
    %v125 = vunpack.c.l.b16 %v81
    %v126 = vunpack.c.h.b16 %v81
    %v127 = vunpack.c.l.b16 %v82
    %v128 = vunpack.c.h.b16 %v82
    %v129 = vunpack.c.l.b16 %v83
    %v130 = vunpack.c.h.b16 %v83
    %v131 = vunpack.c.l.b16 %v84
    %v132 = vunpack.c.h.b16 %v84
    %v133 = vpack.c.b16 %v103, %v101
    %v134 = vpack.c.b16 %v104, %v102
    %v135 = vpack.c.b16 %v107, %v105
    %v136 = vpack.c.b16 %v108, %v106
    %v137 = vpack.c.b16 %v111, %v109
    %v138 = vpack.c.b16 %v112, %v110
    %v139 = vpack.c.b16 %v115, %v113
    %v140 = vpack.c.b16 %v116, %v114
    %v141 = vpack.c.b16 %v119, %v117
    %v142 = vpack.c.b16 %v120, %v118
    %v143 = vpack.c.b16 %v123, %v121
    %v144 = vpack.c.b16 %v124, %v122
    %v145 = vpack.c.b16 %v127, %v125
    %v146 = vpack.c.b16 %v128, %v126
    %v147 = vpack.c.b16 %v131, %v129
    %v148 = vpack.c.b16 %v132, %v130
    %165 = vmatprep.subr.bf16.mxu0 %v148
    %166 = vmatpush1.bf16.msra.mxu0 %v147
    %167 = vmatprep.subr.bf16.mxu0 %v146
    %168 = vmatpush1.bf16.msra.mxu0 %v145
    %169 = vmatprep.subr.bf16.mxu0 %v144
    %170 = vmatpush1.bf16.msra.mxu0 %v143
    %171 = vmatprep.subr.bf16.mxu0 %v142
    %172 = vmatpush1.bf16.msra.mxu0 %v141
    %173 = vmatprep.subr.bf16.mxu0 %v140
    %174 = vmatpush1.bf16.msra.mxu0 %v139
    %175 = vmatprep.subr.bf16.mxu0 %v138
    %176 = vmatpush1.bf16.msra.mxu0 %v137
    %177 = vmatprep.subr.bf16.mxu0 %v136
    %178 = vmatpush1.bf16.msra.mxu0 %v135
    %179 = vmatprep.subr.bf16.mxu0 %v134
    %180 = vmatpush1.bf16.msra.mxu0 %v133
    %181 = vmatprep.subr.bf16.mxu0 0
    %182 = vmatpush2.bf16.msra.mxu0 0
    %183 = vmatprep.subr.bf16.mxu0 0
    %184 = vmatpush2.bf16.msra.mxu0 0
    %185 = vmatprep.subr.bf16.mxu0 0
    %186 = vmatpush2.bf16.msra.mxu0 0
    %187 = vmatprep.subr.bf16.mxu0 0
    %188 = vmatpush2.bf16.msra.mxu0 0
    %189 = vmatprep.subr.bf16.mxu0 0
    %190 = vmatpush2.bf16.msra.mxu0 0
    %191 = vmatprep.subr.bf16.mxu0 0
    %192 = vmatpush2.bf16.msra.mxu0 0
    %193 = vmatprep.subr.bf16.mxu0 0
    %194 = vmatpush2.bf16.msra.mxu0 0
    %195 = vmatprep.subr.bf16.mxu0 0
    %196 = vmatpush2.bf16.msra.mxu0 0
    %197 = vmatprep.mubr.bf16.mxu0 0
    %198 = vmatmul.mubr.bf16.gmra.mxu0 %v68
    %v199 = vpop.f32.mrf.mxu0
    %v200 = vadd.f32 0.0, %v199
    %v201 = vpop.f32.mrf.mxu0
    %v202 = vadd.f32 0.0, %v201
    %v203 = vpop.f32.mrf.mxu0
    %v204 = vadd.f32 0.0, %v203
    %v205 = vpop.f32.mrf.mxu0
    %v206 = vadd.f32 0.0, %v205
    %207 = vdwg.mxu0
    %v208 = vpack.c.bf16 %v204, %v200
    %v209 = vpack.c.bf16 %v206, %v202
    %v211 = vunpack.c.l.b16 %v208
    %v212 = vunpack.c.h.b16 %v208
    %v213 = vpack.c.b16 %v211, %v211
    %v214 = vpack.c.b16 %v212, %v212
    %v216 = vunpack.c.l.b16 %v209
    %v217 = vunpack.c.h.b16 %v209
    %v218 = vpack.c.b16 %v216, %v216
    %v219 = vpack.c.b16 %v217, %v217
    %220 = vrot.lane.b32.xlu0 %v213, 64
    %v221 = vpop.permute.xlu0 %220
    %vm222 = vcmask 523264
    %v224 = vsel %vm222, %v213, 0
    %v227 = vsel %vm222, %v221, 0
    %229 = vmatprep.subr.bf16.mxu0 0
    %230 = vmatpush1.bf16.xpose.msra.mxu0 0
    %231 = vmatprep.subr.bf16.mxu0 0
    %232 = vmatpush1.bf16.xpose.msra.mxu0 0
    %233 = vmatprep.subr.bf16.mxu0 0
    %234 = vmatpush1.bf16.xpose.msra.mxu0 0
    %235 = vmatprep.subr.bf16.mxu0 0
    %236 = vmatpush1.bf16.xpose.msra.mxu0 0
    %237 = vmatprep.subr.bf16.mxu0 0
    %238 = vmatpush1.bf16.xpose.msra.mxu0 0
    %239 = vmatprep.subr.bf16.mxu0 0
    %240 = vmatpush1.bf16.xpose.msra.mxu0 0
    %241 = vmatprep.subr.bf16.mxu0 0
    %242 = vmatpush1.bf16.xpose.msra.mxu0 0
    %243 = vmatprep.subr.bf16.mxu0 0
    %244 = vmatpush1.bf16.xpose.msra.mxu0 %v227
    %245 = vmatprep.subr.bf16.mxu0 0
    %246 = vmatpush2.bf16.xpose.msra.mxu0 0
    %247 = vmatprep.subr.bf16.mxu0 0
    %248 = vmatpush2.bf16.xpose.msra.mxu0 0
    %249 = vmatprep.subr.bf16.mxu0 0
    %250 = vmatpush2.bf16.xpose.msra.mxu0 0
    %251 = vmatprep.subr.bf16.mxu0 0
    %252 = vmatpush2.bf16.xpose.msra.mxu0 0
    %253 = vmatprep.subr.bf16.mxu0 0
    %254 = vmatpush2.bf16.xpose.msra.mxu0 0
    %255 = vmatprep.subr.bf16.mxu0 0
    %256 = vmatpush2.bf16.xpose.msra.mxu0 0
    %257 = vmatprep.subr.bf16.mxu0 0
    %258 = vmatpush2.bf16.xpose.msra.mxu0 0
    %259 = vmatprep.subr.bf16.mxu0 0
    %260 = vmatpush2.bf16.xpose.msra.mxu0 0
    %261 = vmatprep.mubr.bf16.mxu0 0
    %262 = vmatmul.mubr.bf16.gmra.mxu0 %v224
    %v263 = vpop.f32.mrf.mxu0
    %v264 = vadd.f32 0.0, %v263
    %v265 = vpop.f32.mrf.mxu0
    %v266 = vpop.f32.mrf.mxu0
    %v267 = vpop.f32.mrf.mxu0
    %268 = vdwg.mxu0
    %269 = vrot.lane.b32.xlu0 %v214, 64
    %v270 = vpop.permute.xlu0 %269
    %v272 = vsel %vm222, %v214, 0
    %v275 = vsel %vm222, %v270, 0
    %277 = vmatprep.subr.bf16.mxu0 0
    %278 = vmatpush1.bf16.xpose.msra.mxu0 0
    %279 = vmatprep.subr.bf16.mxu0 0
    %280 = vmatpush1.bf16.xpose.msra.mxu0 0
    %281 = vmatprep.subr.bf16.mxu0 0
    %282 = vmatpush1.bf16.xpose.msra.mxu0 0
    %283 = vmatprep.subr.bf16.mxu0 0
    %284 = vmatpush1.bf16.xpose.msra.mxu0 0
    %285 = vmatprep.subr.bf16.mxu0 0
    %286 = vmatpush1.bf16.xpose.msra.mxu0 0
    %287 = vmatprep.subr.bf16.mxu0 0
    %288 = vmatpush1.bf16.xpose.msra.mxu0 0
    %289 = vmatprep.subr.bf16.mxu0 0
    %290 = vmatpush1.bf16.xpose.msra.mxu0 0
    %291 = vmatprep.subr.bf16.mxu0 0
    %292 = vmatpush1.bf16.xpose.msra.mxu0 %v275
    %293 = vmatprep.subr.bf16.mxu0 0
    %294 = vmatpush2.bf16.xpose.msra.mxu0 0
    %295 = vmatprep.subr.bf16.mxu0 0
    %296 = vmatpush2.bf16.xpose.msra.mxu0 0
    %297 = vmatprep.subr.bf16.mxu0 0
    %298 = vmatpush2.bf16.xpose.msra.mxu0 0
    %299 = vmatprep.subr.bf16.mxu0 0
    %300 = vmatpush2.bf16.xpose.msra.mxu0 0
    %301 = vmatprep.subr.bf16.mxu0 0
    %302 = vmatpush2.bf16.xpose.msra.mxu0 0
    %303 = vmatprep.subr.bf16.mxu0 0
    %304 = vmatpush2.bf16.xpose.msra.mxu0 0
    %305 = vmatprep.subr.bf16.mxu0 0
    %306 = vmatpush2.bf16.xpose.msra.mxu0 0
    %307 = vmatprep.subr.bf16.mxu0 0
    %308 = vmatpush2.bf16.xpose.msra.mxu0 0
    %309 = vmatprep.mubr.bf16.mxu0 0
    %310 = vmatmul.mubr.bf16.gmra.mxu0 %v272
    %v311 = vpop.f32.mrf.mxu0
    %v312 = vadd.f32 0.0, %v311
    %v313 = vpop.f32.mrf.mxu0
    %v314 = vpop.f32.mrf.mxu0
    %v315 = vpop.f32.mrf.mxu0
    %316 = vdwg.mxu0
    %vm317 = vcmask 64512
    %v318 = vsel %vm317, %v264, -inf
    %319 = vmax.xlane.f32.xlu0 %v318
    %v320 = vpop.xlane.xlu0 %319
    %v321 = vsel %vm317, %v312, -inf
    %322 = vmax.xlane.f32.xlu0 %v321
    %v323 = vpop.xlane.xlu0 %322
    %v324 = vsub.f32 %v264, %v320
    %v325 = vsub.f32 %v312, %v323
    %v326 = vmul.f32 %v324, 1.442695
    %v327 = vpow.pop %v326
    %v328 = vmul.f32 %v325, 1.442695
    %v329 = vpow.pop %v328
    %v330 = vsel %vm317, %v327, 0.0
    %331 = vadd.xlane.f32.xlu0 %v330
    %v332 = vpop.xlane.xlu0 %331
    %v333 = vsel %vm317, %v329, 0.0
    %334 = vadd.xlane.f32.xlu0 %v333
    %v335 = vpop.xlane.xlu0 %334
    %v336 = vrcp.pop %v332
    %v337 = vrcp.pop %v335
    %v338 = vmul.f32 %v327, %v336
    %v339 = vmul.f32 %v329, %v337
    %v340 = vpack.c.bf16 %v338, %v338
    %v341 = vpack.c.bf16 %v339, %v339
    %v343 = vsel %vm317, %v340, 0
    %vm345 = vcmask 1043456
    %v347 = vsel %vm345, %v218, 0
    %349 = vmatprep.subr.bf16.mxu0 0
    %350 = vmatpush1.bf16.msra.mxu0 0
    %351 = vmatprep.subr.bf16.mxu0 0
    %352 = vmatpush1.bf16.msra.mxu0 0
    %353 = vmatprep.subr.bf16.mxu0 0
    %354 = vmatpush1.bf16.msra.mxu0 0
    %355 = vmatprep.subr.bf16.mxu0 0
    %356 = vmatpush1.bf16.msra.mxu0 0
    %357 = vmatprep.subr.bf16.mxu0 0
    %358 = vmatpush1.bf16.msra.mxu0 0
    %359 = vmatprep.subr.bf16.mxu0 0
    %360 = vmatpush1.bf16.msra.mxu0 0
    %361 = vmatprep.subr.bf16.mxu0 0
    %362 = vmatpush1.bf16.msra.mxu0 0
    %363 = vmatprep.subr.bf16.mxu0 0
    %364 = vmatpush1.bf16.msra.mxu0 %v347
    %365 = vmatprep.subr.bf16.mxu0 0
    %366 = vmatpush2.bf16.msra.mxu0 0
    %367 = vmatprep.subr.bf16.mxu0 0
    %368 = vmatpush2.bf16.msra.mxu0 0
    %369 = vmatprep.subr.bf16.mxu0 0
    %370 = vmatpush2.bf16.msra.mxu0 0
    %371 = vmatprep.subr.bf16.mxu0 0
    %372 = vmatpush2.bf16.msra.mxu0 0
    %373 = vmatprep.subr.bf16.mxu0 0
    %374 = vmatpush2.bf16.msra.mxu0 0
    %375 = vmatprep.subr.bf16.mxu0 0
    %376 = vmatpush2.bf16.msra.mxu0 0
    %377 = vmatprep.subr.bf16.mxu0 0
    %378 = vmatpush2.bf16.msra.mxu0 0
    %379 = vmatprep.subr.bf16.mxu0 0
    %380 = vmatpush2.bf16.msra.mxu0 0
    %381 = vmatprep.mubr.bf16.mxu0 0
    %382 = vmatmul.mubr.bf16.gmra.mxu0 %v343
    %v383 = vpop.f32.mrf.mxu0
    %v384 = vadd.f32 0.0, %v383
    %v385 = vpop.f32.mrf.mxu0
    %v386 = vpop.f32.mrf.mxu0
    %v387 = vpop.f32.mrf.mxu0
    %388 = vdwg.mxu0
    %v390 = vsel %vm317, %v341, 0
    %v393 = vsel %vm345, %v219, 0
    %395 = vmatprep.subr.bf16.mxu0 0
    %396 = vmatpush1.bf16.msra.mxu0 0
    %397 = vmatprep.subr.bf16.mxu0 0
    %398 = vmatpush1.bf16.msra.mxu0 0
    %399 = vmatprep.subr.bf16.mxu0 0
    %400 = vmatpush1.bf16.msra.mxu0 0
    %401 = vmatprep.subr.bf16.mxu0 0
    %402 = vmatpush1.bf16.msra.mxu0 0
    %403 = vmatprep.subr.bf16.mxu0 0
    %404 = vmatpush1.bf16.msra.mxu0 0
    %405 = vmatprep.subr.bf16.mxu0 0
    %406 = vmatpush1.bf16.msra.mxu0 0
    %407 = vmatprep.subr.bf16.mxu0 0
    %408 = vmatpush1.bf16.msra.mxu0 0
    %409 = vmatprep.subr.bf16.mxu0 0
    %410 = vmatpush1.bf16.msra.mxu0 %v393
    %411 = vmatprep.subr.bf16.mxu0 0
    %412 = vmatpush2.bf16.msra.mxu0 0
    %413 = vmatprep.subr.bf16.mxu0 0
    %414 = vmatpush2.bf16.msra.mxu0 0
    %415 = vmatprep.subr.bf16.mxu0 0
    %416 = vmatpush2.bf16.msra.mxu0 0
    %417 = vmatprep.subr.bf16.mxu0 0
    %418 = vmatpush2.bf16.msra.mxu0 0
    %419 = vmatprep.subr.bf16.mxu0 0
    %420 = vmatpush2.bf16.msra.mxu0 0
    %421 = vmatprep.subr.bf16.mxu0 0
    %422 = vmatpush2.bf16.msra.mxu0 0
    %423 = vmatprep.subr.bf16.mxu0 0
    %424 = vmatpush2.bf16.msra.mxu0 0
    %425 = vmatprep.subr.bf16.mxu0 0
    %426 = vmatpush2.bf16.msra.mxu0 0
    %427 = vmatprep.mubr.bf16.mxu0 0
    %428 = vmatmul.mubr.bf16.gmra.mxu0 %v390
    %v429 = vpop.f32.mrf.mxu0
    %v430 = vadd.f32 0.0, %v429
    %v431 = vpop.f32.mrf.mxu0
    %v432 = vpop.f32.mrf.mxu0
    %v433 = vpop.f32.mrf.mxu0
    %434 = vdwg.mxu0
    %v435 = vpack.c.bf16 %v430, %v384
    %v437 = vunpack.c.l.b16 %v435
    %v438 = vunpack.c.h.b16 %v435
    %v439 = vpack.c.b16 %v437, %v437
    %v440 = vpack.c.b16 %v438, %v438
    %vm443 = vcmask 519168
    %444 = vst.msk [vmem:[#allocation2] sm:$0xf] %vm443, %v439
    %445 = vst.msk [vmem:[#allocation2 + $0x10] sm:$0xf] %vm443, %v440
    %s446 = scalar_lea.vmem %s3, 128
    %v447 = vld [vmem:[%s446] sm:$0xff]
    %v448 = vld [vmem:[%s446 + $0x8] sm:$0xff]
    %v449 = vld [vmem:[%s446 + $0x10] sm:$0xff]
    %v450 = vld [vmem:[%s446 + $0x18] sm:$0xff]
    %v451 = vld [vmem:[%s446 + $0x20] sm:$0xff]
    %v452 = vld [vmem:[%s446 + $0x28] sm:$0xff]
    %v453 = vld [vmem:[%s446 + $0x30] sm:$0xff]
    %v454 = vld [vmem:[%s446 + $0x38] sm:$0xff]
    %v455 = vld [vmem:[%s446 + $0x40] sm:$0xff]
    %v456 = vld [vmem:[%s446 + $0x48] sm:$0xff]
    %v457 = vld [vmem:[%s446 + $0x50] sm:$0xff]
    %v458 = vld [vmem:[%s446 + $0x58] sm:$0xff]
    %v459 = vld [vmem:[%s446 + $0x60] sm:$0xff]
    %v460 = vld [vmem:[%s446 + $0x68] sm:$0xff]
    %v461 = vld [vmem:[%s446 + $0x70] sm:$0xff]
    %v462 = vld [vmem:[%s446 + $0x78] sm:$0xff]
    %v479 = vunpack.c.l.b16 %v447
    %v480 = vunpack.c.h.b16 %v447
    %v481 = vunpack.c.l.b16 %v448
    %v482 = vunpack.c.h.b16 %v448
    %v483 = vunpack.c.l.b16 %v449
    %v484 = vunpack.c.h.b16 %v449
    %v485 = vunpack.c.l.b16 %v450
    %v486 = vunpack.c.h.b16 %v450
    %v487 = vunpack.c.l.b16 %v451
    %v488 = vunpack.c.h.b16 %v451
    %v489 = vunpack.c.l.b16 %v452
    %v490 = vunpack.c.h.b16 %v452
    %v491 = vunpack.c.l.b16 %v453
    %v492 = vunpack.c.h.b16 %v453
    %v493 = vunpack.c.l.b16 %v454
    %v494 = vunpack.c.h.b16 %v454
    %v495 = vunpack.c.l.b16 %v455
    %v496 = vunpack.c.h.b16 %v455
    %v497 = vunpack.c.l.b16 %v456
    %v498 = vunpack.c.h.b16 %v456
    %v499 = vunpack.c.l.b16 %v457
    %v500 = vunpack.c.h.b16 %v457
    %v501 = vunpack.c.l.b16 %v458
    %v502 = vunpack.c.h.b16 %v458
    %v503 = vunpack.c.l.b16 %v459
    %v504 = vunpack.c.h.b16 %v459
    %v505 = vunpack.c.l.b16 %v460
    %v506 = vunpack.c.h.b16 %v460
    %v507 = vunpack.c.l.b16 %v461
    %v508 = vunpack.c.h.b16 %v461
    %v509 = vunpack.c.l.b16 %v462
    %v510 = vunpack.c.h.b16 %v462
    %v511 = vpack.c.b16 %v481, %v479
    %v512 = vpack.c.b16 %v482, %v480
    %v513 = vpack.c.b16 %v485, %v483
    %v514 = vpack.c.b16 %v486, %v484
    %v515 = vpack.c.b16 %v489, %v487
    %v516 = vpack.c.b16 %v490, %v488
    %v517 = vpack.c.b16 %v493, %v491
    %v518 = vpack.c.b16 %v494, %v492
    %v519 = vpack.c.b16 %v497, %v495
    %v520 = vpack.c.b16 %v498, %v496
    %v521 = vpack.c.b16 %v501, %v499
    %v522 = vpack.c.b16 %v502, %v500
    %v523 = vpack.c.b16 %v505, %v503
    %v524 = vpack.c.b16 %v506, %v504
    %v525 = vpack.c.b16 %v509, %v507
    %v526 = vpack.c.b16 %v510, %v508
    %543 = vmatprep.subr.bf16.mxu0 %v526
    %544 = vmatpush1.bf16.msra.mxu0 %v525
    %545 = vmatprep.subr.bf16.mxu0 %v524
    %546 = vmatpush1.bf16.msra.mxu0 %v523
    %547 = vmatprep.subr.bf16.mxu0 %v522
    %548 = vmatpush1.bf16.msra.mxu0 %v521
    %549 = vmatprep.subr.bf16.mxu0 %v520
    %550 = vmatpush1.bf16.msra.mxu0 %v519
    %551 = vmatprep.subr.bf16.mxu0 %v518
    %552 = vmatpush1.bf16.msra.mxu0 %v517
    %553 = vmatprep.subr.bf16.mxu0 %v516
    %554 = vmatpush1.bf16.msra.mxu0 %v515
    %555 = vmatprep.subr.bf16.mxu0 %v514
    %556 = vmatpush1.bf16.msra.mxu0 %v513
    %557 = vmatprep.subr.bf16.mxu0 %v512
    %558 = vmatpush1.bf16.msra.mxu0 %v511
    %559 = vmatprep.subr.bf16.mxu0 0
    %560 = vmatpush2.bf16.msra.mxu0 0
    %561 = vmatprep.subr.bf16.mxu0 0
    %562 = vmatpush2.bf16.msra.mxu0 0
    %563 = vmatprep.subr.bf16.mxu0 0
    %564 = vmatpush2.bf16.msra.mxu0 0
    %565 = vmatprep.subr.bf16.mxu0 0
    %566 = vmatpush2.bf16.msra.mxu0 0
    %567 = vmatprep.subr.bf16.mxu0 0
    %568 = vmatpush2.bf16.msra.mxu0 0
    %569 = vmatprep.subr.bf16.mxu0 0
    %570 = vmatpush2.bf16.msra.mxu0 0
    %571 = vmatprep.subr.bf16.mxu0 0
    %572 = vmatpush2.bf16.msra.mxu0 0
    %573 = vmatprep.subr.bf16.mxu0 0
    %574 = vmatpush2.bf16.msra.mxu0 0
    %575 = vmatprep.mubr.bf16.mxu0 0
    %576 = vmatmul.mubr.bf16.gmra.mxu0 %v68
    %v577 = vpop.f32.mrf.mxu0
    %v578 = vadd.f32 0.0, %v577
    %v579 = vpop.f32.mrf.mxu0
    %v580 = vadd.f32 0.0, %v579
    %v581 = vpop.f32.mrf.mxu0
    %v582 = vadd.f32 0.0, %v581
    %v583 = vpop.f32.mrf.mxu0
    %v584 = vadd.f32 0.0, %v583
    %585 = vdwg.mxu0
    %v586 = vpack.c.bf16 %v582, %v578
    %v587 = vpack.c.bf16 %v584, %v580
    %v589 = vunpack.c.l.b16 %v586
    %v590 = vunpack.c.h.b16 %v586
    %v591 = vpack.c.b16 %v589, %v589
    %v592 = vpack.c.b16 %v590, %v590
    %v594 = vunpack.c.l.b16 %v587
    %v595 = vunpack.c.h.b16 %v587
    %v596 = vpack.c.b16 %v594, %v594
    %v597 = vpack.c.b16 %v595, %v595
    %598 = vrot.lane.b32.xlu0 %v591, 64
    %v599 = vpop.permute.xlu0 %598
    %v601 = vsel %vm222, %v591, 0
    %v604 = vsel %vm222, %v599, 0
    %606 = vmatprep.subr.bf16.mxu0 0
    %607 = vmatpush1.bf16.xpose.msra.mxu0 0
    %608 = vmatprep.subr.bf16.mxu0 0
    %609 = vmatpush1.bf16.xpose.msra.mxu0 0
    %610 = vmatprep.subr.bf16.mxu0 0
    %611 = vmatpush1.bf16.xpose.msra.mxu0 0
    %612 = vmatprep.subr.bf16.mxu0 0
    %613 = vmatpush1.bf16.xpose.msra.mxu0 0
    %614 = vmatprep.subr.bf16.mxu0 0
    %615 = vmatpush1.bf16.xpose.msra.mxu0 0
    %616 = vmatprep.subr.bf16.mxu0 0
    %617 = vmatpush1.bf16.xpose.msra.mxu0 0
    %618 = vmatprep.subr.bf16.mxu0 0
    %619 = vmatpush1.bf16.xpose.msra.mxu0 0
    %620 = vmatprep.subr.bf16.mxu0 0
    %621 = vmatpush1.bf16.xpose.msra.mxu0 %v604
    %622 = vmatprep.subr.bf16.mxu0 0
    %623 = vmatpush2.bf16.xpose.msra.mxu0 0
    %624 = vmatprep.subr.bf16.mxu0 0
    %625 = vmatpush2.bf16.xpose.msra.mxu0 0
    %626 = vmatprep.subr.bf16.mxu0 0
    %627 = vmatpush2.bf16.xpose.msra.mxu0 0
    %628 = vmatprep.subr.bf16.mxu0 0
    %629 = vmatpush2.bf16.xpose.msra.mxu0 0
    %630 = vmatprep.subr.bf16.mxu0 0
    %631 = vmatpush2.bf16.xpose.msra.mxu0 0
    %632 = vmatprep.subr.bf16.mxu0 0
    %633 = vmatpush2.bf16.xpose.msra.mxu0 0
    %634 = vmatprep.subr.bf16.mxu0 0
    %635 = vmatpush2.bf16.xpose.msra.mxu0 0
    %636 = vmatprep.subr.bf16.mxu0 0
    %637 = vmatpush2.bf16.xpose.msra.mxu0 0
    %638 = vmatprep.mubr.bf16.mxu0 0
    %639 = vmatmul.mubr.bf16.gmra.mxu0 %v601
    %v640 = vpop.f32.mrf.mxu0
    %v641 = vadd.f32 0.0, %v640
    %v642 = vpop.f32.mrf.mxu0
    %v643 = vpop.f32.mrf.mxu0
    %v644 = vpop.f32.mrf.mxu0
    %645 = vdwg.mxu0
    %646 = vrot.lane.b32.xlu0 %v592, 64
    %v647 = vpop.permute.xlu0 %646
    %v649 = vsel %vm222, %v592, 0
    %v652 = vsel %vm222, %v647, 0
    %654 = vmatprep.subr.bf16.mxu0 0
    %655 = vmatpush1.bf16.xpose.msra.mxu0 0
    %656 = vmatprep.subr.bf16.mxu0 0
    %657 = vmatpush1.bf16.xpose.msra.mxu0 0
    %658 = vmatprep.subr.bf16.mxu0 0
    %659 = vmatpush1.bf16.xpose.msra.mxu0 0
    %660 = vmatprep.subr.bf16.mxu0 0
    %661 = vmatpush1.bf16.xpose.msra.mxu0 0
    %662 = vmatprep.subr.bf16.mxu0 0
    %663 = vmatpush1.bf16.xpose.msra.mxu0 0
    %664 = vmatprep.subr.bf16.mxu0 0
    %665 = vmatpush1.bf16.xpose.msra.mxu0 0
    %666 = vmatprep.subr.bf16.mxu0 0
    %667 = vmatpush1.bf16.xpose.msra.mxu0 0
    %668 = vmatprep.subr.bf16.mxu0 0
    %669 = vmatpush1.bf16.xpose.msra.mxu0 %v652
    %670 = vmatprep.subr.bf16.mxu0 0
    %671 = vmatpush2.bf16.xpose.msra.mxu0 0
    %672 = vmatprep.subr.bf16.mxu0 0
    %673 = vmatpush2.bf16.xpose.msra.mxu0 0
    %674 = vmatprep.subr.bf16.mxu0 0
    %675 = vmatpush2.bf16.xpose.msra.mxu0 0
    %676 = vmatprep.subr.bf16.mxu0 0
    %677 = vmatpush2.bf16.xpose.msra.mxu0 0
    %678 = vmatprep.subr.bf16.mxu0 0
    %679 = vmatpush2.bf16.xpose.msra.mxu0 0
    %680 = vmatprep.subr.bf16.mxu0 0
    %681 = vmatpush2.bf16.xpose.msra.mxu0 0
    %682 = vmatprep.subr.bf16.mxu0 0
    %683 = vmatpush2.bf16.xpose.msra.mxu0 0
    %684 = vmatprep.subr.bf16.mxu0 0
    %685 = vmatpush2.bf16.xpose.msra.mxu0 0
    %686 = vmatprep.mubr.bf16.mxu0 0
    %687 = vmatmul.mubr.bf16.gmra.mxu0 %v649
    %v688 = vpop.f32.mrf.mxu0
    %v689 = vadd.f32 0.0, %v688
    %v690 = vpop.f32.mrf.mxu0
    %v691 = vpop.f32.mrf.mxu0
    %v692 = vpop.f32.mrf.mxu0
    %693 = vdwg.mxu0
    %v694 = vsel %vm317, %v641, -inf
    %695 = vmax.xlane.f32.xlu0 %v694
    %v696 = vpop.xlane.xlu0 %695
    %v697 = vsel %vm317, %v689, -inf
    %698 = vmax.xlane.f32.xlu0 %v697
    %v699 = vpop.xlane.xlu0 %698
    %v700 = vsub.f32 %v641, %v696
    %v701 = vsub.f32 %v689, %v699
    %v702 = vmul.f32 %v700, 1.442695
    %v703 = vpow.pop %v702
    %v704 = vmul.f32 %v701, 1.442695
    %v705 = vpow.pop %v704
    %v706 = vsel %vm317, %v703, 0.0
    %707 = vadd.xlane.f32.xlu0 %v706
    %v708 = vpop.xlane.xlu0 %707
    %v709 = vsel %vm317, %v705, 0.0
    %710 = vadd.xlane.f32.xlu0 %v709
    %v711 = vpop.xlane.xlu0 %710
    %v712 = vrcp.pop %v708
    %v713 = vrcp.pop %v711
    %v714 = vmul.f32 %v703, %v712
    %v715 = vmul.f32 %v705, %v713
    %v716 = vpack.c.bf16 %v714, %v714
    %v717 = vpack.c.bf16 %v715, %v715
    %v719 = vsel %vm317, %v716, 0
    %v722 = vsel %vm345, %v596, 0
    %724 = vmatprep.subr.bf16.mxu0 0
    %725 = vmatpush1.bf16.msra.mxu0 0
    %726 = vmatprep.subr.bf16.mxu0 0
    %727 = vmatpush1.bf16.msra.mxu0 0
    %728 = vmatprep.subr.bf16.mxu0 0
    %729 = vmatpush1.bf16.msra.mxu0 0
    %730 = vmatprep.subr.bf16.mxu0 0
    %731 = vmatpush1.bf16.msra.mxu0 0
    %732 = vmatprep.subr.bf16.mxu0 0
    %733 = vmatpush1.bf16.msra.mxu0 0
    %734 = vmatprep.subr.bf16.mxu0 0
    %735 = vmatpush1.bf16.msra.mxu0 0
    %736 = vmatprep.subr.bf16.mxu0 0
    %737 = vmatpush1.bf16.msra.mxu0 0
    %738 = vmatprep.subr.bf16.mxu0 0
    %739 = vmatpush1.bf16.msra.mxu0 %v722
    %740 = vmatprep.subr.bf16.mxu0 0
    %741 = vmatpush2.bf16.msra.mxu0 0
    %742 = vmatprep.subr.bf16.mxu0 0
    %743 = vmatpush2.bf16.msra.mxu0 0
    %744 = vmatprep.subr.bf16.mxu0 0
    %745 = vmatpush2.bf16.msra.mxu0 0
    %746 = vmatprep.subr.bf16.mxu0 0
    %747 = vmatpush2.bf16.msra.mxu0 0
    %748 = vmatprep.subr.bf16.mxu0 0
    %749 = vmatpush2.bf16.msra.mxu0 0
    %750 = vmatprep.subr.bf16.mxu0 0
    %751 = vmatpush2.bf16.msra.mxu0 0
    %752 = vmatprep.subr.bf16.mxu0 0
    %753 = vmatpush2.bf16.msra.mxu0 0
    %754 = vmatprep.subr.bf16.mxu0 0
    %755 = vmatpush2.bf16.msra.mxu0 0
    %756 = vmatprep.mubr.bf16.mxu0 0
    %757 = vmatmul.mubr.bf16.gmra.mxu0 %v719
    %v758 = vpop.f32.mrf.mxu0
    %v759 = vadd.f32 0.0, %v758
    %v760 = vpop.f32.mrf.mxu0
    %v761 = vpop.f32.mrf.mxu0
    %v762 = vpop.f32.mrf.mxu0
    %763 = vdwg.mxu0
    %v765 = vsel %vm317, %v717, 0
    %v768 = vsel %vm345, %v597, 0
    %770 = vmatprep.subr.bf16.mxu0 0
    %771 = vmatpush1.bf16.msra.mxu0 0
    %772 = vmatprep.subr.bf16.mxu0 0
    %773 = vmatpush1.bf16.msra.mxu0 0
    %774 = vmatprep.subr.bf16.mxu0 0
    %775 = vmatpush1.bf16.msra.mxu0 0
    %776 = vmatprep.subr.bf16.mxu0 0
    %777 = vmatpush1.bf16.msra.mxu0 0
    %778 = vmatprep.subr.bf16.mxu0 0
    %779 = vmatpush1.bf16.msra.mxu0 0
    %780 = vmatprep.subr.bf16.mxu0 0
    %781 = vmatpush1.bf16.msra.mxu0 0
    %782 = vmatprep.subr.bf16.mxu0 0
    %783 = vmatpush1.bf16.msra.mxu0 0
    %784 = vmatprep.subr.bf16.mxu0 0
    %785 = vmatpush1.bf16.msra.mxu0 %v768
    %786 = vmatprep.subr.bf16.mxu0 0
    %787 = vmatpush2.bf16.msra.mxu0 0
    %788 = vmatprep.subr.bf16.mxu0 0
    %789 = vmatpush2.bf16.msra.mxu0 0
    %790 = vmatprep.subr.bf16.mxu0 0
    %791 = vmatpush2.bf16.msra.mxu0 0
    %792 = vmatprep.subr.bf16.mxu0 0
    %793 = vmatpush2.bf16.msra.mxu0 0
    %794 = vmatprep.subr.bf16.mxu0 0
    %795 = vmatpush2.bf16.msra.mxu0 0
    %796 = vmatprep.subr.bf16.mxu0 0
    %797 = vmatpush2.bf16.msra.mxu0 0
    %798 = vmatprep.subr.bf16.mxu0 0
    %799 = vmatpush2.bf16.msra.mxu0 0
    %800 = vmatprep.subr.bf16.mxu0 0
    %801 = vmatpush2.bf16.msra.mxu0 0
    %802 = vmatprep.mubr.bf16.mxu0 0
    %803 = vmatmul.mubr.bf16.gmra.mxu0 %v765
    %v804 = vpop.f32.mrf.mxu0
    %v805 = vadd.f32 0.0, %v804
    %v806 = vpop.f32.mrf.mxu0
    %v807 = vpop.f32.mrf.mxu0
    %v808 = vpop.f32.mrf.mxu0
    %809 = vdwg.mxu0
    %v810 = vpack.c.bf16 %v805, %v759
    %v812 = vunpack.c.l.b16 %v810
    %v813 = vunpack.c.h.b16 %v810
    %v814 = vpack.c.b16 %v812, %v812
    %v815 = vpack.c.b16 %v813, %v813
    %816 = vrot.lane.b32.xlu0 %v814, 64
    %v817 = vpop.permute.xlu0 %816
    %818 = vrot.lane.b32.xlu0 %v815, 64
    %v819 = vpop.permute.xlu0 %818
    %vm822 = vcmask 1043968
    %823 = vst.msk [vmem:[#allocation2] sm:$0xf] %vm822, %v817
    %824 = vst.msk [vmem:[#allocation2 + $0x10] sm:$0xf] %vm822, %v819
    %s825 = scalar_lea.vmem %s3, 256
    %v826 = vld [vmem:[%s825] sm:$0xff]
    %v827 = vld [vmem:[%s825 + $0x8] sm:$0xff]
    %v828 = vld [vmem:[%s825 + $0x10] sm:$0xff]
    %v829 = vld [vmem:[%s825 + $0x18] sm:$0xff]
    %v830 = vld [vmem:[%s825 + $0x20] sm:$0xff]
    %v831 = vld [vmem:[%s825 + $0x28] sm:$0xff]
    %v832 = vld [vmem:[%s825 + $0x30] sm:$0xff]
    %v833 = vld [vmem:[%s825 + $0x38] sm:$0xff]
    %v834 = vld [vmem:[%s825 + $0x40] sm:$0xff]
    %v835 = vld [vmem:[%s825 + $0x48] sm:$0xff]
    %v836 = vld [vmem:[%s825 + $0x50] sm:$0xff]
    %v837 = vld [vmem:[%s825 + $0x58] sm:$0xff]
    %v838 = vld [vmem:[%s825 + $0x60] sm:$0xff]
    %v839 = vld [vmem:[%s825 + $0x68] sm:$0xff]
    %v840 = vld [vmem:[%s825 + $0x70] sm:$0xff]
    %v841 = vld [vmem:[%s825 + $0x78] sm:$0xff]
    %v858 = vunpack.c.l.b16 %v826
    %v859 = vunpack.c.h.b16 %v826
    %v860 = vunpack.c.l.b16 %v827
    %v861 = vunpack.c.h.b16 %v827
    %v862 = vunpack.c.l.b16 %v828
    %v863 = vunpack.c.h.b16 %v828
    %v864 = vunpack.c.l.b16 %v829
    %v865 = vunpack.c.h.b16 %v829
    %v866 = vunpack.c.l.b16 %v830
    %v867 = vunpack.c.h.b16 %v830
    %v868 = vunpack.c.l.b16 %v831
    %v869 = vunpack.c.h.b16 %v831
    %v870 = vunpack.c.l.b16 %v832
    %v871 = vunpack.c.h.b16 %v832
    %v872 = vunpack.c.l.b16 %v833
    %v873 = vunpack.c.h.b16 %v833
    %v874 = vunpack.c.l.b16 %v834
    %v875 = vunpack.c.h.b16 %v834
    %v876 = vunpack.c.l.b16 %v835
    %v877 = vunpack.c.h.b16 %v835
    %v878 = vunpack.c.l.b16 %v836
    %v879 = vunpack.c.h.b16 %v836
    %v880 = vunpack.c.l.b16 %v837
    %v881 = vunpack.c.h.b16 %v837
    %v882 = vunpack.c.l.b16 %v838
    %v883 = vunpack.c.h.b16 %v838
    %v884 = vunpack.c.l.b16 %v839
    %v885 = vunpack.c.h.b16 %v839
    %v886 = vunpack.c.l.b16 %v840
    %v887 = vunpack.c.h.b16 %v840
    %v888 = vunpack.c.l.b16 %v841
    %v889 = vunpack.c.h.b16 %v841
    %v890 = vpack.c.b16 %v860, %v858
    %v891 = vpack.c.b16 %v861, %v859
    %v892 = vpack.c.b16 %v864, %v862
    %v893 = vpack.c.b16 %v865, %v863
    %v894 = vpack.c.b16 %v868, %v866
    %v895 = vpack.c.b16 %v869, %v867
    %v896 = vpack.c.b16 %v872, %v870
    %v897 = vpack.c.b16 %v873, %v871
    %v898 = vpack.c.b16 %v876, %v874
    %v899 = vpack.c.b16 %v877, %v875
    %v900 = vpack.c.b16 %v880, %v878
    %v901 = vpack.c.b16 %v881, %v879
    %v902 = vpack.c.b16 %v884, %v882
    %v903 = vpack.c.b16 %v885, %v883
    %v904 = vpack.c.b16 %v888, %v886
    %v905 = vpack.c.b16 %v889, %v887
    %922 = vmatprep.subr.bf16.mxu0 %v905
    %923 = vmatpush1.bf16.msra.mxu0 %v904
    %924 = vmatprep.subr.bf16.mxu0 %v903
    %925 = vmatpush1.bf16.msra.mxu0 %v902
    %926 = vmatprep.subr.bf16.mxu0 %v901
    %927 = vmatpush1.bf16.msra.mxu0 %v900
    %928 = vmatprep.subr.bf16.mxu0 %v899
    %929 = vmatpush1.bf16.msra.mxu0 %v898
    %930 = vmatprep.subr.bf16.mxu0 %v897
    %931 = vmatpush1.bf16.msra.mxu0 %v896
    %932 = vmatprep.subr.bf16.mxu0 %v895
    %933 = vmatpush1.bf16.msra.mxu0 %v894
    %934 = vmatprep.subr.bf16.mxu0 %v893
    %935 = vmatpush1.bf16.msra.mxu0 %v892
    %936 = vmatprep.subr.bf16.mxu0 %v891
    %937 = vmatpush1.bf16.msra.mxu0 %v890
    %938 = vmatprep.subr.bf16.mxu0 0
    %939 = vmatpush2.bf16.msra.mxu0 0
    %940 = vmatprep.subr.bf16.mxu0 0
    %941 = vmatpush2.bf16.msra.mxu0 0
    %942 = vmatprep.subr.bf16.mxu0 0
    %943 = vmatpush2.bf16.msra.mxu0 0
    %944 = vmatprep.subr.bf16.mxu0 0
    %945 = vmatpush2.bf16.msra.mxu0 0
    %946 = vmatprep.subr.bf16.mxu0 0
    %947 = vmatpush2.bf16.msra.mxu0 0
    %948 = vmatprep.subr.bf16.mxu0 0
    %949 = vmatpush2.bf16.msra.mxu0 0
    %950 = vmatprep.subr.bf16.mxu0 0
    %951 = vmatpush2.bf16.msra.mxu0 0
    %952 = vmatprep.subr.bf16.mxu0 0
    %953 = vmatpush2.bf16.msra.mxu0 0
    %954 = vmatprep.mubr.bf16.mxu0 0
    %955 = vmatmul.mubr.bf16.gmra.mxu0 %v68
    %v956 = vpop.f32.mrf.mxu0
    %v957 = vadd.f32 0.0, %v956
    %v958 = vpop.f32.mrf.mxu0
    %v959 = vadd.f32 0.0, %v958
    %v960 = vpop.f32.mrf.mxu0
    %v961 = vadd.f32 0.0, %v960
    %v962 = vpop.f32.mrf.mxu0
    %v963 = vadd.f32 0.0, %v962
    %964 = vdwg.mxu0
    %v965 = vpack.c.bf16 %v961, %v957
    %v966 = vpack.c.bf16 %v963, %v959
    %v968 = vunpack.c.l.b16 %v965
    %v969 = vunpack.c.h.b16 %v965
    %v970 = vpack.c.b16 %v968, %v968
    %v971 = vpack.c.b16 %v969, %v969
    %v973 = vunpack.c.l.b16 %v966
    %v974 = vunpack.c.h.b16 %v966
    %v975 = vpack.c.b16 %v973, %v973
    %v976 = vpack.c.b16 %v974, %v974
    %977 = vrot.lane.b32.xlu0 %v970, 64
    %v978 = vpop.permute.xlu0 %977
    %v980 = vsel %vm222, %v970, 0
    %v983 = vsel %vm222, %v978, 0
    %985 = vmatprep.subr.bf16.mxu0 0
    %986 = vmatpush1.bf16.xpose.msra.mxu0 0
    %987 = vmatprep.subr.bf16.mxu0 0
    %988 = vmatpush1.bf16.xpose.msra.mxu0 0
    %989 = vmatprep.subr.bf16.mxu0 0
    %990 = vmatpush1.bf16.xpose.msra.mxu0 0
    %991 = vmatprep.subr.bf16.mxu0 0
    %992 = vmatpush1.bf16.xpose.msra.mxu0 0
    %993 = vmatprep.subr.bf16.mxu0 0
    %994 = vmatpush1.bf16.xpose.msra.mxu0 0
    %995 = vmatprep.subr.bf16.mxu0 0
    %996 = vmatpush1.bf16.xpose.msra.mxu0 0
    %997 = vmatprep.subr.bf16.mxu0 0
    %998 = vmatpush1.bf16.xpose.msra.mxu0 0
    %999 = vmatprep.subr.bf16.mxu0 0
    %1000 = vmatpush1.bf16.xpose.msra.mxu0 %v983
    %1001 = vmatprep.subr.bf16.mxu0 0
    %1002 = vmatpush2.bf16.xpose.msra.mxu0 0
    %1003 = vmatprep.subr.bf16.mxu0 0
    %1004 = vmatpush2.bf16.xpose.msra.mxu0 0
    %1005 = vmatprep.subr.bf16.mxu0 0
    %1006 = vmatpush2.bf16.xpose.msra.mxu0 0
    %1007 = vmatprep.subr.bf16.mxu0 0
    %1008 = vmatpush2.bf16.xpose.msra.mxu0 0
    %1009 = vmatprep.subr.bf16.mxu0 0
    %1010 = vmatpush2.bf16.xpose.msra.mxu0 0
    %1011 = vmatprep.subr.bf16.mxu0 0
    %1012 = vmatpush2.bf16.xpose.msra.mxu0 0
    %1013 = vmatprep.subr.bf16.mxu0 0
    %1014 = vmatpush2.bf16.xpose.msra.mxu0 0
    %1015 = vmatprep.subr.bf16.mxu0 0
    %1016 = vmatpush2.bf16.xpose.msra.mxu0 0
    %1017 = vmatprep.mubr.bf16.mxu0 0
    %1018 = vmatmul.mubr.bf16.gmra.mxu0 %v980
    %v1019 = vpop.f32.mrf.mxu0
    %v1020 = vadd.f32 0.0, %v1019
    %v1021 = vpop.f32.mrf.mxu0
    %v1022 = vpop.f32.mrf.mxu0
    %v1023 = vpop.f32.mrf.mxu0
    %1024 = vdwg.mxu0
    %1025 = vrot.lane.b32.xlu0 %v971, 64
    %v1026 = vpop.permute.xlu0 %1025
    %v1028 = vsel %vm222, %v971, 0
    %v1031 = vsel %vm222, %v1026, 0
    %1033 = vmatprep.subr.bf16.mxu0 0
    %1034 = vmatpush1.bf16.xpose.msra.mxu0 0
    %1035 = vmatprep.subr.bf16.mxu0 0
    %1036 = vmatpush1.bf16.xpose.msra.mxu0 0
    %1037 = vmatprep.subr.bf16.mxu0 0
    %1038 = vmatpush1.bf16.xpose.msra.mxu0 0
    %1039 = vmatprep.subr.bf16.mxu0 0
    %1040 = vmatpush1.bf16.xpose.msra.mxu0 0
    %1041 = vmatprep.subr.bf16.mxu0 0
    %1042 = vmatpush1.bf16.xpose.msra.mxu0 0
    %1043 = vmatprep.subr.bf16.mxu0 0
    %1044 = vmatpush1.bf16.xpose.msra.mxu0 0
    %1045 = vmatprep.subr.bf16.mxu0 0
    %1046 = vmatpush1.bf16.xpose.msra.mxu0 0
    %1047 = vmatprep.subr.bf16.mxu0 0
    %1048 = vmatpush1.bf16.xpose.msra.mxu0 %v1031
    %1049 = vmatprep.subr.bf16.mxu0 0
    %1050 = vmatpush2.bf16.xpose.msra.mxu0 0
    %1051 = vmatprep.subr.bf16.mxu0 0
    %1052 = vmatpush2.bf16.xpose.msra.mxu0 0
    %1053 = vmatprep.subr.bf16.mxu0 0
    %1054 = vmatpush2.bf16.xpose.msra.mxu0 0
    %1055 = vmatprep.subr.bf16.mxu0 0
    %1056 = vmatpush2.bf16.xpose.msra.mxu0 0
    %1057 = vmatprep.subr.bf16.mxu0 0
    %1058 = vmatpush2.bf16.xpose.msra.mxu0 0
    %1059 = vmatprep.subr.bf16.mxu0 0
    %1060 = vmatpush2.bf16.xpose.msra.mxu0 0
    %1061 = vmatprep.subr.bf16.mxu0 0
    %1062 = vmatpush2.bf16.xpose.msra.mxu0 0
    %1063 = vmatprep.subr.bf16.mxu0 0
    %1064 = vmatpush2.bf16.xpose.msra.mxu0 0
    %1065 = vmatprep.mubr.bf16.mxu0 0
    %1066 = vmatmul.mubr.bf16.gmra.mxu0 %v1028
    %v1067 = vpop.f32.mrf.mxu0
    %v1068 = vadd.f32 0.0, %v1067
    %v1069 = vpop.f32.mrf.mxu0
    %v1070 = vpop.f32.mrf.mxu0
    %v1071 = vpop.f32.mrf.mxu0
    %1072 = vdwg.mxu0
    %v1073 = vsel %vm317, %v1020, -inf
    %1074 = vmax.xlane.f32.xlu0 %v1073
    %v1075 = vpop.xlane.xlu0 %1074
    %v1076 = vsel %vm317, %v1068, -inf
    %1077 = vmax.xlane.f32.xlu0 %v1076
    %v1078 = vpop.xlane.xlu0 %1077
    %v1079 = vsub.f32 %v1020, %v1075
    %v1080 = vsub.f32 %v1068, %v1078
    %v1081 = vmul.f32 %v1079, 1.442695
    %v1082 = vpow.pop %v1081
    %v1083 = vmul.f32 %v1080, 1.442695
    %v1084 = vpow.pop %v1083
    %v1085 = vsel %vm317, %v1082, 0.0
    %1086 = vadd.xlane.f32.xlu0 %v1085
    %v1087 = vpop.xlane.xlu0 %1086
    %v1088 = vsel %vm317, %v1084, 0.0
    %1089 = vadd.xlane.f32.xlu0 %v1088
    %v1090 = vpop.xlane.xlu0 %1089
    %v1091 = vrcp.pop %v1087
    %v1092 = vrcp.pop %v1090
    %v1093 = vmul.f32 %v1082, %v1091
    %v1094 = vmul.f32 %v1084, %v1092
    %v1095 = vpack.c.bf16 %v1093, %v1093
    %v1096 = vpack.c.bf16 %v1094, %v1094
    %v1098 = vsel %vm317, %v1095, 0
    %v1101 = vsel %vm345, %v975, 0
    %1103 = vmatprep.subr.bf16.mxu0 0
    %1104 = vmatpush1.bf16.msra.mxu0 0
    %1105 = vmatprep.subr.bf16.mxu0 0
    %1106 = vmatpush1.bf16.msra.mxu0 0
    %1107 = vmatprep.subr.bf16.mxu0 0
    %1108 = vmatpush1.bf16.msra.mxu0 0
    %1109 = vmatprep.subr.bf16.mxu0 0
    %1110 = vmatpush1.bf16.msra.mxu0 0
    %1111 = vmatprep.subr.bf16.mxu0 0
    %1112 = vmatpush1.bf16.msra.mxu0 0
    %1113 = vmatprep.subr.bf16.mxu0 0
    %1114 = vmatpush1.bf16.msra.mxu0 0
    %1115 = vmatprep.subr.bf16.mxu0 0
    %1116 = vmatpush1.bf16.msra.mxu0 0
    %1117 = vmatprep.subr.bf16.mxu0 0
    %1118 = vmatpush1.bf16.msra.mxu0 %v1101
    %1119 = vmatprep.subr.bf16.mxu0 0
    %1120 = vmatpush2.bf16.msra.mxu0 0
    %1121 = vmatprep.subr.bf16.mxu0 0
    %1122 = vmatpush2.bf16.msra.mxu0 0
    %1123 = vmatprep.subr.bf16.mxu0 0
    %1124 = vmatpush2.bf16.msra.mxu0 0
    %1125 = vmatprep.subr.bf16.mxu0 0
    %1126 = vmatpush2.bf16.msra.mxu0 0
    %1127 = vmatprep.subr.bf16.mxu0 0
    %1128 = vmatpush2.bf16.msra.mxu0 0
    %1129 = vmatprep.subr.bf16.mxu0 0
    %1130 = vmatpush2.bf16.msra.mxu0 0
    %1131 = vmatprep.subr.bf16.mxu0 0
    %1132 = vmatpush2.bf16.msra.mxu0 0
    %1133 = vmatprep.subr.bf16.mxu0 0
    %1134 = vmatpush2.bf16.msra.mxu0 0
    %1135 = vmatprep.mubr.bf16.mxu0 0
    %1136 = vmatmul.mubr.bf16.gmra.mxu0 %v1098
    %v1137 = vpop.f32.mrf.mxu0
    %v1138 = vadd.f32 0.0, %v1137
    %v1139 = vpop.f32.mrf.mxu0
    %v1140 = vpop.f32.mrf.mxu0
    %v1141 = vpop.f32.mrf.mxu0
    %1142 = vdwg.mxu0
    %v1144 = vsel %vm317, %v1096, 0
    %v1147 = vsel %vm345, %v976, 0
    %1149 = vmatprep.subr.bf16.mxu0 0
    %1150 = vmatpush1.bf16.msra.mxu0 0
    %1151 = vmatprep.subr.bf16.mxu0 0
    %1152 = vmatpush1.bf16.msra.mxu0 0
    %1153 = vmatprep.subr.bf16.mxu0 0
    %1154 = vmatpush1.bf16.msra.mxu0 0
    %1155 = vmatprep.subr.bf16.mxu0 0
    %1156 = vmatpush1.bf16.msra.mxu0 0
    %1157 = vmatprep.subr.bf16.mxu0 0
    %1158 = vmatpush1.bf16.msra.mxu0 0
    %1159 = vmatprep.subr.bf16.mxu0 0
    %1160 = vmatpush1.bf16.msra.mxu0 0
    %1161 = vmatprep.subr.bf16.mxu0 0
    %1162 = vmatpush1.bf16.msra.mxu0 0
    %1163 = vmatprep.subr.bf16.mxu0 0
    %1164 = vmatpush1.bf16.msra.mxu0 %v1147
    %1165 = vmatprep.subr.bf16.mxu0 0
    %1166 = vmatpush2.bf16.msra.mxu0 0
    %1167 = vmatprep.subr.bf16.mxu0 0
    %1168 = vmatpush2.bf16.msra.mxu0 0
    %1169 = vmatprep.subr.bf16.mxu0 0
    %1170 = vmatpush2.bf16.msra.mxu0 0
    %1171 = vmatprep.subr.bf16.mxu0 0
    %1172 = vmatpush2.bf16.msra.mxu0 0
    %1173 = vmatprep.subr.bf16.mxu0 0
    %1174 = vmatpush2.bf16.msra.mxu0 0
    %1175 = vmatprep.subr.bf16.mxu0 0
    %1176 = vmatpush2.bf16.msra.mxu0 0
    %1177 = vmatprep.subr.bf16.mxu0 0
    %1178 = vmatpush2.bf16.msra.mxu0 0
    %1179 = vmatprep.subr.bf16.mxu0 0
    %1180 = vmatpush2.bf16.msra.mxu0 0
    %1181 = vmatprep.mubr.bf16.mxu0 0
    %1182 = vmatmul.mubr.bf16.gmra.mxu0 %v1144
    %v1183 = vpop.f32.mrf.mxu0
    %v1184 = vadd.f32 0.0, %v1183
    %v1185 = vpop.f32.mrf.mxu0
    %v1186 = vpop.f32.mrf.mxu0
    %v1187 = vpop.f32.mrf.mxu0
    %1188 = vdwg.mxu0
    %v1189 = vpack.c.bf16 %v1184, %v1138
    %v1191 = vunpack.c.l.b16 %v1189
    %v1192 = vunpack.c.h.b16 %v1189
    %v1193 = vpack.c.b16 %v1191, %v1191
    %v1194 = vpack.c.b16 %v1192, %v1192
    %1197 = vst.msk [vmem:[#allocation2 + $0x4] sm:$0xf] %vm443, %v1193
    %1198 = vst.msk [vmem:[#allocation2 + $0x14] sm:$0xf] %vm443, %v1194
    %s1199 = scalar_lea.vmem %s3, 384
    %v1200 = vld [vmem:[%s1199] sm:$0xff]
    %v1201 = vld [vmem:[%s1199 + $0x8] sm:$0xff]
    %v1202 = vld [vmem:[%s1199 + $0x10] sm:$0xff]
    %v1203 = vld [vmem:[%s1199 + $0x18] sm:$0xff]
    %v1204 = vld [vmem:[%s1199 + $0x20] sm:$0xff]
    %v1205 = vld [vmem:[%s1199 + $0x28] sm:$0xff]
    %v1206 = vld [vmem:[%s1199 + $0x30] sm:$0xff]
    %v1207 = vld [vmem:[%s1199 + $0x38] sm:$0xff]
    %v1208 = vld [vmem:[%s1199 + $0x40] sm:$0xff]
    %v1209 = vld [vmem:[%s1199 + $0x48] sm:$0xff]
    %v1210 = vld [vmem:[%s1199 + $0x50] sm:$0xff]
    %v1211 = vld [vmem:[%s1199 + $0x58] sm:$0xff]
    %v1212 = vld [vmem:[%s1199 + $0x60] sm:$0xff]
    %v1213 = vld [vmem:[%s1199 + $0x68] sm:$0xff]
    %v1214 = vld [vmem:[%s1199 + $0x70] sm:$0xff]
    %v1215 = vld [vmem:[%s1199 + $0x78] sm:$0xff]
    %v1232 = vunpack.c.l.b16 %v1200
    %v1233 = vunpack.c.h.b16 %v1200
    %v1234 = vunpack.c.l.b16 %v1201
    %v1235 = vunpack.c.h.b16 %v1201
    %v1236 = vunpack.c.l.b16 %v1202
    %v1237 = vunpack.c.h.b16 %v1202
    %v1238 = vunpack.c.l.b16 %v1203
    %v1239 = vunpack.c.h.b16 %v1203
    %v1240 = vunpack.c.l.b16 %v1204
    %v1241 = vunpack.c.h.b16 %v1204
    %v1242 = vunpack.c.l.b16 %v1205
    %v1243 = vunpack.c.h.b16 %v1205
    %v1244 = vunpack.c.l.b16 %v1206
    %v1245 = vunpack.c.h.b16 %v1206
    %v1246 = vunpack.c.l.b16 %v1207
    %v1247 = vunpack.c.h.b16 %v1207
    %v1248 = vunpack.c.l.b16 %v1208
    %v1249 = vunpack.c.h.b16 %v1208
    %v1250 = vunpack.c.l.b16 %v1209
    %v1251 = vunpack.c.h.b16 %v1209
    %v1252 = vunpack.c.l.b16 %v1210
    %v1253 = vunpack.c.h.b16 %v1210
    %v1254 = vunpack.c.l.b16 %v1211
    %v1255 = vunpack.c.h.b16 %v1211
    %v1256 = vunpack.c.l.b16 %v1212
    %v1257 = vunpack.c.h.b16 %v1212
    %v1258 = vunpack.c.l.b16 %v1213
    %v1259 = vunpack.c.h.b16 %v1213
    %v1260 = vunpack.c.l.b16 %v1214
    %v1261 = vunpack.c.h.b16 %v1214
    %v1262 = vunpack.c.l.b16 %v1215
    %v1263 = vunpack.c.h.b16 %v1215
    %v1264 = vpack.c.b16 %v1234, %v1232
    %v1265 = vpack.c.b16 %v1235, %v1233
    %v1266 = vpack.c.b16 %v1238, %v1236
    %v1267 = vpack.c.b16 %v1239, %v1237
    %v1268 = vpack.c.b16 %v1242, %v1240
    %v1269 = vpack.c.b16 %v1243, %v1241
    %v1270 = vpack.c.b16 %v1246, %v1244
    %v1271 = vpack.c.b16 %v1247, %v1245
    %v1272 = vpack.c.b16 %v1250, %v1248
    %v1273 = vpack.c.b16 %v1251, %v1249
    %v1274 = vpack.c.b16 %v1254, %v1252
    %v1275 = vpack.c.b16 %v1255, %v1253
    %v1276 = vpack.c.b16 %v1258, %v1256
    %v1277 = vpack.c.b16 %v1259, %v1257
    %v1278 = vpack.c.b16 %v1262, %v1260
    %v1279 = vpack.c.b16 %v1263, %v1261
    %1296 = vmatprep.subr.bf16.mxu0 %v1279
    %1297 = vmatpush1.bf16.msra.mxu0 %v1278
    %1298 = vmatprep.subr.bf16.mxu0 %v1277
    %1299 = vmatpush1.bf16.msra.mxu0 %v1276
    %1300 = vmatprep.subr.bf16.mxu0 %v1275
    %1301 = vmatpush1.bf16.msra.mxu0 %v1274
    %1302 = vmatprep.subr.bf16.mxu0 %v1273
    %1303 = vmatpush1.bf16.msra.mxu0 %v1272
    %1304 = vmatprep.subr.bf16.mxu0 %v1271
    %1305 = vmatpush1.bf16.msra.mxu0 %v1270
    %1306 = vmatprep.subr.bf16.mxu0 %v1269
    %1307 = vmatpush1.bf16.msra.mxu0 %v1268
    %1308 = vmatprep.subr.bf16.mxu0 %v1267
    %1309 = vmatpush1.bf16.msra.mxu0 %v1266
    %1310 = vmatprep.subr.bf16.mxu0 %v1265
    %1311 = vmatpush1.bf16.msra.mxu0 %v1264
    %1312 = vmatprep.subr.bf16.mxu0 0
    %1313 = vmatpush2.bf16.msra.mxu0 0
    %1314 = vmatprep.subr.bf16.mxu0 0
    %1315 = vmatpush2.bf16.msra.mxu0 0
    %1316 = vmatprep.subr.bf16.mxu0 0
    %1317 = vmatpush2.bf16.msra.mxu0 0
    %1318 = vmatprep.subr.bf16.mxu0 0
    %1319 = vmatpush2.bf16.msra.mxu0 0
    %1320 = vmatprep.subr.bf16.mxu0 0
    %1321 = vmatpush2.bf16.msra.mxu0 0
    %1322 = vmatprep.subr.bf16.mxu0 0
    %1323 = vmatpush2.bf16.msra.mxu0 0
    %1324 = vmatprep.subr.bf16.mxu0 0
    %1325 = vmatpush2.bf16.msra.mxu0 0
    %1326 = vmatprep.subr.bf16.mxu0 0
    %1327 = vmatpush2.bf16.msra.mxu0 0
    %1328 = vmatprep.mubr.bf16.mxu0 0
    %1329 = vmatmul.mubr.bf16.gmra.mxu0 %v68
    %v1330 = vpop.f32.mrf.mxu0
    %v1331 = vadd.f32 0.0, %v1330
    %v1332 = vpop.f32.mrf.mxu0
    %v1333 = vadd.f32 0.0, %v1332
    %v1334 = vpop.f32.mrf.mxu0
    %v1335 = vadd.f32 0.0, %v1334
    %v1336 = vpop.f32.mrf.mxu0
    %v1337 = vadd.f32 0.0, %v1336
    %1338 = vdwg.mxu0
    %v1339 = vpack.c.bf16 %v1335, %v1331
    %v1340 = vpack.c.bf16 %v1337, %v1333
    %v1342 = vunpack.c.l.b16 %v1339
    %v1343 = vunpack.c.h.b16 %v1339
    %v1344 = vpack.c.b16 %v1342, %v1342
    %v1345 = vpack.c.b16 %v1343, %v1343
    %v1347 = vunpack.c.l.b16 %v1340
    %v1348 = vunpack.c.h.b16 %v1340
    %v1349 = vpack.c.b16 %v1347, %v1347
    %v1350 = vpack.c.b16 %v1348, %v1348
    %1351 = vrot.lane.b32.xlu0 %v1344, 64
    %v1352 = vpop.permute.xlu0 %1351
    %v1354 = vsel %vm222, %v1344, 0
    %v1357 = vsel %vm222, %v1352, 0
    %1359 = vmatprep.subr.bf16.mxu0 0
    %1360 = vmatpush1.bf16.xpose.msra.mxu0 0
    %1361 = vmatprep.subr.bf16.mxu0 0
    %1362 = vmatpush1.bf16.xpose.msra.mxu0 0
    %1363 = vmatprep.subr.bf16.mxu0 0
    %1364 = vmatpush1.bf16.xpose.msra.mxu0 0
    %1365 = vmatprep.subr.bf16.mxu0 0
    %1366 = vmatpush1.bf16.xpose.msra.mxu0 0
    %1367 = vmatprep.subr.bf16.mxu0 0
    %1368 = vmatpush1.bf16.xpose.msra.mxu0 0
    %1369 = vmatprep.subr.bf16.mxu0 0
    %1370 = vmatpush1.bf16.xpose.msra.mxu0 0
    %1371 = vmatprep.subr.bf16.mxu0 0
    %1372 = vmatpush1.bf16.xpose.msra.mxu0 0
    %1373 = vmatprep.subr.bf16.mxu0 0
    %1374 = vmatpush1.bf16.xpose.msra.mxu0 %v1357
    %1375 = vmatprep.subr.bf16.mxu0 0
    %1376 = vmatpush2.bf16.xpose.msra.mxu0 0
    %1377 = vmatprep.subr.bf16.mxu0 0
    %1378 = vmatpush2.bf16.xpose.msra.mxu0 0
    %1379 = vmatprep.subr.bf16.mxu0 0
    %1380 = vmatpush2.bf16.xpose.msra.mxu0 0
    %1381 = vmatprep.subr.bf16.mxu0 0
    %1382 = vmatpush2.bf16.xpose.msra.mxu0 0
    %1383 = vmatprep.subr.bf16.mxu0 0
    %1384 = vmatpush2.bf16.xpose.msra.mxu0 0
    %1385 = vmatprep.subr.bf16.mxu0 0
    %1386 = vmatpush2.bf16.xpose.msra.mxu0 0
    %1387 = vmatprep.subr.bf16.mxu0 0
    %1388 = vmatpush2.bf16.xpose.msra.mxu0 0
    %1389 = vmatprep.subr.bf16.mxu0 0
    %1390 = vmatpush2.bf16.xpose.msra.mxu0 0
    %1391 = vmatprep.mubr.bf16.mxu0 0
    %1392 = vmatmul.mubr.bf16.gmra.mxu0 %v1354
    %v1393 = vpop.f32.mrf.mxu0
    %v1394 = vadd.f32 0.0, %v1393
    %v1395 = vpop.f32.mrf.mxu0
    %v1396 = vpop.f32.mrf.mxu0
    %v1397 = vpop.f32.mrf.mxu0
    %1398 = vdwg.mxu0
    %1399 = vrot.lane.b32.xlu0 %v1345, 64
    %v1400 = vpop.permute.xlu0 %1399
    %v1402 = vsel %vm222, %v1345, 0
    %v1405 = vsel %vm222, %v1400, 0
    %1407 = vmatprep.subr.bf16.mxu0 0
    %1408 = vmatpush1.bf16.xpose.msra.mxu0 0
    %1409 = vmatprep.subr.bf16.mxu0 0
    %1410 = vmatpush1.bf16.xpose.msra.mxu0 0
    %1411 = vmatprep.subr.bf16.mxu0 0
    %1412 = vmatpush1.bf16.xpose.msra.mxu0 0
    %1413 = vmatprep.subr.bf16.mxu0 0
    %1414 = vmatpush1.bf16.xpose.msra.mxu0 0
    %1415 = vmatprep.subr.bf16.mxu0 0
    %1416 = vmatpush1.bf16.xpose.msra.mxu0 0
    %1417 = vmatprep.subr.bf16.mxu0 0
    %1418 = vmatpush1.bf16.xpose.msra.mxu0 0
    %1419 = vmatprep.subr.bf16.mxu0 0
    %1420 = vmatpush1.bf16.xpose.msra.mxu0 0
    %1421 = vmatprep.subr.bf16.mxu0 0
    %1422 = vmatpush1.bf16.xpose.msra.mxu0 %v1405
    %1423 = vmatprep.subr.bf16.mxu0 0
    %1424 = vmatpush2.bf16.xpose.msra.mxu0 0
    %1425 = vmatprep.subr.bf16.mxu0 0
    %1426 = vmatpush2.bf16.xpose.msra.mxu0 0
    %1427 = vmatprep.subr.bf16.mxu0 0
    %1428 = vmatpush2.bf16.xpose.msra.mxu0 0
    %1429 = vmatprep.subr.bf16.mxu0 0
    %1430 = vmatpush2.bf16.xpose.msra.mxu0 0
    %1431 = vmatprep.subr.bf16.mxu0 0
    %1432 = vmatpush2.bf16.xpose.msra.mxu0 0
    %1433 = vmatprep.subr.bf16.mxu0 0
    %1434 = vmatpush2.bf16.xpose.msra.mxu0 0
    %1435 = vmatprep.subr.bf16.mxu0 0
    %1436 = vmatpush2.bf16.xpose.msra.mxu0 0
    %1437 = vmatprep.subr.bf16.mxu0 0
    %1438 = vmatpush2.bf16.xpose.msra.mxu0 0
    %1439 = vmatprep.mubr.bf16.mxu0 0
    %1440 = vmatmul.mubr.bf16.gmra.mxu0 %v1402
    %v1441 = vpop.f32.mrf.mxu0
    %v1442 = vadd.f32 0.0, %v1441
    %v1443 = vpop.f32.mrf.mxu0
    %v1444 = vpop.f32.mrf.mxu0
    %v1445 = vpop.f32.mrf.mxu0
    %1446 = vdwg.mxu0
    %v1447 = vsel %vm317, %v1394, -inf
    %1448 = vmax.xlane.f32.xlu0 %v1447
    %v1449 = vpop.xlane.xlu0 %1448
    %v1450 = vsel %vm317, %v1442, -inf
    %1451 = vmax.xlane.f32.xlu0 %v1450
    %v1452 = vpop.xlane.xlu0 %1451
    %v1453 = vsub.f32 %v1394, %v1449
    %v1454 = vsub.f32 %v1442, %v1452
    %v1455 = vmul.f32 %v1453, 1.442695
    %v1456 = vpow.pop %v1455
    %v1457 = vmul.f32 %v1454, 1.442695
    %v1458 = vpow.pop %v1457
    %v1459 = vsel %vm317, %v1456, 0.0
    %1460 = vadd.xlane.f32.xlu0 %v1459
    %v1461 = vpop.xlane.xlu0 %1460
    %v1462 = vsel %vm317, %v1458, 0.0
    %1463 = vadd.xlane.f32.xlu0 %v1462
    %v1464 = vpop.xlane.xlu0 %1463
    %v1465 = vrcp.pop %v1461
    %v1466 = vrcp.pop %v1464
    %v1467 = vmul.f32 %v1456, %v1465
    %v1468 = vmul.f32 %v1458, %v1466
    %v1469 = vpack.c.bf16 %v1467, %v1467
    %v1470 = vpack.c.bf16 %v1468, %v1468
    %v1472 = vsel %vm317, %v1469, 0
    %v1475 = vsel %vm345, %v1349, 0
    %1477 = vmatprep.subr.bf16.mxu0 0
    %1478 = vmatpush1.bf16.msra.mxu0 0
    %1479 = vmatprep.subr.bf16.mxu0 0
    %1480 = vmatpush1.bf16.msra.mxu0 0
    %1481 = vmatprep.subr.bf16.mxu0 0
    %1482 = vmatpush1.bf16.msra.mxu0 0
    %1483 = vmatprep.subr.bf16.mxu0 0
    %1484 = vmatpush1.bf16.msra.mxu0 0
    %1485 = vmatprep.subr.bf16.mxu0 0
    %1486 = vmatpush1.bf16.msra.mxu0 0
    %1487 = vmatprep.subr.bf16.mxu0 0
    %1488 = vmatpush1.bf16.msra.mxu0 0
    %1489 = vmatprep.subr.bf16.mxu0 0
    %1490 = vmatpush1.bf16.msra.mxu0 0
    %1491 = vmatprep.subr.bf16.mxu0 0
    %1492 = vmatpush1.bf16.msra.mxu0 %v1475
    %1493 = vmatprep.subr.bf16.mxu0 0
    %1494 = vmatpush2.bf16.msra.mxu0 0
    %1495 = vmatprep.subr.bf16.mxu0 0
    %1496 = vmatpush2.bf16.msra.mxu0 0
    %1497 = vmatprep.subr.bf16.mxu0 0
    %1498 = vmatpush2.bf16.msra.mxu0 0
    %1499 = vmatprep.subr.bf16.mxu0 0
    %1500 = vmatpush2.bf16.msra.mxu0 0
    %1501 = vmatprep.subr.bf16.mxu0 0
    %1502 = vmatpush2.bf16.msra.mxu0 0
    %1503 = vmatprep.subr.bf16.mxu0 0
    %1504 = vmatpush2.bf16.msra.mxu0 0
    %1505 = vmatprep.subr.bf16.mxu0 0
    %1506 = vmatpush2.bf16.msra.mxu0 0
    %1507 = vmatprep.subr.bf16.mxu0 0
    %1508 = vmatpush2.bf16.msra.mxu0 0
    %1509 = vmatprep.mubr.bf16.mxu0 0
    %1510 = vmatmul.mubr.bf16.gmra.mxu0 %v1472
    %v1511 = vpop.f32.mrf.mxu0
    %v1512 = vadd.f32 0.0, %v1511
    %v1513 = vpop.f32.mrf.mxu0
    %v1514 = vpop.f32.mrf.mxu0
    %v1515 = vpop.f32.mrf.mxu0
    %1516 = vdwg.mxu0
    %v1518 = vsel %vm317, %v1470, 0
    %v1521 = vsel %vm345, %v1350, 0
    %1523 = vmatprep.subr.bf16.mxu0 0
    %1524 = vmatpush1.bf16.msra.mxu0 0
    %1525 = vmatprep.subr.bf16.mxu0 0
    %1526 = vmatpush1.bf16.msra.mxu0 0
    %1527 = vmatprep.subr.bf16.mxu0 0
    %1528 = vmatpush1.bf16.msra.mxu0 0
    %1529 = vmatprep.subr.bf16.mxu0 0
    %1530 = vmatpush1.bf16.msra.mxu0 0
    %1531 = vmatprep.subr.bf16.mxu0 0
    %1532 = vmatpush1.bf16.msra.mxu0 0
    %1533 = vmatprep.subr.bf16.mxu0 0
    %1534 = vmatpush1.bf16.msra.mxu0 0
    %1535 = vmatprep.subr.bf16.mxu0 0
    %1536 = vmatpush1.bf16.msra.mxu0 0
    %1537 = vmatprep.subr.bf16.mxu0 0
    %1538 = vmatpush1.bf16.msra.mxu0 %v1521
    %1539 = vmatprep.subr.bf16.mxu0 0
    %1540 = vmatpush2.bf16.msra.mxu0 0
    %1541 = vmatprep.subr.bf16.mxu0 0
    %1542 = vmatpush2.bf16.msra.mxu0 0
    %1543 = vmatprep.subr.bf16.mxu0 0
    %1544 = vmatpush2.bf16.msra.mxu0 0
    %1545 = vmatprep.subr.bf16.mxu0 0
    %1546 = vmatpush2.bf16.msra.mxu0 0
    %1547 = vmatprep.subr.bf16.mxu0 0
    %1548 = vmatpush2.bf16.msra.mxu0 0
    %1549 = vmatprep.subr.bf16.mxu0 0
    %1550 = vmatpush2.bf16.msra.mxu0 0
    %1551 = vmatprep.subr.bf16.mxu0 0
    %1552 = vmatpush2.bf16.msra.mxu0 0
    %1553 = vmatprep.subr.bf16.mxu0 0
    %1554 = vmatpush2.bf16.msra.mxu0 0
    %1555 = vmatprep.mubr.bf16.mxu0 0
    %1556 = vmatmul.mubr.bf16.gmra.mxu0 %v1518
    %v1557 = vpop.f32.mrf.mxu0
    %v1558 = vadd.f32 0.0, %v1557
    %v1559 = vpop.f32.mrf.mxu0
    %v1560 = vpop.f32.mrf.mxu0
    %v1561 = vpop.f32.mrf.mxu0
    %1562 = vdwg.mxu0
    %v1563 = vpack.c.bf16 %v1558, %v1512
    %v1565 = vunpack.c.l.b16 %v1563
    %v1566 = vunpack.c.h.b16 %v1563
    %v1567 = vpack.c.b16 %v1565, %v1565
    %v1568 = vpack.c.b16 %v1566, %v1566
    %1569 = vrot.lane.b32.xlu0 %v1567, 64
    %v1570 = vpop.permute.xlu0 %1569
    %1571 = vrot.lane.b32.xlu0 %v1568, 64
    %v1572 = vpop.permute.xlu0 %1571
    %1575 = vst.msk [vmem:[#allocation2 + $0x4] sm:$0xf] %vm822, %v1570
    %1576 = vst.msk [vmem:[#allocation2 + $0x14] sm:$0xf] %vm822, %v1572
    %s1577 = scalar_lea.vmem %s3, 512
    %v1578 = vld [vmem:[%s1577] sm:$0xff]
    %v1579 = vld [vmem:[%s1577 + $0x8] sm:$0xff]
    %v1580 = vld [vmem:[%s1577 + $0x10] sm:$0xff]
    %v1581 = vld [vmem:[%s1577 + $0x18] sm:$0xff]
    %v1582 = vld [vmem:[%s1577 + $0x20] sm:$0xff]
    %v1583 = vld [vmem:[%s1577 + $0x28] sm:$0xff]
    %v1584 = vld [vmem:[%s1577 + $0x30] sm:$0xff]
    %v1585 = vld [vmem:[%s1577 + $0x38] sm:$0xff]
    %v1586 = vld [vmem:[%s1577 + $0x40] sm:$0xff]
    %v1587 = vld [vmem:[%s1577 + $0x48] sm:$0xff]
    %v1588 = vld [vmem:[%s1577 + $0x50] sm:$0xff]
    %v1589 = vld [vmem:[%s1577 + $0x58] sm:$0xff]
    %v1590 = vld [vmem:[%s1577 + $0x60] sm:$0xff]
    %v1591 = vld [vmem:[%s1577 + $0x68] sm:$0xff]
    %v1592 = vld [vmem:[%s1577 + $0x70] sm:$0xff]
    %v1593 = vld [vmem:[%s1577 + $0x78] sm:$0xff]
    %v1610 = vunpack.c.l.b16 %v1578
    %v1611 = vunpack.c.h.b16 %v1578
    %v1612 = vunpack.c.l.b16 %v1579
    %v1613 = vunpack.c.h.b16 %v1579
    %v1614 = vunpack.c.l.b16 %v1580
    %v1615 = vunpack.c.h.b16 %v1580
    %v1616 = vunpack.c.l.b16 %v1581
    %v1617 = vunpack.c.h.b16 %v1581
    %v1618 = vunpack.c.l.b16 %v1582
    %v1619 = vunpack.c.h.b16 %v1582
    %v1620 = vunpack.c.l.b16 %v1583
    %v1621 = vunpack.c.h.b16 %v1583
    %v1622 = vunpack.c.l.b16 %v1584
    %v1623 = vunpack.c.h.b16 %v1584
    %v1624 = vunpack.c.l.b16 %v1585
    %v1625 = vunpack.c.h.b16 %v1585
    %v1626 = vunpack.c.l.b16 %v1586
    %v1627 = vunpack.c.h.b16 %v1586
    %v1628 = vunpack.c.l.b16 %v1587
    %v1629 = vunpack.c.h.b16 %v1587
    %v1630 = vunpack.c.l.b16 %v1588
    %v1631 = vunpack.c.h.b16 %v1588
    %v1632 = vunpack.c.l.b16 %v1589
    %v1633 = vunpack.c.h.b16 %v1589
    %v1634 = vunpack.c.l.b16 %v1590
    %v1635 = vunpack.c.h.b16 %v1590
    %v1636 = vunpack.c.l.b16 %v1591
    %v1637 = vunpack.c.h.b16 %v1591
    %v1638 = vunpack.c.l.b16 %v1592
    %v1639 = vunpack.c.h.b16 %v1592
    %v1640 = vunpack.c.l.b16 %v1593
    %v1641 = vunpack.c.h.b16 %v1593
    %v1642 = vpack.c.b16 %v1612, %v1610
    %v1643 = vpack.c.b16 %v1613, %v1611
    %v1644 = vpack.c.b16 %v1616, %v1614
    %v1645 = vpack.c.b16 %v1617, %v1615
    %v1646 = vpack.c.b16 %v1620, %v1618
    %v1647 = vpack.c.b16 %v1621, %v1619
    %v1648 = vpack.c.b16 %v1624, %v1622
    %v1649 = vpack.c.b16 %v1625, %v1623
    %v1650 = vpack.c.b16 %v1628, %v1626
    %v1651 = vpack.c.b16 %v1629, %v1627
    %v1652 = vpack.c.b16 %v1632, %v1630
    %v1653 = vpack.c.b16 %v1633, %v1631
    %v1654 = vpack.c.b16 %v1636, %v1634
    %v1655 = vpack.c.b16 %v1637, %v1635
    %v1656 = vpack.c.b16 %v1640, %v1638
    %v1657 = vpack.c.b16 %v1641, %v1639
    %1674 = vmatprep.subr.bf16.mxu0 %v1657
    %1675 = vmatpush1.bf16.msra.mxu0 %v1656
    %1676 = vmatprep.subr.bf16.mxu0 %v1655
    %1677 = vmatpush1.bf16.msra.mxu0 %v1654
    %1678 = vmatprep.subr.bf16.mxu0 %v1653
    %1679 = vmatpush1.bf16.msra.mxu0 %v1652
    %1680 = vmatprep.subr.bf16.mxu0 %v1651
    %1681 = vmatpush1.bf16.msra.mxu0 %v1650
    %1682 = vmatprep.subr.bf16.mxu0 %v1649
    %1683 = vmatpush1.bf16.msra.mxu0 %v1648
    %1684 = vmatprep.subr.bf16.mxu0 %v1647
    %1685 = vmatpush1.bf16.msra.mxu0 %v1646
    %1686 = vmatprep.subr.bf16.mxu0 %v1645
    %1687 = vmatpush1.bf16.msra.mxu0 %v1644
    %1688 = vmatprep.subr.bf16.mxu0 %v1643
    %1689 = vmatpush1.bf16.msra.mxu0 %v1642
    %1690 = vmatprep.subr.bf16.mxu0 0
    %1691 = vmatpush2.bf16.msra.mxu0 0
    %1692 = vmatprep.subr.bf16.mxu0 0
    %1693 = vmatpush2.bf16.msra.mxu0 0
    %1694 = vmatprep.subr.bf16.mxu0 0
    %1695 = vmatpush2.bf16.msra.mxu0 0
    %1696 = vmatprep.subr.bf16.mxu0 0
    %1697 = vmatpush2.bf16.msra.mxu0 0
    %1698 = vmatprep.subr.bf16.mxu0 0
    %1699 = vmatpush2.bf16.msra.mxu0 0
    %1700 = vmatprep.subr.bf16.mxu0 0
    %1701 = vmatpush2.bf16.msra.mxu0 0
    %1702 = vmatprep.subr.bf16.mxu0 0
    %1703 = vmatpush2.bf16.msra.mxu0 0
    %1704 = vmatprep.subr.bf16.mxu0 0
    %1705 = vmatpush2.bf16.msra.mxu0 0
    %1706 = vmatprep.mubr.bf16.mxu0 0
    %1707 = vmatmul.mubr.bf16.gmra.mxu0 %v68
    %v1708 = vpop.f32.mrf.mxu0
    %v1709 = vadd.f32 0.0, %v1708
    %v1710 = vpop.f32.mrf.mxu0
    %v1711 = vadd.f32 0.0, %v1710
    %v1712 = vpop.f32.mrf.mxu0
    %v1713 = vadd.f32 0.0, %v1712
    %v1714 = vpop.f32.mrf.mxu0
    %v1715 = vadd.f32 0.0, %v1714
    %1716 = vdwg.mxu0
    %v1717 = vpack.c.bf16 %v1713, %v1709
    %v1718 = vpack.c.bf16 %v1715, %v1711
    %v1720 = vunpack.c.l.b16 %v1717
    %v1721 = vunpack.c.h.b16 %v1717
    %v1722 = vpack.c.b16 %v1720, %v1720
    %v1723 = vpack.c.b16 %v1721, %v1721
    %v1725 = vunpack.c.l.b16 %v1718
    %v1726 = vunpack.c.h.b16 %v1718
    %v1727 = vpack.c.b16 %v1725, %v1725
    %v1728 = vpack.c.b16 %v1726, %v1726
    %1729 = vrot.lane.b32.xlu0 %v1722, 64
    %v1730 = vpop.permute.xlu0 %1729
    %v1732 = vsel %vm222, %v1722, 0
    %v1735 = vsel %vm222, %v1730, 0
    %1737 = vmatprep.subr.bf16.mxu0 0
    %1738 = vmatpush1.bf16.xpose.msra.mxu0 0
    %1739 = vmatprep.subr.bf16.mxu0 0
    %1740 = vmatpush1.bf16.xpose.msra.mxu0 0
    %1741 = vmatprep.subr.bf16.mxu0 0
    %1742 = vmatpush1.bf16.xpose.msra.mxu0 0
    %1743 = vmatprep.subr.bf16.mxu0 0
    %1744 = vmatpush1.bf16.xpose.msra.mxu0 0
    %1745 = vmatprep.subr.bf16.mxu0 0
    %1746 = vmatpush1.bf16.xpose.msra.mxu0 0
    %1747 = vmatprep.subr.bf16.mxu0 0
    %1748 = vmatpush1.bf16.xpose.msra.mxu0 0
    %1749 = vmatprep.subr.bf16.mxu0 0
    %1750 = vmatpush1.bf16.xpose.msra.mxu0 0
    %1751 = vmatprep.subr.bf16.mxu0 0
    %1752 = vmatpush1.bf16.xpose.msra.mxu0 %v1735
    %1753 = vmatprep.subr.bf16.mxu0 0
    %1754 = vmatpush2.bf16.xpose.msra.mxu0 0
    %1755 = vmatprep.subr.bf16.mxu0 0
    %1756 = vmatpush2.bf16.xpose.msra.mxu0 0
    %1757 = vmatprep.subr.bf16.mxu0 0
    %1758 = vmatpush2.bf16.xpose.msra.mxu0 0
    %1759 = vmatprep.subr.bf16.mxu0 0
    %1760 = vmatpush2.bf16.xpose.msra.mxu0 0
    %1761 = vmatprep.subr.bf16.mxu0 0
    %1762 = vmatpush2.bf16.xpose.msra.mxu0 0
    %1763 = vmatprep.subr.bf16.mxu0 0
    %1764 = vmatpush2.bf16.xpose.msra.mxu0 0
    %1765 = vmatprep.subr.bf16.mxu0 0
    %1766 = vmatpush2.bf16.xpose.msra.mxu0 0
    %1767 = vmatprep.subr.bf16.mxu0 0
    %1768 = vmatpush2.bf16.xpose.msra.mxu0 0
    %1769 = vmatprep.mubr.bf16.mxu0 0
    %1770 = vmatmul.mubr.bf16.gmra.mxu0 %v1732
    %v1771 = vpop.f32.mrf.mxu0
    %v1772 = vadd.f32 0.0, %v1771
    %v1773 = vpop.f32.mrf.mxu0
    %v1774 = vpop.f32.mrf.mxu0
    %v1775 = vpop.f32.mrf.mxu0
    %1776 = vdwg.mxu0
    %1777 = vrot.lane.b32.xlu0 %v1723, 64
    %v1778 = vpop.permute.xlu0 %1777
    %v1780 = vsel %vm222, %v1723, 0
    %v1783 = vsel %vm222, %v1778, 0
    %1785 = vmatprep.subr.bf16.mxu0 0
    %1786 = vmatpush1.bf16.xpose.msra.mxu0 0
    %1787 = vmatprep.subr.bf16.mxu0 0
    %1788 = vmatpush1.bf16.xpose.msra.mxu0 0
    %1789 = vmatprep.subr.bf16.mxu0 0
    %1790 = vmatpush1.bf16.xpose.msra.mxu0 0
    %1791 = vmatprep.subr.bf16.mxu0 0
    %1792 = vmatpush1.bf16.xpose.msra.mxu0 0
    %1793 = vmatprep.subr.bf16.mxu0 0
    %1794 = vmatpush1.bf16.xpose.msra.mxu0 0
    %1795 = vmatprep.subr.bf16.mxu0 0
    %1796 = vmatpush1.bf16.xpose.msra.mxu0 0
    %1797 = vmatprep.subr.bf16.mxu0 0
    %1798 = vmatpush1.bf16.xpose.msra.mxu0 0
    %1799 = vmatprep.subr.bf16.mxu0 0
    %1800 = vmatpush1.bf16.xpose.msra.mxu0 %v1783
    %1801 = vmatprep.subr.bf16.mxu0 0
    %1802 = vmatpush2.bf16.xpose.msra.mxu0 0
    %1803 = vmatprep.subr.bf16.mxu0 0
    %1804 = vmatpush2.bf16.xpose.msra.mxu0 0
    %1805 = vmatprep.subr.bf16.mxu0 0
    %1806 = vmatpush2.bf16.xpose.msra.mxu0 0
    %1807 = vmatprep.subr.bf16.mxu0 0
    %1808 = vmatpush2.bf16.xpose.msra.mxu0 0
    %1809 = vmatprep.subr.bf16.mxu0 0
    %1810 = vmatpush2.bf16.xpose.msra.mxu0 0
    %1811 = vmatprep.subr.bf16.mxu0 0
    %1812 = vmatpush2.bf16.xpose.msra.mxu0 0
    %1813 = vmatprep.subr.bf16.mxu0 0
    %1814 = vmatpush2.bf16.xpose.msra.mxu0 0
    %1815 = vmatprep.subr.bf16.mxu0 0
    %1816 = vmatpush2.bf16.xpose.msra.mxu0 0
    %1817 = vmatprep.mubr.bf16.mxu0 0
    %1818 = vmatmul.mubr.bf16.gmra.mxu0 %v1780
    %v1819 = vpop.f32.mrf.mxu0
    %v1820 = vadd.f32 0.0, %v1819
    %v1821 = vpop.f32.mrf.mxu0
    %v1822 = vpop.f32.mrf.mxu0
    %v1823 = vpop.f32.mrf.mxu0
    %1824 = vdwg.mxu0
    %v1825 = vsel %vm317, %v1772, -inf
    %1826 = vmax.xlane.f32.xlu0 %v1825
    %v1827 = vpop.xlane.xlu0 %1826
    %v1828 = vsel %vm317, %v1820, -inf
    %1829 = vmax.xlane.f32.xlu0 %v1828
    %v1830 = vpop.xlane.xlu0 %1829
    %v1831 = vsub.f32 %v1772, %v1827
    %v1832 = vsub.f32 %v1820, %v1830
    %v1833 = vmul.f32 %v1831, 1.442695
    %v1834 = vpow.pop %v1833
    %v1835 = vmul.f32 %v1832, 1.442695
    %v1836 = vpow.pop %v1835
    %v1837 = vsel %vm317, %v1834, 0.0
    %1838 = vadd.xlane.f32.xlu0 %v1837
    %v1839 = vpop.xlane.xlu0 %1838
    %v1840 = vsel %vm317, %v1836, 0.0
    %1841 = vadd.xlane.f32.xlu0 %v1840
    %v1842 = vpop.xlane.xlu0 %1841
    %v1843 = vrcp.pop %v1839
    %v1844 = vrcp.pop %v1842
    %v1845 = vmul.f32 %v1834, %v1843
    %v1846 = vmul.f32 %v1836, %v1844
    %v1847 = vpack.c.bf16 %v1845, %v1845
    %v1848 = vpack.c.bf16 %v1846, %v1846
    %v1850 = vsel %vm317, %v1847, 0
    %v1853 = vsel %vm345, %v1727, 0
    %1855 = vmatprep.subr.bf16.mxu0 0
    %1856 = vmatpush1.bf16.msra.mxu0 0
    %1857 = vmatprep.subr.bf16.mxu0 0
    %1858 = vmatpush1.bf16.msra.mxu0 0
    %1859 = vmatprep.subr.bf16.mxu0 0
    %1860 = vmatpush1.bf16.msra.mxu0 0
    %1861 = vmatprep.subr.bf16.mxu0 0
    %1862 = vmatpush1.bf16.msra.mxu0 0
    %1863 = vmatprep.subr.bf16.mxu0 0
    %1864 = vmatpush1.bf16.msra.mxu0 0
    %1865 = vmatprep.subr.bf16.mxu0 0
    %1866 = vmatpush1.bf16.msra.mxu0 0
    %1867 = vmatprep.subr.bf16.mxu0 0
    %1868 = vmatpush1.bf16.msra.mxu0 0
    %1869 = vmatprep.subr.bf16.mxu0 0
    %1870 = vmatpush1.bf16.msra.mxu0 %v1853
    %1871 = vmatprep.subr.bf16.mxu0 0
    %1872 = vmatpush2.bf16.msra.mxu0 0
    %1873 = vmatprep.subr.bf16.mxu0 0
    %1874 = vmatpush2.bf16.msra.mxu0 0
    %1875 = vmatprep.subr.bf16.mxu0 0
    %1876 = vmatpush2.bf16.msra.mxu0 0
    %1877 = vmatprep.subr.bf16.mxu0 0
    %1878 = vmatpush2.bf16.msra.mxu0 0
    %1879 = vmatprep.subr.bf16.mxu0 0
    %1880 = vmatpush2.bf16.msra.mxu0 0
    %1881 = vmatprep.subr.bf16.mxu0 0
    %1882 = vmatpush2.bf16.msra.mxu0 0
    %1883 = vmatprep.subr.bf16.mxu0 0
    %1884 = vmatpush2.bf16.msra.mxu0 0
    %1885 = vmatprep.subr.bf16.mxu0 0
    %1886 = vmatpush2.bf16.msra.mxu0 0
    %1887 = vmatprep.mubr.bf16.mxu0 0
    %1888 = vmatmul.mubr.bf16.gmra.mxu0 %v1850
    %v1889 = vpop.f32.mrf.mxu0
    %v1890 = vadd.f32 0.0, %v1889
    %v1891 = vpop.f32.mrf.mxu0
    %v1892 = vpop.f32.mrf.mxu0
    %v1893 = vpop.f32.mrf.mxu0
    %1894 = vdwg.mxu0
    %v1896 = vsel %vm317, %v1848, 0
    %v1899 = vsel %vm345, %v1728, 0
    %1901 = vmatprep.subr.bf16.mxu0 0
    %1902 = vmatpush1.bf16.msra.mxu0 0
    %1903 = vmatprep.subr.bf16.mxu0 0
    %1904 = vmatpush1.bf16.msra.mxu0 0
    %1905 = vmatprep.subr.bf16.mxu0 0
    %1906 = vmatpush1.bf16.msra.mxu0 0
    %1907 = vmatprep.subr.bf16.mxu0 0
    %1908 = vmatpush1.bf16.msra.mxu0 0
    %1909 = vmatprep.subr.bf16.mxu0 0
    %1910 = vmatpush1.bf16.msra.mxu0 0
    %1911 = vmatprep.subr.bf16.mxu0 0
    %1912 = vmatpush1.bf16.msra.mxu0 0
    %1913 = vmatprep.subr.bf16.mxu0 0
    %1914 = vmatpush1.bf16.msra.mxu0 0
    %1915 = vmatprep.subr.bf16.mxu0 0
    %1916 = vmatpush1.bf16.msra.mxu0 %v1899
    %1917 = vmatprep.subr.bf16.mxu0 0
    %1918 = vmatpush2.bf16.msra.mxu0 0
    %1919 = vmatprep.subr.bf16.mxu0 0
    %1920 = vmatpush2.bf16.msra.mxu0 0
    %1921 = vmatprep.subr.bf16.mxu0 0
    %1922 = vmatpush2.bf16.msra.mxu0 0
    %1923 = vmatprep.subr.bf16.mxu0 0
    %1924 = vmatpush2.bf16.msra.mxu0 0
    %1925 = vmatprep.subr.bf16.mxu0 0
    %1926 = vmatpush2.bf16.msra.mxu0 0
    %1927 = vmatprep.subr.bf16.mxu0 0
    %1928 = vmatpush2.bf16.msra.mxu0 0
    %1929 = vmatprep.subr.bf16.mxu0 0
    %1930 = vmatpush2.bf16.msra.mxu0 0
    %1931 = vmatprep.subr.bf16.mxu0 0
    %1932 = vmatpush2.bf16.msra.mxu0 0
    %1933 = vmatprep.mubr.bf16.mxu0 0
    %1934 = vmatmul.mubr.bf16.gmra.mxu0 %v1896
    %v1935 = vpop.f32.mrf.mxu0
    %v1936 = vadd.f32 0.0, %v1935
    %v1937 = vpop.f32.mrf.mxu0
    %v1938 = vpop.f32.mrf.mxu0
    %v1939 = vpop.f32.mrf.mxu0
    %1940 = vdwg.mxu0
    %v1941 = vpack.c.bf16 %v1936, %v1890
    %v1943 = vunpack.c.l.b16 %v1941
    %v1944 = vunpack.c.h.b16 %v1941
    %v1945 = vpack.c.b16 %v1943, %v1943
    %v1946 = vpack.c.b16 %v1944, %v1944
    %1949 = vst.msk [vmem:[#allocation2 + $0x8] sm:$0xf] %vm443, %v1945
    %1950 = vst.msk [vmem:[#allocation2 + $0x18] sm:$0xf] %vm443, %v1946
    %s1951 = scalar_lea.vmem %s3, 640
    %v1952 = vld [vmem:[%s1951] sm:$0xff]
    %v1953 = vld [vmem:[%s1951 + $0x8] sm:$0xff]
    %v1954 = vld [vmem:[%s1951 + $0x10] sm:$0xff]
    %v1955 = vld [vmem:[%s1951 + $0x18] sm:$0xff]
    %v1956 = vld [vmem:[%s1951 + $0x20] sm:$0xff]
    %v1957 = vld [vmem:[%s1951 + $0x28] sm:$0xff]
    %v1958 = vld [vmem:[%s1951 + $0x30] sm:$0xff]
    %v1959 = vld [vmem:[%s1951 + $0x38] sm:$0xff]
    %v1960 = vld [vmem:[%s1951 + $0x40] sm:$0xff]
    %v1961 = vld [vmem:[%s1951 + $0x48] sm:$0xff]
    %v1962 = vld [vmem:[%s1951 + $0x50] sm:$0xff]
    %v1963 = vld [vmem:[%s1951 + $0x58] sm:$0xff]
    %v1964 = vld [vmem:[%s1951 + $0x60] sm:$0xff]
    %v1965 = vld [vmem:[%s1951 + $0x68] sm:$0xff]
    %v1966 = vld [vmem:[%s1951 + $0x70] sm:$0xff]
    %v1967 = vld [vmem:[%s1951 + $0x78] sm:$0xff]
    %v1984 = vunpack.c.l.b16 %v1952
    %v1985 = vunpack.c.h.b16 %v1952
    %v1986 = vunpack.c.l.b16 %v1953
    %v1987 = vunpack.c.h.b16 %v1953
    %v1988 = vunpack.c.l.b16 %v1954
    %v1989 = vunpack.c.h.b16 %v1954
    %v1990 = vunpack.c.l.b16 %v1955
    %v1991 = vunpack.c.h.b16 %v1955
    %v1992 = vunpack.c.l.b16 %v1956
    %v1993 = vunpack.c.h.b16 %v1956
    %v1994 = vunpack.c.l.b16 %v1957
    %v1995 = vunpack.c.h.b16 %v1957
    %v1996 = vunpack.c.l.b16 %v1958
    %v1997 = vunpack.c.h.b16 %v1958
    %v1998 = vunpack.c.l.b16 %v1959
    %v1999 = vunpack.c.h.b16 %v1959
    %v2000 = vunpack.c.l.b16 %v1960
    %v2001 = vunpack.c.h.b16 %v1960
    %v2002 = vunpack.c.l.b16 %v1961
    %v2003 = vunpack.c.h.b16 %v1961
    %v2004 = vunpack.c.l.b16 %v1962
    %v2005 = vunpack.c.h.b16 %v1962
    %v2006 = vunpack.c.l.b16 %v1963
    %v2007 = vunpack.c.h.b16 %v1963
    %v2008 = vunpack.c.l.b16 %v1964
    %v2009 = vunpack.c.h.b16 %v1964
    %v2010 = vunpack.c.l.b16 %v1965
    %v2011 = vunpack.c.h.b16 %v1965
    %v2012 = vunpack.c.l.b16 %v1966
    %v2013 = vunpack.c.h.b16 %v1966
    %v2014 = vunpack.c.l.b16 %v1967
    %v2015 = vunpack.c.h.b16 %v1967
    %v2016 = vpack.c.b16 %v1986, %v1984
    %v2017 = vpack.c.b16 %v1987, %v1985
    %v2018 = vpack.c.b16 %v1990, %v1988
    %v2019 = vpack.c.b16 %v1991, %v1989
    %v2020 = vpack.c.b16 %v1994, %v1992
    %v2021 = vpack.c.b16 %v1995, %v1993
    %v2022 = vpack.c.b16 %v1998, %v1996
    %v2023 = vpack.c.b16 %v1999, %v1997
    %v2024 = vpack.c.b16 %v2002, %v2000
    %v2025 = vpack.c.b16 %v2003, %v2001
    %v2026 = vpack.c.b16 %v2006, %v2004
    %v2027 = vpack.c.b16 %v2007, %v2005
    %v2028 = vpack.c.b16 %v2010, %v2008
    %v2029 = vpack.c.b16 %v2011, %v2009
    %v2030 = vpack.c.b16 %v2014, %v2012
    %v2031 = vpack.c.b16 %v2015, %v2013
    %2048 = vmatprep.subr.bf16.mxu0 %v2031
    %2049 = vmatpush1.bf16.msra.mxu0 %v2030
    %2050 = vmatprep.subr.bf16.mxu0 %v2029
    %2051 = vmatpush1.bf16.msra.mxu0 %v2028
    %2052 = vmatprep.subr.bf16.mxu0 %v2027
    %2053 = vmatpush1.bf16.msra.mxu0 %v2026
    %2054 = vmatprep.subr.bf16.mxu0 %v2025
    %2055 = vmatpush1.bf16.msra.mxu0 %v2024
    %2056 = vmatprep.subr.bf16.mxu0 %v2023
    %2057 = vmatpush1.bf16.msra.mxu0 %v2022
    %2058 = vmatprep.subr.bf16.mxu0 %v2021
    %2059 = vmatpush1.bf16.msra.mxu0 %v2020
    %2060 = vmatprep.subr.bf16.mxu0 %v2019
    %2061 = vmatpush1.bf16.msra.mxu0 %v2018
    %2062 = vmatprep.subr.bf16.mxu0 %v2017
    %2063 = vmatpush1.bf16.msra.mxu0 %v2016
    %2064 = vmatprep.subr.bf16.mxu0 0
    %2065 = vmatpush2.bf16.msra.mxu0 0
    %2066 = vmatprep.subr.bf16.mxu0 0
    %2067 = vmatpush2.bf16.msra.mxu0 0
    %2068 = vmatprep.subr.bf16.mxu0 0
    %2069 = vmatpush2.bf16.msra.mxu0 0
    %2070 = vmatprep.subr.bf16.mxu0 0
    %2071 = vmatpush2.bf16.msra.mxu0 0
    %2072 = vmatprep.subr.bf16.mxu0 0
    %2073 = vmatpush2.bf16.msra.mxu0 0
    %2074 = vmatprep.subr.bf16.mxu0 0
    %2075 = vmatpush2.bf16.msra.mxu0 0
    %2076 = vmatprep.subr.bf16.mxu0 0
    %2077 = vmatpush2.bf16.msra.mxu0 0
    %2078 = vmatprep.subr.bf16.mxu0 0
    %2079 = vmatpush2.bf16.msra.mxu0 0
    %2080 = vmatprep.mubr.bf16.mxu0 0
    %2081 = vmatmul.mubr.bf16.gmra.mxu0 %v68
    %v2082 = vpop.f32.mrf.mxu0
    %v2083 = vadd.f32 0.0, %v2082
    %v2084 = vpop.f32.mrf.mxu0
    %v2085 = vadd.f32 0.0, %v2084
    %v2086 = vpop.f32.mrf.mxu0
    %v2087 = vadd.f32 0.0, %v2086
    %v2088 = vpop.f32.mrf.mxu0
    %v2089 = vadd.f32 0.0, %v2088
    %2090 = vdwg.mxu0
    %v2091 = vpack.c.bf16 %v2087, %v2083
    %v2092 = vpack.c.bf16 %v2089, %v2085
    %v2094 = vunpack.c.l.b16 %v2091
    %v2095 = vunpack.c.h.b16 %v2091
    %v2096 = vpack.c.b16 %v2094, %v2094
    %v2097 = vpack.c.b16 %v2095, %v2095
    %v2099 = vunpack.c.l.b16 %v2092
    %v2100 = vunpack.c.h.b16 %v2092
    %v2101 = vpack.c.b16 %v2099, %v2099
    %v2102 = vpack.c.b16 %v2100, %v2100
    %2103 = vrot.lane.b32.xlu0 %v2096, 64
    %v2104 = vpop.permute.xlu0 %2103
    %v2106 = vsel %vm222, %v2096, 0
    %v2109 = vsel %vm222, %v2104, 0
    %2111 = vmatprep.subr.bf16.mxu0 0
    %2112 = vmatpush1.bf16.xpose.msra.mxu0 0
    %2113 = vmatprep.subr.bf16.mxu0 0
    %2114 = vmatpush1.bf16.xpose.msra.mxu0 0
    %2115 = vmatprep.subr.bf16.mxu0 0
    %2116 = vmatpush1.bf16.xpose.msra.mxu0 0
    %2117 = vmatprep.subr.bf16.mxu0 0
    %2118 = vmatpush1.bf16.xpose.msra.mxu0 0
    %2119 = vmatprep.subr.bf16.mxu0 0
    %2120 = vmatpush1.bf16.xpose.msra.mxu0 0
    %2121 = vmatprep.subr.bf16.mxu0 0
    %2122 = vmatpush1.bf16.xpose.msra.mxu0 0
    %2123 = vmatprep.subr.bf16.mxu0 0
    %2124 = vmatpush1.bf16.xpose.msra.mxu0 0
    %2125 = vmatprep.subr.bf16.mxu0 0
    %2126 = vmatpush1.bf16.xpose.msra.mxu0 %v2109
    %2127 = vmatprep.subr.bf16.mxu0 0
    %2128 = vmatpush2.bf16.xpose.msra.mxu0 0
    %2129 = vmatprep.subr.bf16.mxu0 0
    %2130 = vmatpush2.bf16.xpose.msra.mxu0 0
    %2131 = vmatprep.subr.bf16.mxu0 0
    %2132 = vmatpush2.bf16.xpose.msra.mxu0 0
    %2133 = vmatprep.subr.bf16.mxu0 0
    %2134 = vmatpush2.bf16.xpose.msra.mxu0 0
    %2135 = vmatprep.subr.bf16.mxu0 0
    %2136 = vmatpush2.bf16.xpose.msra.mxu0 0
    %2137 = vmatprep.subr.bf16.mxu0 0
    %2138 = vmatpush2.bf16.xpose.msra.mxu0 0
    %2139 = vmatprep.subr.bf16.mxu0 0
    %2140 = vmatpush2.bf16.xpose.msra.mxu0 0
    %2141 = vmatprep.subr.bf16.mxu0 0
    %2142 = vmatpush2.bf16.xpose.msra.mxu0 0
    %2143 = vmatprep.mubr.bf16.mxu0 0
    %2144 = vmatmul.mubr.bf16.gmra.mxu0 %v2106
    %v2145 = vpop.f32.mrf.mxu0
    %v2146 = vadd.f32 0.0, %v2145
    %v2147 = vpop.f32.mrf.mxu0
    %v2148 = vpop.f32.mrf.mxu0
    %v2149 = vpop.f32.mrf.mxu0
    %2150 = vdwg.mxu0
    %2151 = vrot.lane.b32.xlu0 %v2097, 64
    %v2152 = vpop.permute.xlu0 %2151
    %v2154 = vsel %vm222, %v2097, 0
    %v2157 = vsel %vm222, %v2152, 0
    %2159 = vmatprep.subr.bf16.mxu0 0
    %2160 = vmatpush1.bf16.xpose.msra.mxu0 0
    %2161 = vmatprep.subr.bf16.mxu0 0
    %2162 = vmatpush1.bf16.xpose.msra.mxu0 0
    %2163 = vmatprep.subr.bf16.mxu0 0
    %2164 = vmatpush1.bf16.xpose.msra.mxu0 0
    %2165 = vmatprep.subr.bf16.mxu0 0
    %2166 = vmatpush1.bf16.xpose.msra.mxu0 0
    %2167 = vmatprep.subr.bf16.mxu0 0
    %2168 = vmatpush1.bf16.xpose.msra.mxu0 0
    %2169 = vmatprep.subr.bf16.mxu0 0
    %2170 = vmatpush1.bf16.xpose.msra.mxu0 0
    %2171 = vmatprep.subr.bf16.mxu0 0
    %2172 = vmatpush1.bf16.xpose.msra.mxu0 0
    %2173 = vmatprep.subr.bf16.mxu0 0
    %2174 = vmatpush1.bf16.xpose.msra.mxu0 %v2157
    %2175 = vmatprep.subr.bf16.mxu0 0
    %2176 = vmatpush2.bf16.xpose.msra.mxu0 0
    %2177 = vmatprep.subr.bf16.mxu0 0
    %2178 = vmatpush2.bf16.xpose.msra.mxu0 0
    %2179 = vmatprep.subr.bf16.mxu0 0
    %2180 = vmatpush2.bf16.xpose.msra.mxu0 0
    %2181 = vmatprep.subr.bf16.mxu0 0
    %2182 = vmatpush2.bf16.xpose.msra.mxu0 0
    %2183 = vmatprep.subr.bf16.mxu0 0
    %2184 = vmatpush2.bf16.xpose.msra.mxu0 0
    %2185 = vmatprep.subr.bf16.mxu0 0
    %2186 = vmatpush2.bf16.xpose.msra.mxu0 0
    %2187 = vmatprep.subr.bf16.mxu0 0
    %2188 = vmatpush2.bf16.xpose.msra.mxu0 0
    %2189 = vmatprep.subr.bf16.mxu0 0
    %2190 = vmatpush2.bf16.xpose.msra.mxu0 0
    %2191 = vmatprep.mubr.bf16.mxu0 0
    %2192 = vmatmul.mubr.bf16.gmra.mxu0 %v2154
    %v2193 = vpop.f32.mrf.mxu0
    %v2194 = vadd.f32 0.0, %v2193
    %v2195 = vpop.f32.mrf.mxu0
    %v2196 = vpop.f32.mrf.mxu0
    %v2197 = vpop.f32.mrf.mxu0
    %2198 = vdwg.mxu0
    %v2199 = vsel %vm317, %v2146, -inf
    %2200 = vmax.xlane.f32.xlu0 %v2199
    %v2201 = vpop.xlane.xlu0 %2200
    %v2202 = vsel %vm317, %v2194, -inf
    %2203 = vmax.xlane.f32.xlu0 %v2202
    %v2204 = vpop.xlane.xlu0 %2203
    %v2205 = vsub.f32 %v2146, %v2201
    %v2206 = vsub.f32 %v2194, %v2204
    %v2207 = vmul.f32 %v2205, 1.442695
    %v2208 = vpow.pop %v2207
    %v2209 = vmul.f32 %v2206, 1.442695
    %v2210 = vpow.pop %v2209
    %v2211 = vsel %vm317, %v2208, 0.0
    %2212 = vadd.xlane.f32.xlu0 %v2211
    %v2213 = vpop.xlane.xlu0 %2212
    %v2214 = vsel %vm317, %v2210, 0.0
    %2215 = vadd.xlane.f32.xlu0 %v2214
    %v2216 = vpop.xlane.xlu0 %2215
    %v2217 = vrcp.pop %v2213
    %v2218 = vrcp.pop %v2216
    %v2219 = vmul.f32 %v2208, %v2217
    %v2220 = vmul.f32 %v2210, %v2218
    %v2221 = vpack.c.bf16 %v2219, %v2219
    %v2222 = vpack.c.bf16 %v2220, %v2220
    %v2224 = vsel %vm317, %v2221, 0
    %v2227 = vsel %vm345, %v2101, 0
    %2229 = vmatprep.subr.bf16.mxu0 0
    %2230 = vmatpush1.bf16.msra.mxu0 0
    %2231 = vmatprep.subr.bf16.mxu0 0
    %2232 = vmatpush1.bf16.msra.mxu0 0
    %2233 = vmatprep.subr.bf16.mxu0 0
    %2234 = vmatpush1.bf16.msra.mxu0 0
    %2235 = vmatprep.subr.bf16.mxu0 0
    %2236 = vmatpush1.bf16.msra.mxu0 0
    %2237 = vmatprep.subr.bf16.mxu0 0
    %2238 = vmatpush1.bf16.msra.mxu0 0
    %2239 = vmatprep.subr.bf16.mxu0 0
    %2240 = vmatpush1.bf16.msra.mxu0 0
    %2241 = vmatprep.subr.bf16.mxu0 0
    %2242 = vmatpush1.bf16.msra.mxu0 0
    %2243 = vmatprep.subr.bf16.mxu0 0
    %2244 = vmatpush1.bf16.msra.mxu0 %v2227
    %2245 = vmatprep.subr.bf16.mxu0 0
    %2246 = vmatpush2.bf16.msra.mxu0 0
    %2247 = vmatprep.subr.bf16.mxu0 0
    %2248 = vmatpush2.bf16.msra.mxu0 0
    %2249 = vmatprep.subr.bf16.mxu0 0
    %2250 = vmatpush2.bf16.msra.mxu0 0
    %2251 = vmatprep.subr.bf16.mxu0 0
    %2252 = vmatpush2.bf16.msra.mxu0 0
    %2253 = vmatprep.subr.bf16.mxu0 0
    %2254 = vmatpush2.bf16.msra.mxu0 0
    %2255 = vmatprep.subr.bf16.mxu0 0
    %2256 = vmatpush2.bf16.msra.mxu0 0
    %2257 = vmatprep.subr.bf16.mxu0 0
    %2258 = vmatpush2.bf16.msra.mxu0 0
    %2259 = vmatprep.subr.bf16.mxu0 0
    %2260 = vmatpush2.bf16.msra.mxu0 0
    %2261 = vmatprep.mubr.bf16.mxu0 0
    %2262 = vmatmul.mubr.bf16.gmra.mxu0 %v2224
    %v2263 = vpop.f32.mrf.mxu0
    %v2264 = vadd.f32 0.0, %v2263
    %v2265 = vpop.f32.mrf.mxu0
    %v2266 = vpop.f32.mrf.mxu0
    %v2267 = vpop.f32.mrf.mxu0
    %2268 = vdwg.mxu0
    %v2270 = vsel %vm317, %v2222, 0
    %v2273 = vsel %vm345, %v2102, 0
    %2275 = vmatprep.subr.bf16.mxu0 0
    %2276 = vmatpush1.bf16.msra.mxu0 0
    %2277 = vmatprep.subr.bf16.mxu0 0
    %2278 = vmatpush1.bf16.msra.mxu0 0
    %2279 = vmatprep.subr.bf16.mxu0 0
    %2280 = vmatpush1.bf16.msra.mxu0 0
    %2281 = vmatprep.subr.bf16.mxu0 0
    %2282 = vmatpush1.bf16.msra.mxu0 0
    %2283 = vmatprep.subr.bf16.mxu0 0
    %2284 = vmatpush1.bf16.msra.mxu0 0
    %2285 = vmatprep.subr.bf16.mxu0 0
    %2286 = vmatpush1.bf16.msra.mxu0 0
    %2287 = vmatprep.subr.bf16.mxu0 0
    %2288 = vmatpush1.bf16.msra.mxu0 0
    %2289 = vmatprep.subr.bf16.mxu0 0
    %2290 = vmatpush1.bf16.msra.mxu0 %v2273
    %2291 = vmatprep.subr.bf16.mxu0 0
    %2292 = vmatpush2.bf16.msra.mxu0 0
    %2293 = vmatprep.subr.bf16.mxu0 0
    %2294 = vmatpush2.bf16.msra.mxu0 0
    %2295 = vmatprep.subr.bf16.mxu0 0
    %2296 = vmatpush2.bf16.msra.mxu0 0
    %2297 = vmatprep.subr.bf16.mxu0 0
    %2298 = vmatpush2.bf16.msra.mxu0 0
    %2299 = vmatprep.subr.bf16.mxu0 0
    %2300 = vmatpush2.bf16.msra.mxu0 0
    %2301 = vmatprep.subr.bf16.mxu0 0
    %2302 = vmatpush2.bf16.msra.mxu0 0
    %2303 = vmatprep.subr.bf16.mxu0 0
    %2304 = vmatpush2.bf16.msra.mxu0 0
    %2305 = vmatprep.subr.bf16.mxu0 0
    %2306 = vmatpush2.bf16.msra.mxu0 0
    %2307 = vmatprep.mubr.bf16.mxu0 0
    %2308 = vmatmul.mubr.bf16.gmra.mxu0 %v2270
    %v2309 = vpop.f32.mrf.mxu0
    %v2310 = vadd.f32 0.0, %v2309
    %v2311 = vpop.f32.mrf.mxu0
    %v2312 = vpop.f32.mrf.mxu0
    %v2313 = vpop.f32.mrf.mxu0
    %2314 = vdwg.mxu0
    %v2315 = vpack.c.bf16 %v2310, %v2264
    %v2317 = vunpack.c.l.b16 %v2315
    %v2318 = vunpack.c.h.b16 %v2315
    %v2319 = vpack.c.b16 %v2317, %v2317
    %v2320 = vpack.c.b16 %v2318, %v2318
    %2321 = vrot.lane.b32.xlu0 %v2319, 64
    %v2322 = vpop.permute.xlu0 %2321
    %2323 = vrot.lane.b32.xlu0 %v2320, 64
    %v2324 = vpop.permute.xlu0 %2323
    %2327 = vst.msk [vmem:[#allocation2 + $0x8] sm:$0xf] %vm822, %v2322
    %2328 = vst.msk [vmem:[#allocation2 + $0x18] sm:$0xf] %vm822, %v2324
    %s2329 = scalar_lea.vmem %s3, 768
    %v2330 = vld [vmem:[%s2329] sm:$0xff]
    %v2331 = vld [vmem:[%s2329 + $0x8] sm:$0xff]
    %v2332 = vld [vmem:[%s2329 + $0x10] sm:$0xff]
    %v2333 = vld [vmem:[%s2329 + $0x18] sm:$0xff]
    %v2334 = vld [vmem:[%s2329 + $0x20] sm:$0xff]
    %v2335 = vld [vmem:[%s2329 + $0x28] sm:$0xff]
    %v2336 = vld [vmem:[%s2329 + $0x30] sm:$0xff]
    %v2337 = vld [vmem:[%s2329 + $0x38] sm:$0xff]
    %v2338 = vld [vmem:[%s2329 + $0x40] sm:$0xff]
    %v2339 = vld [vmem:[%s2329 + $0x48] sm:$0xff]
    %v2340 = vld [vmem:[%s2329 + $0x50] sm:$0xff]
    %v2341 = vld [vmem:[%s2329 + $0x58] sm:$0xff]
    %v2342 = vld [vmem:[%s2329 + $0x60] sm:$0xff]
    %v2343 = vld [vmem:[%s2329 + $0x68] sm:$0xff]
    %v2344 = vld [vmem:[%s2329 + $0x70] sm:$0xff]
    %v2345 = vld [vmem:[%s2329 + $0x78] sm:$0xff]
    %v2362 = vunpack.c.l.b16 %v2330
    %v2363 = vunpack.c.h.b16 %v2330
    %v2364 = vunpack.c.l.b16 %v2331
    %v2365 = vunpack.c.h.b16 %v2331
    %v2366 = vunpack.c.l.b16 %v2332
    %v2367 = vunpack.c.h.b16 %v2332
    %v2368 = vunpack.c.l.b16 %v2333
    %v2369 = vunpack.c.h.b16 %v2333
    %v2370 = vunpack.c.l.b16 %v2334
    %v2371 = vunpack.c.h.b16 %v2334
    %v2372 = vunpack.c.l.b16 %v2335
    %v2373 = vunpack.c.h.b16 %v2335
    %v2374 = vunpack.c.l.b16 %v2336
    %v2375 = vunpack.c.h.b16 %v2336
    %v2376 = vunpack.c.l.b16 %v2337
    %v2377 = vunpack.c.h.b16 %v2337
    %v2378 = vunpack.c.l.b16 %v2338
    %v2379 = vunpack.c.h.b16 %v2338
    %v2380 = vunpack.c.l.b16 %v2339
    %v2381 = vunpack.c.h.b16 %v2339
    %v2382 = vunpack.c.l.b16 %v2340
    %v2383 = vunpack.c.h.b16 %v2340
    %v2384 = vunpack.c.l.b16 %v2341
    %v2385 = vunpack.c.h.b16 %v2341
    %v2386 = vunpack.c.l.b16 %v2342
    %v2387 = vunpack.c.h.b16 %v2342
    %v2388 = vunpack.c.l.b16 %v2343
    %v2389 = vunpack.c.h.b16 %v2343
    %v2390 = vunpack.c.l.b16 %v2344
    %v2391 = vunpack.c.h.b16 %v2344
    %v2392 = vunpack.c.l.b16 %v2345
    %v2393 = vunpack.c.h.b16 %v2345
    %v2394 = vpack.c.b16 %v2364, %v2362
    %v2395 = vpack.c.b16 %v2365, %v2363
    %v2396 = vpack.c.b16 %v2368, %v2366
    %v2397 = vpack.c.b16 %v2369, %v2367
    %v2398 = vpack.c.b16 %v2372, %v2370
    %v2399 = vpack.c.b16 %v2373, %v2371
    %v2400 = vpack.c.b16 %v2376, %v2374
    %v2401 = vpack.c.b16 %v2377, %v2375
    %v2402 = vpack.c.b16 %v2380, %v2378
    %v2403 = vpack.c.b16 %v2381, %v2379
    %v2404 = vpack.c.b16 %v2384, %v2382
    %v2405 = vpack.c.b16 %v2385, %v2383
    %v2406 = vpack.c.b16 %v2388, %v2386
    %v2407 = vpack.c.b16 %v2389, %v2387
    %v2408 = vpack.c.b16 %v2392, %v2390
    %v2409 = vpack.c.b16 %v2393, %v2391
    %2426 = vmatprep.subr.bf16.mxu0 %v2409
    %2427 = vmatpush1.bf16.msra.mxu0 %v2408
    %2428 = vmatprep.subr.bf16.mxu0 %v2407
    %2429 = vmatpush1.bf16.msra.mxu0 %v2406
    %2430 = vmatprep.subr.bf16.mxu0 %v2405
    %2431 = vmatpush1.bf16.msra.mxu0 %v2404
    %2432 = vmatprep.subr.bf16.mxu0 %v2403
    %2433 = vmatpush1.bf16.msra.mxu0 %v2402
    %2434 = vmatprep.subr.bf16.mxu0 %v2401
    %2435 = vmatpush1.bf16.msra.mxu0 %v2400
    %2436 = vmatprep.subr.bf16.mxu0 %v2399
    %2437 = vmatpush1.bf16.msra.mxu0 %v2398
    %2438 = vmatprep.subr.bf16.mxu0 %v2397
    %2439 = vmatpush1.bf16.msra.mxu0 %v2396
    %2440 = vmatprep.subr.bf16.mxu0 %v2395
    %2441 = vmatpush1.bf16.msra.mxu0 %v2394
    %2442 = vmatprep.subr.bf16.mxu0 0
    %2443 = vmatpush2.bf16.msra.mxu0 0
    %2444 = vmatprep.subr.bf16.mxu0 0
    %2445 = vmatpush2.bf16.msra.mxu0 0
    %2446 = vmatprep.subr.bf16.mxu0 0
    %2447 = vmatpush2.bf16.msra.mxu0 0
    %2448 = vmatprep.subr.bf16.mxu0 0
    %2449 = vmatpush2.bf16.msra.mxu0 0
    %2450 = vmatprep.subr.bf16.mxu0 0
    %2451 = vmatpush2.bf16.msra.mxu0 0
    %2452 = vmatprep.subr.bf16.mxu0 0
    %2453 = vmatpush2.bf16.msra.mxu0 0
    %2454 = vmatprep.subr.bf16.mxu0 0
    %2455 = vmatpush2.bf16.msra.mxu0 0
    %2456 = vmatprep.subr.bf16.mxu0 0
    %2457 = vmatpush2.bf16.msra.mxu0 0
    %2458 = vmatprep.mubr.bf16.mxu0 0
    %2459 = vmatmul.mubr.bf16.gmra.mxu0 %v68
    %v2460 = vpop.f32.mrf.mxu0
    %v2461 = vadd.f32 0.0, %v2460
    %v2462 = vpop.f32.mrf.mxu0
    %v2463 = vadd.f32 0.0, %v2462
    %v2464 = vpop.f32.mrf.mxu0
    %v2465 = vadd.f32 0.0, %v2464
    %v2466 = vpop.f32.mrf.mxu0
    %v2467 = vadd.f32 0.0, %v2466
    %2468 = vdwg.mxu0
    %v2469 = vpack.c.bf16 %v2465, %v2461
    %v2470 = vpack.c.bf16 %v2467, %v2463
    %v2472 = vunpack.c.l.b16 %v2469
    %v2473 = vunpack.c.h.b16 %v2469
    %v2474 = vpack.c.b16 %v2472, %v2472
    %v2475 = vpack.c.b16 %v2473, %v2473
    %v2477 = vunpack.c.l.b16 %v2470
    %v2478 = vunpack.c.h.b16 %v2470
    %v2479 = vpack.c.b16 %v2477, %v2477
    %v2480 = vpack.c.b16 %v2478, %v2478
    %2481 = vrot.lane.b32.xlu0 %v2474, 64
    %v2482 = vpop.permute.xlu0 %2481
    %v2484 = vsel %vm222, %v2474, 0
    %v2487 = vsel %vm222, %v2482, 0
    %2489 = vmatprep.subr.bf16.mxu0 0
    %2490 = vmatpush1.bf16.xpose.msra.mxu0 0
    %2491 = vmatprep.subr.bf16.mxu0 0
    %2492 = vmatpush1.bf16.xpose.msra.mxu0 0
    %2493 = vmatprep.subr.bf16.mxu0 0
    %2494 = vmatpush1.bf16.xpose.msra.mxu0 0
    %2495 = vmatprep.subr.bf16.mxu0 0
    %2496 = vmatpush1.bf16.xpose.msra.mxu0 0
    %2497 = vmatprep.subr.bf16.mxu0 0
    %2498 = vmatpush1.bf16.xpose.msra.mxu0 0
    %2499 = vmatprep.subr.bf16.mxu0 0
    %2500 = vmatpush1.bf16.xpose.msra.mxu0 0
    %2501 = vmatprep.subr.bf16.mxu0 0
    %2502 = vmatpush1.bf16.xpose.msra.mxu0 0
    %2503 = vmatprep.subr.bf16.mxu0 0
    %2504 = vmatpush1.bf16.xpose.msra.mxu0 %v2487
    %2505 = vmatprep.subr.bf16.mxu0 0
    %2506 = vmatpush2.bf16.xpose.msra.mxu0 0
    %2507 = vmatprep.subr.bf16.mxu0 0
    %2508 = vmatpush2.bf16.xpose.msra.mxu0 0
    %2509 = vmatprep.subr.bf16.mxu0 0
    %2510 = vmatpush2.bf16.xpose.msra.mxu0 0
    %2511 = vmatprep.subr.bf16.mxu0 0
    %2512 = vmatpush2.bf16.xpose.msra.mxu0 0
    %2513 = vmatprep.subr.bf16.mxu0 0
    %2514 = vmatpush2.bf16.xpose.msra.mxu0 0
    %2515 = vmatprep.subr.bf16.mxu0 0
    %2516 = vmatpush2.bf16.xpose.msra.mxu0 0
    %2517 = vmatprep.subr.bf16.mxu0 0
    %2518 = vmatpush2.bf16.xpose.msra.mxu0 0
    %2519 = vmatprep.subr.bf16.mxu0 0
    %2520 = vmatpush2.bf16.xpose.msra.mxu0 0
    %2521 = vmatprep.mubr.bf16.mxu0 0
    %2522 = vmatmul.mubr.bf16.gmra.mxu0 %v2484
    %v2523 = vpop.f32.mrf.mxu0
    %v2524 = vadd.f32 0.0, %v2523
    %v2525 = vpop.f32.mrf.mxu0
    %v2526 = vpop.f32.mrf.mxu0
    %v2527 = vpop.f32.mrf.mxu0
    %2528 = vdwg.mxu0
    %2529 = vrot.lane.b32.xlu0 %v2475, 64
    %v2530 = vpop.permute.xlu0 %2529
    %v2532 = vsel %vm222, %v2475, 0
    %v2535 = vsel %vm222, %v2530, 0
    %2537 = vmatprep.subr.bf16.mxu0 0
    %2538 = vmatpush1.bf16.xpose.msra.mxu0 0
    %2539 = vmatprep.subr.bf16.mxu0 0
    %2540 = vmatpush1.bf16.xpose.msra.mxu0 0
    %2541 = vmatprep.subr.bf16.mxu0 0
    %2542 = vmatpush1.bf16.xpose.msra.mxu0 0
    %2543 = vmatprep.subr.bf16.mxu0 0
    %2544 = vmatpush1.bf16.xpose.msra.mxu0 0
    %2545 = vmatprep.subr.bf16.mxu0 0
    %2546 = vmatpush1.bf16.xpose.msra.mxu0 0
    %2547 = vmatprep.subr.bf16.mxu0 0
    %2548 = vmatpush1.bf16.xpose.msra.mxu0 0
    %2549 = vmatprep.subr.bf16.mxu0 0
    %2550 = vmatpush1.bf16.xpose.msra.mxu0 0
    %2551 = vmatprep.subr.bf16.mxu0 0
    %2552 = vmatpush1.bf16.xpose.msra.mxu0 %v2535
    %2553 = vmatprep.subr.bf16.mxu0 0
    %2554 = vmatpush2.bf16.xpose.msra.mxu0 0
    %2555 = vmatprep.subr.bf16.mxu0 0
    %2556 = vmatpush2.bf16.xpose.msra.mxu0 0
    %2557 = vmatprep.subr.bf16.mxu0 0
    %2558 = vmatpush2.bf16.xpose.msra.mxu0 0
    %2559 = vmatprep.subr.bf16.mxu0 0
    %2560 = vmatpush2.bf16.xpose.msra.mxu0 0
    %2561 = vmatprep.subr.bf16.mxu0 0
    %2562 = vmatpush2.bf16.xpose.msra.mxu0 0
    %2563 = vmatprep.subr.bf16.mxu0 0
    %2564 = vmatpush2.bf16.xpose.msra.mxu0 0
    %2565 = vmatprep.subr.bf16.mxu0 0
    %2566 = vmatpush2.bf16.xpose.msra.mxu0 0
    %2567 = vmatprep.subr.bf16.mxu0 0
    %2568 = vmatpush2.bf16.xpose.msra.mxu0 0
    %2569 = vmatprep.mubr.bf16.mxu0 0
    %2570 = vmatmul.mubr.bf16.gmra.mxu0 %v2532
    %v2571 = vpop.f32.mrf.mxu0
    %v2572 = vadd.f32 0.0, %v2571
    %v2573 = vpop.f32.mrf.mxu0
    %v2574 = vpop.f32.mrf.mxu0
    %v2575 = vpop.f32.mrf.mxu0
    %2576 = vdwg.mxu0
    %v2577 = vsel %vm317, %v2524, -inf
    %2578 = vmax.xlane.f32.xlu0 %v2577
    %v2579 = vpop.xlane.xlu0 %2578
    %v2580 = vsel %vm317, %v2572, -inf
    %2581 = vmax.xlane.f32.xlu0 %v2580
    %v2582 = vpop.xlane.xlu0 %2581
    %v2583 = vsub.f32 %v2524, %v2579
    %v2584 = vsub.f32 %v2572, %v2582
    %v2585 = vmul.f32 %v2583, 1.442695
    %v2586 = vpow.pop %v2585
    %v2587 = vmul.f32 %v2584, 1.442695
    %v2588 = vpow.pop %v2587
    %v2589 = vsel %vm317, %v2586, 0.0
    %2590 = vadd.xlane.f32.xlu0 %v2589
    %v2591 = vpop.xlane.xlu0 %2590
    %v2592 = vsel %vm317, %v2588, 0.0
    %2593 = vadd.xlane.f32.xlu0 %v2592
    %v2594 = vpop.xlane.xlu0 %2593
    %v2595 = vrcp.pop %v2591
    %v2596 = vrcp.pop %v2594
    %v2597 = vmul.f32 %v2586, %v2595
    %v2598 = vmul.f32 %v2588, %v2596
    %v2599 = vpack.c.bf16 %v2597, %v2597
    %v2600 = vpack.c.bf16 %v2598, %v2598
    %v2602 = vsel %vm317, %v2599, 0
    %v2605 = vsel %vm345, %v2479, 0
    %2607 = vmatprep.subr.bf16.mxu0 0
    %2608 = vmatpush1.bf16.msra.mxu0 0
    %2609 = vmatprep.subr.bf16.mxu0 0
    %2610 = vmatpush1.bf16.msra.mxu0 0
    %2611 = vmatprep.subr.bf16.mxu0 0
    %2612 = vmatpush1.bf16.msra.mxu0 0
    %2613 = vmatprep.subr.bf16.mxu0 0
    %2614 = vmatpush1.bf16.msra.mxu0 0
    %2615 = vmatprep.subr.bf16.mxu0 0
    %2616 = vmatpush1.bf16.msra.mxu0 0
    %2617 = vmatprep.subr.bf16.mxu0 0
    %2618 = vmatpush1.bf16.msra.mxu0 0
    %2619 = vmatprep.subr.bf16.mxu0 0
    %2620 = vmatpush1.bf16.msra.mxu0 0
    %2621 = vmatprep.subr.bf16.mxu0 0
    %2622 = vmatpush1.bf16.msra.mxu0 %v2605
    %2623 = vmatprep.subr.bf16.mxu0 0
    %2624 = vmatpush2.bf16.msra.mxu0 0
    %2625 = vmatprep.subr.bf16.mxu0 0
    %2626 = vmatpush2.bf16.msra.mxu0 0
    %2627 = vmatprep.subr.bf16.mxu0 0
    %2628 = vmatpush2.bf16.msra.mxu0 0
    %2629 = vmatprep.subr.bf16.mxu0 0
    %2630 = vmatpush2.bf16.msra.mxu0 0
    %2631 = vmatprep.subr.bf16.mxu0 0
    %2632 = vmatpush2.bf16.msra.mxu0 0
    %2633 = vmatprep.subr.bf16.mxu0 0
    %2634 = vmatpush2.bf16.msra.mxu0 0
    %2635 = vmatprep.subr.bf16.mxu0 0
    %2636 = vmatpush2.bf16.msra.mxu0 0
    %2637 = vmatprep.subr.bf16.mxu0 0
    %2638 = vmatpush2.bf16.msra.mxu0 0
    %2639 = vmatprep.mubr.bf16.mxu0 0
    %2640 = vmatmul.mubr.bf16.gmra.mxu0 %v2602
    %v2641 = vpop.f32.mrf.mxu0
    %v2642 = vadd.f32 0.0, %v2641
    %v2643 = vpop.f32.mrf.mxu0
    %v2644 = vpop.f32.mrf.mxu0
    %v2645 = vpop.f32.mrf.mxu0
    %2646 = vdwg.mxu0
    %v2648 = vsel %vm317, %v2600, 0
    %v2651 = vsel %vm345, %v2480, 0
    %2653 = vmatprep.subr.bf16.mxu0 0
    %2654 = vmatpush1.bf16.msra.mxu0 0
    %2655 = vmatprep.subr.bf16.mxu0 0
    %2656 = vmatpush1.bf16.msra.mxu0 0
    %2657 = vmatprep.subr.bf16.mxu0 0
    %2658 = vmatpush1.bf16.msra.mxu0 0
    %2659 = vmatprep.subr.bf16.mxu0 0
    %2660 = vmatpush1.bf16.msra.mxu0 0
    %2661 = vmatprep.subr.bf16.mxu0 0
    %2662 = vmatpush1.bf16.msra.mxu0 0
    %2663 = vmatprep.subr.bf16.mxu0 0
    %2664 = vmatpush1.bf16.msra.mxu0 0
    %2665 = vmatprep.subr.bf16.mxu0 0
    %2666 = vmatpush1.bf16.msra.mxu0 0
    %2667 = vmatprep.subr.bf16.mxu0 0
    %2668 = vmatpush1.bf16.msra.mxu0 %v2651
    %2669 = vmatprep.subr.bf16.mxu0 0
    %2670 = vmatpush2.bf16.msra.mxu0 0
    %2671 = vmatprep.subr.bf16.mxu0 0
    %2672 = vmatpush2.bf16.msra.mxu0 0
    %2673 = vmatprep.subr.bf16.mxu0 0
    %2674 = vmatpush2.bf16.msra.mxu0 0
    %2675 = vmatprep.subr.bf16.mxu0 0
    %2676 = vmatpush2.bf16.msra.mxu0 0
    %2677 = vmatprep.subr.bf16.mxu0 0
    %2678 = vmatpush2.bf16.msra.mxu0 0
    %2679 = vmatprep.subr.bf16.mxu0 0
    %2680 = vmatpush2.bf16.msra.mxu0 0
    %2681 = vmatprep.subr.bf16.mxu0 0
    %2682 = vmatpush2.bf16.msra.mxu0 0
    %2683 = vmatprep.subr.bf16.mxu0 0
    %2684 = vmatpush2.bf16.msra.mxu0 0
    %2685 = vmatprep.mubr.bf16.mxu0 0
    %2686 = vmatmul.mubr.bf16.gmra.mxu0 %v2648
    %v2687 = vpop.f32.mrf.mxu0
    %v2688 = vadd.f32 0.0, %v2687
    %v2689 = vpop.f32.mrf.mxu0
    %v2690 = vpop.f32.mrf.mxu0
    %v2691 = vpop.f32.mrf.mxu0
    %2692 = vdwg.mxu0
    %v2693 = vpack.c.bf16 %v2688, %v2642
    %v2695 = vunpack.c.l.b16 %v2693
    %v2696 = vunpack.c.h.b16 %v2693
    %v2697 = vpack.c.b16 %v2695, %v2695
    %v2698 = vpack.c.b16 %v2696, %v2696
    %2701 = vst.msk [vmem:[#allocation2 + $0xc] sm:$0xf] %vm443, %v2697
    %2702 = vst.msk [vmem:[#allocation2 + $0x1c] sm:$0xf] %vm443, %v2698
    %s2703 = scalar_lea.vmem %s3, 896
    %v2704 = vld [vmem:[%s2703] sm:$0xff]
    %v2705 = vld [vmem:[%s2703 + $0x8] sm:$0xff]
    %v2706 = vld [vmem:[%s2703 + $0x10] sm:$0xff]
    %v2707 = vld [vmem:[%s2703 + $0x18] sm:$0xff]
    %v2708 = vld [vmem:[%s2703 + $0x20] sm:$0xff]
    %v2709 = vld [vmem:[%s2703 + $0x28] sm:$0xff]
    %v2710 = vld [vmem:[%s2703 + $0x30] sm:$0xff]
    %v2711 = vld [vmem:[%s2703 + $0x38] sm:$0xff]
    %v2712 = vld [vmem:[%s2703 + $0x40] sm:$0xff]
    %v2713 = vld [vmem:[%s2703 + $0x48] sm:$0xff]
    %v2714 = vld [vmem:[%s2703 + $0x50] sm:$0xff]
    %v2715 = vld [vmem:[%s2703 + $0x58] sm:$0xff]
    %v2716 = vld [vmem:[%s2703 + $0x60] sm:$0xff]
    %v2717 = vld [vmem:[%s2703 + $0x68] sm:$0xff]
    %v2718 = vld [vmem:[%s2703 + $0x70] sm:$0xff]
    %v2719 = vld [vmem:[%s2703 + $0x78] sm:$0xff]
    %v2736 = vunpack.c.l.b16 %v2704
    %v2737 = vunpack.c.h.b16 %v2704
    %v2738 = vunpack.c.l.b16 %v2705
    %v2739 = vunpack.c.h.b16 %v2705
    %v2740 = vunpack.c.l.b16 %v2706
    %v2741 = vunpack.c.h.b16 %v2706
    %v2742 = vunpack.c.l.b16 %v2707
    %v2743 = vunpack.c.h.b16 %v2707
    %v2744 = vunpack.c.l.b16 %v2708
    %v2745 = vunpack.c.h.b16 %v2708
    %v2746 = vunpack.c.l.b16 %v2709
    %v2747 = vunpack.c.h.b16 %v2709
    %v2748 = vunpack.c.l.b16 %v2710
    %v2749 = vunpack.c.h.b16 %v2710
    %v2750 = vunpack.c.l.b16 %v2711
    %v2751 = vunpack.c.h.b16 %v2711
    %v2752 = vunpack.c.l.b16 %v2712
    %v2753 = vunpack.c.h.b16 %v2712
    %v2754 = vunpack.c.l.b16 %v2713
    %v2755 = vunpack.c.h.b16 %v2713
    %v2756 = vunpack.c.l.b16 %v2714
    %v2757 = vunpack.c.h.b16 %v2714
    %v2758 = vunpack.c.l.b16 %v2715
    %v2759 = vunpack.c.h.b16 %v2715
    %v2760 = vunpack.c.l.b16 %v2716
    %v2761 = vunpack.c.h.b16 %v2716
    %v2762 = vunpack.c.l.b16 %v2717
    %v2763 = vunpack.c.h.b16 %v2717
    %v2764 = vunpack.c.l.b16 %v2718
    %v2765 = vunpack.c.h.b16 %v2718
    %v2766 = vunpack.c.l.b16 %v2719
    %v2767 = vunpack.c.h.b16 %v2719
    %v2768 = vpack.c.b16 %v2738, %v2736
    %v2769 = vpack.c.b16 %v2739, %v2737
    %v2770 = vpack.c.b16 %v2742, %v2740
    %v2771 = vpack.c.b16 %v2743, %v2741
    %v2772 = vpack.c.b16 %v2746, %v2744
    %v2773 = vpack.c.b16 %v2747, %v2745
    %v2774 = vpack.c.b16 %v2750, %v2748
    %v2775 = vpack.c.b16 %v2751, %v2749
    %v2776 = vpack.c.b16 %v2754, %v2752
    %v2777 = vpack.c.b16 %v2755, %v2753
    %v2778 = vpack.c.b16 %v2758, %v2756
    %v2779 = vpack.c.b16 %v2759, %v2757
    %v2780 = vpack.c.b16 %v2762, %v2760
    %v2781 = vpack.c.b16 %v2763, %v2761
    %v2782 = vpack.c.b16 %v2766, %v2764
    %v2783 = vpack.c.b16 %v2767, %v2765
    %2800 = vmatprep.subr.bf16.mxu0 %v2783
    %2801 = vmatpush1.bf16.msra.mxu0 %v2782
    %2802 = vmatprep.subr.bf16.mxu0 %v2781
    %2803 = vmatpush1.bf16.msra.mxu0 %v2780
    %2804 = vmatprep.subr.bf16.mxu0 %v2779
    %2805 = vmatpush1.bf16.msra.mxu0 %v2778
    %2806 = vmatprep.subr.bf16.mxu0 %v2777
    %2807 = vmatpush1.bf16.msra.mxu0 %v2776
    %2808 = vmatprep.subr.bf16.mxu0 %v2775
    %2809 = vmatpush1.bf16.msra.mxu0 %v2774
    %2810 = vmatprep.subr.bf16.mxu0 %v2773
    %2811 = vmatpush1.bf16.msra.mxu0 %v2772
    %2812 = vmatprep.subr.bf16.mxu0 %v2771
    %2813 = vmatpush1.bf16.msra.mxu0 %v2770
    %2814 = vmatprep.subr.bf16.mxu0 %v2769
    %2815 = vmatpush1.bf16.msra.mxu0 %v2768
    %2816 = vmatprep.subr.bf16.mxu0 0
    %2817 = vmatpush2.bf16.msra.mxu0 0
    %2818 = vmatprep.subr.bf16.mxu0 0
    %2819 = vmatpush2.bf16.msra.mxu0 0
    %2820 = vmatprep.subr.bf16.mxu0 0
    %2821 = vmatpush2.bf16.msra.mxu0 0
    %2822 = vmatprep.subr.bf16.mxu0 0
    %2823 = vmatpush2.bf16.msra.mxu0 0
    %2824 = vmatprep.subr.bf16.mxu0 0
    %2825 = vmatpush2.bf16.msra.mxu0 0
    %2826 = vmatprep.subr.bf16.mxu0 0
    %2827 = vmatpush2.bf16.msra.mxu0 0
    %2828 = vmatprep.subr.bf16.mxu0 0
    %2829 = vmatpush2.bf16.msra.mxu0 0
    %2830 = vmatprep.subr.bf16.mxu0 0
    %2831 = vmatpush2.bf16.msra.mxu0 0
    %2832 = vmatprep.mubr.bf16.mxu0 0
    %2833 = vmatmul.mubr.bf16.gmra.mxu0 %v68
    %v2834 = vpop.f32.mrf.mxu0
    %v2835 = vadd.f32 0.0, %v2834
    %v2836 = vpop.f32.mrf.mxu0
    %v2837 = vadd.f32 0.0, %v2836
    %v2838 = vpop.f32.mrf.mxu0
    %v2839 = vadd.f32 0.0, %v2838
    %v2840 = vpop.f32.mrf.mxu0
    %v2841 = vadd.f32 0.0, %v2840
    %2842 = vdwg.mxu0
    %v2843 = vpack.c.bf16 %v2839, %v2835
    %v2844 = vpack.c.bf16 %v2841, %v2837
    %v2846 = vunpack.c.l.b16 %v2843
    %v2847 = vunpack.c.h.b16 %v2843
    %v2848 = vpack.c.b16 %v2846, %v2846
    %v2849 = vpack.c.b16 %v2847, %v2847
    %v2851 = vunpack.c.l.b16 %v2844
    %v2852 = vunpack.c.h.b16 %v2844
    %v2853 = vpack.c.b16 %v2851, %v2851
    %v2854 = vpack.c.b16 %v2852, %v2852
    %2855 = vrot.lane.b32.xlu0 %v2848, 64
    %v2856 = vpop.permute.xlu0 %2855
    %v2858 = vsel %vm222, %v2848, 0
    %v2861 = vsel %vm222, %v2856, 0
    %2863 = vmatprep.subr.bf16.mxu0 0
    %2864 = vmatpush1.bf16.xpose.msra.mxu0 0
    %2865 = vmatprep.subr.bf16.mxu0 0
    %2866 = vmatpush1.bf16.xpose.msra.mxu0 0
    %2867 = vmatprep.subr.bf16.mxu0 0
    %2868 = vmatpush1.bf16.xpose.msra.mxu0 0
    %2869 = vmatprep.subr.bf16.mxu0 0
    %2870 = vmatpush1.bf16.xpose.msra.mxu0 0
    %2871 = vmatprep.subr.bf16.mxu0 0
    %2872 = vmatpush1.bf16.xpose.msra.mxu0 0
    %2873 = vmatprep.subr.bf16.mxu0 0
    %2874 = vmatpush1.bf16.xpose.msra.mxu0 0
    %2875 = vmatprep.subr.bf16.mxu0 0
    %2876 = vmatpush1.bf16.xpose.msra.mxu0 0
    %2877 = vmatprep.subr.bf16.mxu0 0
    %2878 = vmatpush1.bf16.xpose.msra.mxu0 %v2861
    %2879 = vmatprep.subr.bf16.mxu0 0
    %2880 = vmatpush2.bf16.xpose.msra.mxu0 0
    %2881 = vmatprep.subr.bf16.mxu0 0
    %2882 = vmatpush2.bf16.xpose.msra.mxu0 0
    %2883 = vmatprep.subr.bf16.mxu0 0
    %2884 = vmatpush2.bf16.xpose.msra.mxu0 0
    %2885 = vmatprep.subr.bf16.mxu0 0
    %2886 = vmatpush2.bf16.xpose.msra.mxu0 0
    %2887 = vmatprep.subr.bf16.mxu0 0
    %2888 = vmatpush2.bf16.xpose.msra.mxu0 0
    %2889 = vmatprep.subr.bf16.mxu0 0
    %2890 = vmatpush2.bf16.xpose.msra.mxu0 0
    %2891 = vmatprep.subr.bf16.mxu0 0
    %2892 = vmatpush2.bf16.xpose.msra.mxu0 0
    %2893 = vmatprep.subr.bf16.mxu0 0
    %2894 = vmatpush2.bf16.xpose.msra.mxu0 0
    %2895 = vmatprep.mubr.bf16.mxu0 0
    %2896 = vmatmul.mubr.bf16.gmra.mxu0 %v2858
    %v2897 = vpop.f32.mrf.mxu0
    %v2898 = vadd.f32 0.0, %v2897
    %v2899 = vpop.f32.mrf.mxu0
    %v2900 = vpop.f32.mrf.mxu0
    %v2901 = vpop.f32.mrf.mxu0
    %2902 = vdwg.mxu0
    %2903 = vrot.lane.b32.xlu0 %v2849, 64
    %v2904 = vpop.permute.xlu0 %2903
    %v2906 = vsel %vm222, %v2849, 0
    %v2909 = vsel %vm222, %v2904, 0
    %2911 = vmatprep.subr.bf16.mxu0 0
    %2912 = vmatpush1.bf16.xpose.msra.mxu0 0
    %2913 = vmatprep.subr.bf16.mxu0 0
    %2914 = vmatpush1.bf16.xpose.msra.mxu0 0
    %2915 = vmatprep.subr.bf16.mxu0 0
    %2916 = vmatpush1.bf16.xpose.msra.mxu0 0
    %2917 = vmatprep.subr.bf16.mxu0 0
    %2918 = vmatpush1.bf16.xpose.msra.mxu0 0
    %2919 = vmatprep.subr.bf16.mxu0 0
    %2920 = vmatpush1.bf16.xpose.msra.mxu0 0
    %2921 = vmatprep.subr.bf16.mxu0 0
    %2922 = vmatpush1.bf16.xpose.msra.mxu0 0
    %2923 = vmatprep.subr.bf16.mxu0 0
    %2924 = vmatpush1.bf16.xpose.msra.mxu0 0
    %2925 = vmatprep.subr.bf16.mxu0 0
    %2926 = vmatpush1.bf16.xpose.msra.mxu0 %v2909
    %2927 = vmatprep.subr.bf16.mxu0 0
    %2928 = vmatpush2.bf16.xpose.msra.mxu0 0
    %2929 = vmatprep.subr.bf16.mxu0 0
    %2930 = vmatpush2.bf16.xpose.msra.mxu0 0
    %2931 = vmatprep.subr.bf16.mxu0 0
    %2932 = vmatpush2.bf16.xpose.msra.mxu0 0
    %2933 = vmatprep.subr.bf16.mxu0 0
    %2934 = vmatpush2.bf16.xpose.msra.mxu0 0
    %2935 = vmatprep.subr.bf16.mxu0 0
    %2936 = vmatpush2.bf16.xpose.msra.mxu0 0
    %2937 = vmatprep.subr.bf16.mxu0 0
    %2938 = vmatpush2.bf16.xpose.msra.mxu0 0
    %2939 = vmatprep.subr.bf16.mxu0 0
    %2940 = vmatpush2.bf16.xpose.msra.mxu0 0
    %2941 = vmatprep.subr.bf16.mxu0 0
    %2942 = vmatpush2.bf16.xpose.msra.mxu0 0
    %2943 = vmatprep.mubr.bf16.mxu0 0
    %2944 = vmatmul.mubr.bf16.gmra.mxu0 %v2906
    %v2945 = vpop.f32.mrf.mxu0
    %v2946 = vadd.f32 0.0, %v2945
    %v2947 = vpop.f32.mrf.mxu0
    %v2948 = vpop.f32.mrf.mxu0
    %v2949 = vpop.f32.mrf.mxu0
    %2950 = vdwg.mxu0
    %v2951 = vsel %vm317, %v2898, -inf
    %2952 = vmax.xlane.f32.xlu0 %v2951
    %v2953 = vpop.xlane.xlu0 %2952
    %v2954 = vsel %vm317, %v2946, -inf
    %2955 = vmax.xlane.f32.xlu0 %v2954
    %v2956 = vpop.xlane.xlu0 %2955
    %v2957 = vsub.f32 %v2898, %v2953
    %v2958 = vsub.f32 %v2946, %v2956
    %v2959 = vmul.f32 %v2957, 1.442695
    %v2960 = vpow.pop %v2959
    %v2961 = vmul.f32 %v2958, 1.442695
    %v2962 = vpow.pop %v2961
    %v2963 = vsel %vm317, %v2960, 0.0
    %2964 = vadd.xlane.f32.xlu0 %v2963
    %v2965 = vpop.xlane.xlu0 %2964
    %v2966 = vsel %vm317, %v2962, 0.0
    %2967 = vadd.xlane.f32.xlu0 %v2966
    %v2968 = vpop.xlane.xlu0 %2967
    %v2969 = vrcp.pop %v2965
    %v2970 = vrcp.pop %v2968
    %v2971 = vmul.f32 %v2960, %v2969
    %v2972 = vmul.f32 %v2962, %v2970
    %v2973 = vpack.c.bf16 %v2971, %v2971
    %v2974 = vpack.c.bf16 %v2972, %v2972
    %v2976 = vsel %vm317, %v2973, 0
    %v2979 = vsel %vm345, %v2853, 0
    %2981 = vmatprep.subr.bf16.mxu0 0
    %2982 = vmatpush1.bf16.msra.mxu0 0
    %2983 = vmatprep.subr.bf16.mxu0 0
    %2984 = vmatpush1.bf16.msra.mxu0 0
    %2985 = vmatprep.subr.bf16.mxu0 0
    %2986 = vmatpush1.bf16.msra.mxu0 0
    %2987 = vmatprep.subr.bf16.mxu0 0
    %2988 = vmatpush1.bf16.msra.mxu0 0
    %2989 = vmatprep.subr.bf16.mxu0 0
    %2990 = vmatpush1.bf16.msra.mxu0 0
    %2991 = vmatprep.subr.bf16.mxu0 0
    %2992 = vmatpush1.bf16.msra.mxu0 0
    %2993 = vmatprep.subr.bf16.mxu0 0
    %2994 = vmatpush1.bf16.msra.mxu0 0
    %2995 = vmatprep.subr.bf16.mxu0 0
    %2996 = vmatpush1.bf16.msra.mxu0 %v2979
    %2997 = vmatprep.subr.bf16.mxu0 0
    %2998 = vmatpush2.bf16.msra.mxu0 0
    %2999 = vmatprep.subr.bf16.mxu0 0
    %3000 = vmatpush2.bf16.msra.mxu0 0
    %3001 = vmatprep.subr.bf16.mxu0 0
    %3002 = vmatpush2.bf16.msra.mxu0 0
    %3003 = vmatprep.subr.bf16.mxu0 0
    %3004 = vmatpush2.bf16.msra.mxu0 0
    %3005 = vmatprep.subr.bf16.mxu0 0
    %3006 = vmatpush2.bf16.msra.mxu0 0
    %3007 = vmatprep.subr.bf16.mxu0 0
    %3008 = vmatpush2.bf16.msra.mxu0 0
    %3009 = vmatprep.subr.bf16.mxu0 0
    %3010 = vmatpush2.bf16.msra.mxu0 0
    %3011 = vmatprep.subr.bf16.mxu0 0
    %3012 = vmatpush2.bf16.msra.mxu0 0
    %3013 = vmatprep.mubr.bf16.mxu0 0
    %3014 = vmatmul.mubr.bf16.gmra.mxu0 %v2976
    %v3015 = vpop.f32.mrf.mxu0
    %v3016 = vadd.f32 0.0, %v3015
    %v3017 = vpop.f32.mrf.mxu0
    %v3018 = vpop.f32.mrf.mxu0
    %v3019 = vpop.f32.mrf.mxu0
    %3020 = vdwg.mxu0
    %v3022 = vsel %vm317, %v2974, 0
    %v3025 = vsel %vm345, %v2854, 0
    %3027 = vmatprep.subr.bf16.mxu0 0
    %3028 = vmatpush1.bf16.msra.mxu0 0
    %3029 = vmatprep.subr.bf16.mxu0 0
    %3030 = vmatpush1.bf16.msra.mxu0 0
    %3031 = vmatprep.subr.bf16.mxu0 0
    %3032 = vmatpush1.bf16.msra.mxu0 0
    %3033 = vmatprep.subr.bf16.mxu0 0
    %3034 = vmatpush1.bf16.msra.mxu0 0
    %3035 = vmatprep.subr.bf16.mxu0 0
    %3036 = vmatpush1.bf16.msra.mxu0 0
    %3037 = vmatprep.subr.bf16.mxu0 0
    %3038 = vmatpush1.bf16.msra.mxu0 0
    %3039 = vmatprep.subr.bf16.mxu0 0
    %3040 = vmatpush1.bf16.msra.mxu0 0
    %3041 = vmatprep.subr.bf16.mxu0 0
    %3042 = vmatpush1.bf16.msra.mxu0 %v3025
    %3043 = vmatprep.subr.bf16.mxu0 0
    %3044 = vmatpush2.bf16.msra.mxu0 0
    %3045 = vmatprep.subr.bf16.mxu0 0
    %3046 = vmatpush2.bf16.msra.mxu0 0
    %3047 = vmatprep.subr.bf16.mxu0 0
    %3048 = vmatpush2.bf16.msra.mxu0 0
    %3049 = vmatprep.subr.bf16.mxu0 0
    %3050 = vmatpush2.bf16.msra.mxu0 0
    %3051 = vmatprep.subr.bf16.mxu0 0
    %3052 = vmatpush2.bf16.msra.mxu0 0
    %3053 = vmatprep.subr.bf16.mxu0 0
    %3054 = vmatpush2.bf16.msra.mxu0 0
    %3055 = vmatprep.subr.bf16.mxu0 0
    %3056 = vmatpush2.bf16.msra.mxu0 0
    %3057 = vmatprep.subr.bf16.mxu0 0
    %3058 = vmatpush2.bf16.msra.mxu0 0
    %3059 = vmatprep.mubr.bf16.mxu0 0
    %3060 = vmatmul.mubr.bf16.gmra.mxu0 %v3022
    %v3061 = vpop.f32.mrf.mxu0
    %v3062 = vadd.f32 0.0, %v3061
    %v3063 = vpop.f32.mrf.mxu0
    %v3064 = vpop.f32.mrf.mxu0
    %v3065 = vpop.f32.mrf.mxu0
    %3066 = vdwg.mxu0
    %v3067 = vpack.c.bf16 %v3062, %v3016
    %v3069 = vunpack.c.l.b16 %v3067
    %v3070 = vunpack.c.h.b16 %v3067
    %v3071 = vpack.c.b16 %v3069, %v3069
    %v3072 = vpack.c.b16 %v3070, %v3070
    %3073 = vrot.lane.b32.xlu0 %v3071, 64
    %v3074 = vpop.permute.xlu0 %3073
    %3075 = vrot.lane.b32.xlu0 %v3072, 64
    %v3076 = vpop.permute.xlu0 %3075
    %3079 = vst.msk [vmem:[#allocation2 + $0xc] sm:$0xf] %vm822, %v3074
    %3080 = vst.msk [vmem:[#allocation2 + $0x1c] sm:$0xf] %vm822, %v3076
    %v3081 = vld [vmem:[#allocation2] sm:$0xff]
    %v3082 = vld [vmem:[#allocation2 + $0x8] sm:$0xff]
    %v3083 = vld [vmem:[#allocation2 + $0x10] sm:$0xff]
    %v3084 = vld [vmem:[#allocation2 + $0x18] sm:$0xff]
    %v3085 = vld [vmem:[%s4] sm:$0xf]
    %v3086 = vld [vmem:[%s4 + $0x4] sm:$0xf]
    %v3087 = vld [vmem:[%s4 + $0x8] sm:$0xf]
    %v3088 = vld [vmem:[%s4 + $0xc] sm:$0xf]
    %v3089 = vld [vmem:[%s4 + $0x10] sm:$0xf]
    %v3090 = vld [vmem:[%s4 + $0x14] sm:$0xf]
    %v3091 = vld [vmem:[%s4 + $0x18] sm:$0xf]
    %v3092 = vld [vmem:[%s4 + $0x1c] sm:$0xf]
    %v3093 = vld [vmem:[%s4 + $0x20] sm:$0xf]
    %v3094 = vld [vmem:[%s4 + $0x24] sm:$0xf]
    %v3095 = vld [vmem:[%s4 + $0x28] sm:$0xf]
    %v3096 = vld [vmem:[%s4 + $0x2c] sm:$0xf]
    %v3097 = vld [vmem:[%s4 + $0x30] sm:$0xf]
    %v3098 = vld [vmem:[%s4 + $0x34] sm:$0xf]
    %v3099 = vld [vmem:[%s4 + $0x38] sm:$0xf]
    %v3100 = vld [vmem:[%s4 + $0x3c] sm:$0xf]
    %v3101 = vld [vmem:[%s4 + $0x40] sm:$0xf]
    %v3102 = vld [vmem:[%s4 + $0x44] sm:$0xf]
    %v3103 = vld [vmem:[%s4 + $0x48] sm:$0xf]
    %v3104 = vld [vmem:[%s4 + $0x4c] sm:$0xf]
    %v3105 = vld [vmem:[%s4 + $0x50] sm:$0xf]
    %v3106 = vld [vmem:[%s4 + $0x54] sm:$0xf]
    %v3107 = vld [vmem:[%s4 + $0x58] sm:$0xf]
    %v3108 = vld [vmem:[%s4 + $0x5c] sm:$0xf]
    %v3109 = vld [vmem:[%s4 + $0x60] sm:$0xf]
    %v3110 = vld [vmem:[%s4 + $0x64] sm:$0xf]
    %v3111 = vld [vmem:[%s4 + $0x68] sm:$0xf]
    %v3112 = vld [vmem:[%s4 + $0x6c] sm:$0xf]
    %v3113 = vld [vmem:[%s4 + $0x70] sm:$0xf]
    %v3114 = vld [vmem:[%s4 + $0x74] sm:$0xf]
    %v3115 = vld [vmem:[%s4 + $0x78] sm:$0xf]
    %v3116 = vld [vmem:[%s4 + $0x7c] sm:$0xf]
    %v3117 = vld [vmem:[%s4 + $0x80] sm:$0xf]
    %v3118 = vld [vmem:[%s4 + $0x84] sm:$0xf]
    %v3119 = vld [vmem:[%s4 + $0x88] sm:$0xf]
    %v3120 = vld [vmem:[%s4 + $0x8c] sm:$0xf]
    %v3121 = vld [vmem:[%s4 + $0x90] sm:$0xf]
    %v3122 = vld [vmem:[%s4 + $0x94] sm:$0xf]
    %v3123 = vld [vmem:[%s4 + $0x98] sm:$0xf]
    %v3124 = vld [vmem:[%s4 + $0x9c] sm:$0xf]
    %v3125 = vld [vmem:[%s4 + $0xa0] sm:$0xf]
    %v3126 = vld [vmem:[%s4 + $0xa4] sm:$0xf]
    %v3127 = vld [vmem:[%s4 + $0xa8] sm:$0xf]
    %v3128 = vld [vmem:[%s4 + $0xac] sm:$0xf]
    %v3129 = vld [vmem:[%s4 + $0xb0] sm:$0xf]
    %v3130 = vld [vmem:[%s4 + $0xb4] sm:$0xf]
    %v3131 = vld [vmem:[%s4 + $0xb8] sm:$0xf]
    %v3132 = vld [vmem:[%s4 + $0xbc] sm:$0xf]
    %v3133 = vld [vmem:[%s4 + $0xc0] sm:$0xf]
    %v3134 = vld [vmem:[%s4 + $0xc4] sm:$0xf]
    %v3135 = vld [vmem:[%s4 + $0xc8] sm:$0xf]
    %v3136 = vld [vmem:[%s4 + $0xcc] sm:$0xf]
    %v3137 = vld [vmem:[%s4 + $0xd0] sm:$0xf]
    %v3138 = vld [vmem:[%s4 + $0xd4] sm:$0xf]
    %v3139 = vld [vmem:[%s4 + $0xd8] sm:$0xf]
    %v3140 = vld [vmem:[%s4 + $0xdc] sm:$0xf]
    %v3141 = vld [vmem:[%s4 + $0xe0] sm:$0xf]
    %v3142 = vld [vmem:[%s4 + $0xe4] sm:$0xf]
    %v3143 = vld [vmem:[%s4 + $0xe8] sm:$0xf]
    %v3144 = vld [vmem:[%s4 + $0xec] sm:$0xf]
    %v3145 = vld [vmem:[%s4 + $0xf0] sm:$0xf]
    %v3146 = vld [vmem:[%s4 + $0xf4] sm:$0xf]
    %v3147 = vld [vmem:[%s4 + $0xf8] sm:$0xf]
    %v3148 = vld [vmem:[%s4 + $0xfc] sm:$0xf]
    %v3149 = vld [vmem:[%s5] sm:$0x1]
    %v3151 = vlaneseq
    %v3152 = vshrl.u32 %v3151, 7
    %v3153 = vsub.s32 0, %v3152
    %v3154 = vrot.slane %v3149, %v3153
    %v3160 = vunpack.c.l.b16 %v3081
    %v3161 = vunpack.c.h.b16 %v3081
    %v3162 = vunpack.c.l.b16 %v3082
    %v3163 = vunpack.c.h.b16 %v3082
    %v3164 = vunpack.c.l.b16 %v3083
    %v3165 = vunpack.c.h.b16 %v3083
    %v3166 = vunpack.c.l.b16 %v3084
    %v3167 = vunpack.c.h.b16 %v3084
    %v3168 = vpack.c.b16 %v3164, %v3160
    %v3169 = vpack.c.b16 %v3165, %v3161
    %v3170 = vpack.c.b16 %v3166, %v3162
    %v3171 = vpack.c.b16 %v3167, %v3163
    %v3240 = vunpack.c.l.b16 %v3085
    %v3241 = vunpack.c.l.b16 %v3086
    %v3242 = vunpack.c.l.b16 %v3087
    %v3243 = vunpack.c.l.b16 %v3088
    %v3244 = vunpack.c.l.b16 %v3089
    %v3245 = vunpack.c.l.b16 %v3090
    %v3246 = vunpack.c.l.b16 %v3091
    %v3247 = vunpack.c.l.b16 %v3092
    %v3248 = vunpack.c.l.b16 %v3093
    %v3249 = vunpack.c.l.b16 %v3094
    %v3250 = vunpack.c.l.b16 %v3095
    %v3251 = vunpack.c.l.b16 %v3096
    %v3252 = vunpack.c.l.b16 %v3097
    %v3253 = vunpack.c.l.b16 %v3098
    %v3254 = vunpack.c.l.b16 %v3099
    %v3255 = vunpack.c.l.b16 %v3100
    %v3256 = vunpack.c.l.b16 %v3101
    %v3257 = vunpack.c.l.b16 %v3102
    %v3258 = vunpack.c.l.b16 %v3103
    %v3259 = vunpack.c.l.b16 %v3104
    %v3260 = vunpack.c.l.b16 %v3105
    %v3261 = vunpack.c.l.b16 %v3106
    %v3262 = vunpack.c.l.b16 %v3107
    %v3263 = vunpack.c.l.b16 %v3108
    %v3264 = vunpack.c.l.b16 %v3109
    %v3265 = vunpack.c.l.b16 %v3110
    %v3266 = vunpack.c.l.b16 %v3111
    %v3267 = vunpack.c.l.b16 %v3112
    %v3268 = vunpack.c.l.b16 %v3113
    %v3269 = vunpack.c.l.b16 %v3114
    %v3270 = vunpack.c.l.b16 %v3115
    %v3271 = vunpack.c.l.b16 %v3116
    %v3272 = vunpack.c.l.b16 %v3117
    %v3273 = vunpack.c.l.b16 %v3118
    %v3274 = vunpack.c.l.b16 %v3119
    %v3275 = vunpack.c.l.b16 %v3120
    %v3276 = vunpack.c.l.b16 %v3121
    %v3277 = vunpack.c.l.b16 %v3122
    %v3278 = vunpack.c.l.b16 %v3123
    %v3279 = vunpack.c.l.b16 %v3124
    %v3280 = vunpack.c.l.b16 %v3125
    %v3281 = vunpack.c.l.b16 %v3126
    %v3282 = vunpack.c.l.b16 %v3127
    %v3283 = vunpack.c.l.b16 %v3128
    %v3284 = vunpack.c.l.b16 %v3129
    %v3285 = vunpack.c.l.b16 %v3130
    %v3286 = vunpack.c.l.b16 %v3131
    %v3287 = vunpack.c.l.b16 %v3132
    %v3288 = vunpack.c.l.b16 %v3133
    %v3289 = vunpack.c.l.b16 %v3134
    %v3290 = vunpack.c.l.b16 %v3135
    %v3291 = vunpack.c.l.b16 %v3136
    %v3292 = vunpack.c.l.b16 %v3137
    %v3293 = vunpack.c.l.b16 %v3138
    %v3294 = vunpack.c.l.b16 %v3139
    %v3295 = vunpack.c.l.b16 %v3140
    %v3296 = vunpack.c.l.b16 %v3141
    %v3297 = vunpack.c.l.b16 %v3142
    %v3298 = vunpack.c.l.b16 %v3143
    %v3299 = vunpack.c.l.b16 %v3144
    %v3300 = vunpack.c.l.b16 %v3145
    %v3301 = vunpack.c.l.b16 %v3146
    %v3302 = vunpack.c.l.b16 %v3147
    %v3303 = vunpack.c.l.b16 %v3148
    %v3304 = vpack.c.b16 %v3241, %v3240
    %v3305 = vpack.c.b16 %v3243, %v3242
    %v3306 = vpack.c.b16 %v3245, %v3244
    %v3307 = vpack.c.b16 %v3247, %v3246
    %v3308 = vpack.c.b16 %v3249, %v3248
    %v3309 = vpack.c.b16 %v3251, %v3250
    %v3310 = vpack.c.b16 %v3253, %v3252
    %v3311 = vpack.c.b16 %v3255, %v3254
    %v3312 = vpack.c.b16 %v3257, %v3256
    %v3313 = vpack.c.b16 %v3259, %v3258
    %v3314 = vpack.c.b16 %v3261, %v3260
    %v3315 = vpack.c.b16 %v3263, %v3262
    %v3316 = vpack.c.b16 %v3265, %v3264
    %v3317 = vpack.c.b16 %v3267, %v3266
    %v3318 = vpack.c.b16 %v3269, %v3268
    %v3319 = vpack.c.b16 %v3271, %v3270
    %v3320 = vpack.c.b16 %v3273, %v3272
    %v3321 = vpack.c.b16 %v3275, %v3274
    %v3322 = vpack.c.b16 %v3277, %v3276
    %v3323 = vpack.c.b16 %v3279, %v3278
    %v3324 = vpack.c.b16 %v3281, %v3280
    %v3325 = vpack.c.b16 %v3283, %v3282
    %v3326 = vpack.c.b16 %v3285, %v3284
    %v3327 = vpack.c.b16 %v3287, %v3286
    %v3328 = vpack.c.b16 %v3289, %v3288
    %v3329 = vpack.c.b16 %v3291, %v3290
    %v3330 = vpack.c.b16 %v3293, %v3292
    %v3331 = vpack.c.b16 %v3295, %v3294
    %v3332 = vpack.c.b16 %v3297, %v3296
    %v3333 = vpack.c.b16 %v3299, %v3298
    %v3334 = vpack.c.b16 %v3301, %v3300
    %v3335 = vpack.c.b16 %v3303, %v3302
    %3368 = vmatprep.subr.bf16.mxu0 0
    %3369 = vmatpush1.bf16.msra.mxu0 %v3311
    %3370 = vmatprep.subr.bf16.mxu0 0
    %3371 = vmatpush1.bf16.msra.mxu0 %v3310
    %3372 = vmatprep.subr.bf16.mxu0 0
    %3373 = vmatpush1.bf16.msra.mxu0 %v3309
    %3374 = vmatprep.subr.bf16.mxu0 0
    %3375 = vmatpush1.bf16.msra.mxu0 %v3308
    %3376 = vmatprep.subr.bf16.mxu0 0
    %3377 = vmatpush1.bf16.msra.mxu0 %v3307
    %3378 = vmatprep.subr.bf16.mxu0 0
    %3379 = vmatpush1.bf16.msra.mxu0 %v3306
    %3380 = vmatprep.subr.bf16.mxu0 0
    %3381 = vmatpush1.bf16.msra.mxu0 %v3305
    %3382 = vmatprep.subr.bf16.mxu0 0
    %3383 = vmatpush1.bf16.msra.mxu0 %v3304
    %3384 = vmatprep.subr.bf16.mxu0 0
    %3385 = vmatpush2.bf16.msra.mxu0 %v3319
    %3386 = vmatprep.subr.bf16.mxu0 0
    %3387 = vmatpush2.bf16.msra.mxu0 %v3318
    %3388 = vmatprep.subr.bf16.mxu0 0
    %3389 = vmatpush2.bf16.msra.mxu0 %v3317
    %3390 = vmatprep.subr.bf16.mxu0 0
    %3391 = vmatpush2.bf16.msra.mxu0 %v3316
    %3392 = vmatprep.subr.bf16.mxu0 0
    %3393 = vmatpush2.bf16.msra.mxu0 %v3315
    %3394 = vmatprep.subr.bf16.mxu0 0
    %3395 = vmatpush2.bf16.msra.mxu0 %v3314
    %3396 = vmatprep.subr.bf16.mxu0 0
    %3397 = vmatpush2.bf16.msra.mxu0 %v3313
    %3398 = vmatprep.subr.bf16.mxu0 0
    %3399 = vmatpush2.bf16.msra.mxu0 %v3312
    %3400 = vmatprep.mubr.bf16.mxu0 %v3169
    %3401 = vmatmul.mubr.bf16.gmra.mxu0 %v3168
    %v3402 = vpop.f32.mrf.mxu0
    %v3403 = vadd.f32 %v3154, %v3402
    %v3404 = vpop.f32.mrf.mxu0
    %v3405 = vpop.f32.mrf.mxu0
    %v3406 = vadd.f32 %v3154, %v3405
    %v3407 = vpop.f32.mrf.mxu0
    %3408 = vdwg.mxu0
    %3409 = vmatprep.subr.bf16.mxu0 0
    %3410 = vmatpush1.bf16.msra.mxu0 %v3327
    %3411 = vmatprep.subr.bf16.mxu0 0
    %3412 = vmatpush1.bf16.msra.mxu0 %v3326
    %3413 = vmatprep.subr.bf16.mxu0 0
    %3414 = vmatpush1.bf16.msra.mxu0 %v3325
    %3415 = vmatprep.subr.bf16.mxu0 0
    %3416 = vmatpush1.bf16.msra.mxu0 %v3324
    %3417 = vmatprep.subr.bf16.mxu0 0
    %3418 = vmatpush1.bf16.msra.mxu0 %v3323
    %3419 = vmatprep.subr.bf16.mxu0 0
    %3420 = vmatpush1.bf16.msra.mxu0 %v3322
    %3421 = vmatprep.subr.bf16.mxu0 0
    %3422 = vmatpush1.bf16.msra.mxu0 %v3321
    %3423 = vmatprep.subr.bf16.mxu0 0
    %3424 = vmatpush1.bf16.msra.mxu0 %v3320
    %3425 = vmatprep.subr.bf16.mxu0 0
    %3426 = vmatpush2.bf16.msra.mxu0 %v3335
    %3427 = vmatprep.subr.bf16.mxu0 0
    %3428 = vmatpush2.bf16.msra.mxu0 %v3334
    %3429 = vmatprep.subr.bf16.mxu0 0
    %3430 = vmatpush2.bf16.msra.mxu0 %v3333
    %3431 = vmatprep.subr.bf16.mxu0 0
    %3432 = vmatpush2.bf16.msra.mxu0 %v3332
    %3433 = vmatprep.subr.bf16.mxu0 0
    %3434 = vmatpush2.bf16.msra.mxu0 %v3331
    %3435 = vmatprep.subr.bf16.mxu0 0
    %3436 = vmatpush2.bf16.msra.mxu0 %v3330
    %3437 = vmatprep.subr.bf16.mxu0 0
    %3438 = vmatpush2.bf16.msra.mxu0 %v3329
    %3439 = vmatprep.subr.bf16.mxu0 0
    %3440 = vmatpush2.bf16.msra.mxu0 %v3328
    %3441 = vmatprep.mubr.bf16.mxu0 %v3171
    %3442 = vmatmul.mubr.bf16.gmra.mxu0 %v3170
    %v3443 = vpop.f32.mrf.mxu0
    %v3444 = vadd.f32 %v3403, %v3443
    %v3445 = vpop.f32.mrf.mxu0
    %v3446 = vpop.f32.mrf.mxu0
    %v3447 = vadd.f32 %v3406, %v3446
    %v3448 = vpop.f32.mrf.mxu0
    %3449 = vdwg.mxu0
    %3450 = vst [vmem:[#allocation3] sm:$0xff] %v3444
    %3451 = vst [vmem:[#allocation3 + $0x8] sm:$0xff] %v3447
    // Predicated region
    $region26: #{tpu_custom_call.1} parent=1 // pred_check
      _
    $region27: #{tpu_custom_call.1} parent=1 // pred_check_branch
      %3453 = sbr.rel (0) target = $region29
    $region28: #{tpu_custom_call.1} parent=1 // pred_region
      %s3455 = ssub.s32 256, 256
      %3456 = vsyncadd [#allocation4], %s3455
      %s3457 = sshll.u32 [#allocation3], 4
      %s3458 = int_to_ptr.vmem [resolvable:$true] %s3457
      %3463 = dma.vmem_to_hbm [thread:$0]  %s3458, 256, %s6, [#allocation4], 128, 128, 8
    $region29: #{tpu_custom_call.1} parent=1 // pred_fallthru
      _
    // Predicated region
    $region30: #{tpu_custom_call.1} parent=1 // pred_check
      _
    $region31: #{tpu_custom_call.1} parent=1 // pred_check_branch
      %3465 = sbr.rel (0) target = $region33
    $region32: #{tpu_custom_call.1} parent=1 // pred_region
      %3466 = dma.done [#allocation4], 256
    $region33: #{tpu_custom_call.1} parent=1 // pred_fallthru
      _
    %3467 = vsyncpa [#allocation4], 1

</llo_original>
